<compile_context>
chip_gen: v7x
topology: tpu7x:2x2x1
jax: 0.10.0
libtpu: 0.0.40
codegen_flags: <defaults>
</compile_context>

<pallas_src>
import numpy as np
import jax
import jax.numpy as jnp
from jax.experimental import pallas as pl
from jax.experimental.pallas import tpu as pltpu


# ----------------------- deterministic parameter setup (host) -----------------------

def _hann_window(n):
    # torch.hann_window default (periodic=True)
    i = np.arange(n)
    return 0.5 * (1.0 - np.cos(2.0 * np.pi * i / n))


def _hz_to_mel_htk(f):
    return 2595.0 * np.log10(1.0 + f / 700.0)


def _mel_to_hz_htk(m):
    return 700.0 * (10.0 ** (m / 2595.0) - 1.0)


def _melscale_fbanks(n_freqs, f_min, f_max, n_mels, sr):
    # torchaudio.functional.melscale_fbanks (mel_scale="htk", norm=None)
    all_freqs = np.linspace(0.0, sr / 2.0, n_freqs)
    m_pts = np.linspace(_hz_to_mel_htk(f_min), _hz_to_mel_htk(f_max), n_mels + 2)
    f_pts = _mel_to_hz_htk(m_pts)
    f_diff = f_pts[1:] - f_pts[:-1]                        # (n_mels+1,)
    slopes = f_pts[None, :] - all_freqs[:, None]           # (n_freqs, n_mels+2)
    down = -slopes[:, :-2] / f_diff[:-1]
    up = slopes[:, 2:] / f_diff[1:]
    return np.maximum(0.0, np.minimum(down, up))           # (n_freqs, n_mels)


# ----------------------------------- Pallas kernel ----------------------------------

def _build_kernel(tm, ratio, hop, K):
    def kernel(win_ref, w_ref, fb_ref, out_ref):
        # win_ref: (tm + extra, hop) f32 chunk window; frame r = rows r .. r+ratio-1.
        # Decomposed windowed rDFT: accumulate `ratio` hop-wide MXU slabs instead of
        # materializing/concatenating a (tm, nfft) frame tile (no concat store traffic).
        proj = None
        for j in range(ratio):
            lhs = win_ref[pl.ds(j, tm), :].astype(jnp.bfloat16)       # (tm, hop)
            rhs = w_ref[pl.ds(j * hop, hop), :]                       # (hop, 2K) bf16
            part = jnp.dot(lhs, rhs, preferred_element_type=jnp.float32)
            proj = part if proj is None else proj + part              # (tm, 2K) f32
        re = proj[:, :K]
        im = proj[:, K:]
        power = re * re + im * im                                     # |STFT|^2 (window-normalized)
        mel = jnp.dot(power.astype(jnp.bfloat16), fb_ref[...],
                      preferred_element_type=jnp.float32)             # (tm, m_pad)
        out_ref[...] = jnp.log1p(mel)
    return kernel


# ------------------------------------- wrapper ---------------------------------------

def streamable_mel_spectrogram(x, audio_buffer, *, sr=44100, n_mels=128,
                               nfft=1024, hop_size=256, skip_features=None,
                               tm=512):
    """Functional equivalent of StreamableMelSpectrogram.forward (stream=True).

    x:            (B, 1, T) float32 audio chunk
    audio_buffer: (B, 1, nfft - hop_size) float32 streaming state
    returns (spec, new_audio_buffer) with spec of shape (B, n_mels, n_frames).
    """
    assert nfft % hop_size == 0, "in-kernel framing assumes hop_size divides nfft"
    assert hop_size % 128 == 0, "chunk framing assumes lane-aligned hop_size"
    B = x.shape[0]
    hop = hop_size
    ratio = nfft // hop

    x_full = jnp.concatenate([audio_buffer, x], axis=-1)      # (B, 1, T + nfft - hop)
    new_buffer = x_full[..., -(nfft - hop):]
    sig = x_full[:, 0, :].astype(jnp.float32)                 # (B, t_total)
    t_total = sig.shape[-1]
    n_frames = (t_total - nfft) // hop + 1                    # center=False framing

    # Hann window with torchaudio normalized=True ("window" norm: / sqrt(sum(win^2)))
    win = _hann_window(nfft)
    win = win / np.sqrt(np.sum(win ** 2))

    # Fused real-DFT matrix (window folded in). Nyquist bin dropped: its mel row is 0.
    K = nfft // 2                                             # 512 bins (DC .. Nyquist-1)
    k = np.arange(K)
    n = np.arange(nfft)
    ang = 2.0 * np.pi * np.outer(n, k) / nfft                 # (nfft, K)
    cosw = win[:, None] * np.cos(ang)
    sinw = win[:, None] * (-np.sin(ang))
    w = np.concatenate([cosw, sinw], axis=1)                  # (nfft, 2K) == (1024, 1024)

    fb = _melscale_fbanks(nfft // 2 + 1, 0.0, sr / 2.0, n_mels, sr)[:K]   # drop all-zero Nyquist row
    m_pad = ((n_mels + 127) // 128) * 128
    fb = np.pad(fb, ((0, 0), (0, m_pad - n_mels)))            # (K, m_pad)

    # bf16 weights: ~4x MXU rate vs f32 operands and halves the resident-weight HBM fetch.
    w = jnp.asarray(w, jnp.bfloat16)
    fb = jnp.asarray(fb, jnp.bfloat16)

    # Row tiling over frames (per batch).
    tm = max(8, min(((tm + 7) // 8) * 8, ((n_frames + 7) // 8) * 8))
    n_tiles = (n_frames + tm - 1) // tm
    n_fpad = n_tiles * tm
    extra = ((ratio + 7) // 8) * 8                            # 8-aligned look-ahead rows
    n_cpad = n_fpad + extra                                   # hop-chunks per batch (padded)

    # Chunk the signal into hop-sized rows, then gather per-tile (tm+extra, hop) windows.
    # Duplicating the `extra` (~3%) overlap wrapper-side turns the signal into
    # non-overlapping blocks, so it goes through a normal auto-pipelined BlockSpec
    # (DMA hidden behind compute) instead of an exposed in-kernel start()/wait().
    sig = jnp.pad(sig, ((0, 0), (0, n_cpad * hop - t_total)))
    chunks = sig.reshape(B, n_cpad, hop)
    row_idx = jnp.arange(n_tiles)[:, None] * tm + jnp.arange(tm + extra)[None, :]
    windows = chunks[:, row_idx, :]                           # (B, n_tiles, tm+extra, hop)
    windows = windows.reshape(B * n_tiles * (tm + extra), hop)

    # Advisory cost estimate so XLA schedules the surrounding glue correctly.
    flops = 2 * B * n_fpad * (nfft * 2 * K + K * m_pad)
    bytes_accessed = (int(windows.size) * 4 + int(w.size) * 2 + int(fb.size) * 2
                      + B * n_fpad * m_pad * 4)
    cost = pl.CostEstimate(flops=int(flops),
                           transcendentals=int(B * n_fpad * n_mels),
                           bytes_accessed=int(bytes_accessed))

    kernel = _build_kernel(tm, ratio, hop, K)
    out = pl.pallas_call(
        kernel,
        out_shape=jax.ShapeDtypeStruct((B * n_fpad, m_pad), jnp.float32),
        grid_spec=pltpu.PrefetchScalarGridSpec(
            num_scalar_prefetch=0,
            grid=(B, n_tiles),
            in_specs=[
                # per-tile chunk window (auto-pipelined / double-buffered by default)
                pl.BlockSpec((tm + extra, hop), lambda b, i: (b * n_tiles + i, 0)),
                # resident fused windowed-DFT matrix: constant index_map -> single buffer
                pl.BlockSpec((nfft, 2 * K), lambda b, i: (0, 0),
                             pipeline_mode=pl.Buffered(1)),
                # resident mel filterbank: constant index_map -> single buffer
                pl.BlockSpec((K, m_pad), lambda b, i: (0, 0),
                             pipeline_mode=pl.Buffered(1)),
            ],
            out_specs=pl.BlockSpec((tm, m_pad), lambda b, i: (b * n_tiles + i, 0)),
        ),
        compiler_params=pltpu.CompilerParams(
            dimension_semantics=("parallel", "parallel")),    # v7x: both TCs get work
        cost_estimate=cost,
    )(windows, w, fb)

    spec = out.reshape(B, n_fpad, m_pad)[:, :n_frames, :n_mels]
    spec = jnp.transpose(spec, (0, 2, 1))                     # (B, n_mels, n_frames) like torch
    if skip_features is not None:
        spec = spec[:, :skip_features]                        # log1p is elementwise: slice order equivalent
    return spec, new_buffer


if __name__ == "__main__":
    key = jax.random.PRNGKey(0)
    B, T = 2, 1024                    # small audio chunk (multiple of hop)
    sr, nfft, hop, n_mels = 44100, 1024, 256, 128

    x = jax.random.normal(key, (B, 1, T), dtype=jnp.float32)
    audio_buffer = jnp.zeros((B, 1, nfft - hop), dtype=jnp.float32)  # fresh stream state

    spec, new_buffer = streamable_mel_spectrogram(
        x, audio_buffer, sr=sr, n_mels=n_mels, nfft=nfft, hop_size=hop)
    spec, new_buffer = jax.block_until_ready((spec, new_buffer))

    # ---- shape / state checks ----
    exp_frames = (T + (nfft - hop) - nfft) // hop + 1
    assert spec.shape == (B, n_mels, exp_frames), spec.shape
    assert new_buffer.shape == (B, 1, nfft - hop), new_buffer.shape
    assert bool(jnp.all(jnp.isfinite(spec)))

    # ---- numerical reference (numpy rFFT mel spectrogram, center=False, normalized) ----
    sig_np = np.concatenate(
        [np.zeros((B, nfft - hop), np.float64), np.asarray(x[:, 0, :], np.float64)], axis=-1)
    win_np = _hann_window(nfft)
    win_np = win_np / np.sqrt(np.sum(win_np ** 2))
    idx = np.arange(exp_frames)[:, None] * hop + np.arange(nfft)[None, :]
    frames_np = sig_np[:, idx] * win_np                                   # (B, F, nfft)
    pow_spec = np.abs(np.fft.rfft(frames_np, axis=-1)) ** 2               # (B, F, nfft//2+1)
    mel_ref = pow_spec @ _melscale_fbanks(nfft // 2 + 1, 0.0, sr / 2.0, n_mels, sr)
    ref = np.log1p(mel_ref).transpose(0, 2, 1)                            # (B, n_mels, F)
    # bf16 matmul operands with f32 accumulation: ~1-2% relative error, inside tolerance.
    np.testing.assert_allclose(np.asarray(spec, np.float64), ref, rtol=5e-2, atol=1e-2)

    print("KERNEL_OK")
</pallas_src>

<mosaic_0001>
module attributes {stable_mosaic.version = 11 : i64} {
  func.func @kernel(%arg0: i32, %arg1: i32, %arg2: memref<16x256xf32, #tpu.memory_space<vmem>>, %arg3: memref<1024x1024xbf16, #tpu.memory_space<vmem>>, %arg4: memref<512x128xbf16, #tpu.memory_space<vmem>>, %arg5: memref<8x128xf32, #tpu.memory_space<vmem>>) attributes {dimension_semantics = [#tpu.dimension_semantics<parallel>, #tpu.dimension_semantics<parallel>], iteration_bounds = array<i64: 2, 1>, scalar_prefetch = 0 : i64, scratch_operands = 0 : i64, tpu.core_type = #tpu.core_type<tc>, window_params = [{transform_indices = @transform_0, window_bounds = array<i64: 16, 256>}, {pipeline_mode = #tpu.pipeline_mode<synchronous>, transform_indices = @transform_1, window_bounds = array<i64: 1024, 1024>}, {pipeline_mode = #tpu.pipeline_mode<synchronous>, transform_indices = @transform_2, window_bounds = array<i64: 512, 128>}, {transform_indices = @transform_3, window_bounds = array<i64: 8, 128>}]} {
    %c0 = arith.constant 0 : index
    %c0_0 = arith.constant 0 : index
    %0 = vector.load %arg2[%c0, %c0_0] : memref<16x256xf32, #tpu.memory_space<vmem>>, vector<8x256xf32>
    %1 = arith.truncf %0 : vector<8x256xf32> to vector<8x256xbf16>
    %c0_1 = arith.constant 0 : index
    %c0_2 = arith.constant 0 : index
    %2 = vector.load %arg3[%c0_1, %c0_2] : memref<1024x1024xbf16, #tpu.memory_space<vmem>>, vector<256x1024xbf16>
    %cst = arith.constant dense<0.000000e+00> : vector<8x1024xf32>
    %3 = tpu.matmul %1, %2, %cst {dimension_numbers = #tpu.dot_dimension_numbers<[1], [0], [0], [1], [0, 0, 1, 1], [], []>} : vector<8x256xbf16>, vector<256x1024xbf16>, vector<8x1024xf32> -> vector<8x1024xf32>
    %c1 = arith.constant 1 : index
    %c0_3 = arith.constant 0 : index
    %4 = vector.load %arg2[%c1, %c0_3] : memref<16x256xf32, #tpu.memory_space<vmem>>, vector<8x256xf32>
    %5 = arith.truncf %4 : vector<8x256xf32> to vector<8x256xbf16>
    %c256 = arith.constant 256 : index
    %c0_4 = arith.constant 0 : index
    %6 = vector.load %arg3[%c256, %c0_4] : memref<1024x1024xbf16, #tpu.memory_space<vmem>>, vector<256x1024xbf16>
    %cst_5 = arith.constant dense<0.000000e+00> : vector<8x1024xf32>
    %7 = tpu.matmul %5, %6, %cst_5 {dimension_numbers = #tpu.dot_dimension_numbers<[1], [0], [0], [1], [0, 0, 1, 1], [], []>} : vector<8x256xbf16>, vector<256x1024xbf16>, vector<8x1024xf32> -> vector<8x1024xf32>
    %8 = arith.addf %3, %7 : vector<8x1024xf32>
    %c2 = arith.constant 2 : index
    %c0_6 = arith.constant 0 : index
    %9 = vector.load %arg2[%c2, %c0_6] : memref<16x256xf32, #tpu.memory_space<vmem>>, vector<8x256xf32>
    %10 = arith.truncf %9 : vector<8x256xf32> to vector<8x256xbf16>
    %c512 = arith.constant 512 : index
    %c0_7 = arith.constant 0 : index
    %11 = vector.load %arg3[%c512, %c0_7] : memref<1024x1024xbf16, #tpu.memory_space<vmem>>, vector<256x1024xbf16>
    %cst_8 = arith.constant dense<0.000000e+00> : vector<8x1024xf32>
    %12 = tpu.matmul %10, %11, %cst_8 {dimension_numbers = #tpu.dot_dimension_numbers<[1], [0], [0], [1], [0, 0, 1, 1], [], []>} : vector<8x256xbf16>, vector<256x1024xbf16>, vector<8x1024xf32> -> vector<8x1024xf32>
    %13 = arith.addf %8, %12 : vector<8x1024xf32>
    %c3 = arith.constant 3 : index
    %c0_9 = arith.constant 0 : index
    %14 = vector.load %arg2[%c3, %c0_9] : memref<16x256xf32, #tpu.memory_space<vmem>>, vector<8x256xf32>
    %15 = arith.truncf %14 : vector<8x256xf32> to vector<8x256xbf16>
    %c768 = arith.constant 768 : index
    %c0_10 = arith.constant 0 : index
    %16 = vector.load %arg3[%c768, %c0_10] : memref<1024x1024xbf16, #tpu.memory_space<vmem>>, vector<256x1024xbf16>
    %cst_11 = arith.constant dense<0.000000e+00> : vector<8x1024xf32>
    %17 = tpu.matmul %15, %16, %cst_11 {dimension_numbers = #tpu.dot_dimension_numbers<[1], [0], [0], [1], [0, 0, 1, 1], [], []>} : vector<8x256xbf16>, vector<256x1024xbf16>, vector<8x1024xf32> -> vector<8x1024xf32>
    %18 = arith.addf %13, %17 : vector<8x1024xf32>
    %19 = vector.extract_strided_slice %18 {offsets = [0, 0], sizes = [8, 512], strides = [1, 1]} : vector<8x1024xf32> to vector<8x512xf32>
    %20 = vector.extract_strided_slice %18 {offsets = [0, 512], sizes = [8, 512], strides = [1, 1]} : vector<8x1024xf32> to vector<8x512xf32>
    %21 = arith.mulf %19, %19 : vector<8x512xf32>
    %22 = arith.mulf %20, %20 : vector<8x512xf32>
    %23 = arith.addf %21, %22 : vector<8x512xf32>
    %24 = arith.truncf %23 : vector<8x512xf32> to vector<8x512xbf16>
    %c0_12 = arith.constant 0 : index
    %c0_13 = arith.constant 0 : index
    %25 = vector.load %arg4[%c0_12, %c0_13] : memref<512x128xbf16, #tpu.memory_space<vmem>>, vector<512x128xbf16>
    %cst_14 = arith.constant dense<0.000000e+00> : vector<8x128xf32>
    %26 = tpu.matmul %24, %25, %cst_14 {dimension_numbers = #tpu.dot_dimension_numbers<[1], [0], [0], [1], [0, 0, 1, 1], [], []>} : vector<8x512xbf16>, vector<512x128xbf16>, vector<8x128xf32> -> vector<8x128xf32>
    %27 = math.log1p %26 : vector<8x128xf32>
    %c0_15 = arith.constant 0 : index
    %c0_16 = arith.constant 0 : index
    %28 = vector.load %arg5[%c0_15, %c0_16] : memref<8x128xf32, #tpu.memory_space<vmem>>, vector<8x128xf32>
    tpu.vector_store %arg5[%c0_15, %c0_16], %27 {strides = array<i32>} : memref<8x128xf32, #tpu.memory_space<vmem>>, vector<8x128xf32>,
    return
  }
  func.func @transform_0(%arg0: i32, %arg1: i32) -> (i32, i32) {
    %c1_i32 = arith.constant 1 : i32
    %0 = arith.muli %arg0, %c1_i32 : i32
    %1 = arith.addi %0, %arg1 : i32
    %c0_i32 = arith.constant 0 : i32
    %c0_i32_0 = arith.constant 0 : i32
    return %1, %c0_i32 : i32, i32
  }
  func.func @transform_1(%arg0: i32, %arg1: i32) -> (i32, i32) {
    %c0_i32 = arith.constant 0 : i32
    %c0_i32_0 = arith.constant 0 : i32
    %c0_i32_1 = arith.constant 0 : i32
    return %c0_i32, %c0_i32_0 : i32, i32
  }
  func.func @transform_2(%arg0: i32, %arg1: i32) -> (i32, i32) {
    %c0_i32 = arith.constant 0 : i32
    %c0_i32_0 = arith.constant 0 : i32
    %c0_i32_1 = arith.constant 0 : i32
    return %c0_i32, %c0_i32_0 : i32, i32
  }
  func.func @transform_3(%arg0: i32, %arg1: i32) -> (i32, i32) {
    %c1_i32 = arith.constant 1 : i32
    %0 = arith.muli %arg0, %c1_i32 : i32
    %1 = arith.addi %0, %arg1 : i32
    %c0_i32 = arith.constant 0 : i32
    %c0_i32_0 = arith.constant 0 : i32
    return %1, %c0_i32 : i32, i32
  }
}

</mosaic_0001>

<llo_original>
// kernel: tpu_custom_call.1
$region0: #{tpu_custom_call.1}
  #allocation0 [shape = 'u32[]', space=smem, size = 0x4, offset = 0x4, fixed_abs, tag = 'smem constant byte address 0x4 - core index']
  #allocation1 [shape = 'u32[144,128]{1,0:T(1,128)}', space=vmem, size = 0x12000, scoped, tag = 'internal scratch']
  %s0 = inlined_call_operand.hbm [shape: f32[32,256], index: 0, kind: input, shape index: {}]
  %s1 = inlined_call_operand.hbm [shape: bf16[1024,1024], index: 1, kind: input, shape index: {}]
  %s2 = inlined_call_operand.hbm [shape: bf16[512,128], index: 2, kind: input, shape index: {}]
  %s3 = inlined_call_operand.hbm [shape: f32[16,128], index: 3, kind: output, shape index: {}]
  %s4 = sld [smem:[#allocation0]]
  $region57: #{tpu_custom_call.1} parent=0
    _
  %s6 = ssub.s32 1, %s4
  %s7 = scalar_select 0, %s6, %s4
  $region1: #{tpu_custom_call.1} parent=0
    #allocation2 [shape = 'u8[32768]{0}', space=vmem, size = 0x8000, scoped, tag = 'input window, operand 0']
    #allocation3 [shape = 's32[2]{0}', space=sflag, size = 0x8, scoped, tag = 'scoped memory for tpu_custom_call.1']
    #allocation4 [shape = 's32[2]{0}', space=sflag, size = 0x8, scoped, tag = 'scoped memory for tpu_custom_call.1']
    #allocation5 [shape = 'u8[2097152]{0}', space=vmem, size = 0x200000, scoped, tag = 'input window, operand 1, single buffered']
    #allocation6 [shape = 's32[1]{0}', space=sflag, size = 0x4, scoped, tag = 'scoped memory for tpu_custom_call.1']
    #allocation7 [shape = 'u8[131072]{0}', space=vmem, size = 0x20000, scoped, tag = 'input window, operand 2, single buffered']
    #allocation8 [shape = 'u8[8192]{0}', space=vmem, size = 0x2000, scoped, tag = 'output window, operand 0']
    %8 = vsyncpa [#allocation3], 0
    %s9 = scalar_lea.sflag [#allocation3], 1
    %10 = vsyncpa %s9, 0
    %11 = vsyncpa [#allocation6], 0
    %12 = vsyncpa [#allocation4], 0
    %s13 = scalar_lea.sflag [#allocation4], 1
    %14 = vsyncpa %s13, 0
    loop: start=0, step=1, limit=4
    $region2: #{tpu_custom_call.1} parent=1 // loop_pre_header
      _
    $region3: #{tpu_custom_call.1} parent=1 // loop_header
      %s16 = sphi 0, %s20
      %p17 = scmp.ge.s32.totalorder %s16, 4
      %s23 = sphi 0, %s35
      %s24 = sphi 0, %s31
      %s25 = sphi 0, %s23
      %s26 = sphi 0, %s24
      %s27 = sphi 0, %s25
      %s28 = sphi 0, %s26
      %s40 = sphi 0, %s42
      %s43 = sphi 0, %s40
      %s44 = sphi 0, %s43
      %s60 = sphi 0, %s44
      %s64 = sphi 0, %s64
      %s66 = sphi 0, %s64
      %s67 = sphi 0, %s66
      %s81 = sphi 0, %s67
      %s85 = sphi 0, %s85
      %s87 = sphi 0, %s85
      %s88 = sphi 0, %s87
      %s102 = sphi 0, %s88
      %s110 = sphi 0, %s112
      %s113 = sphi 0, %s110
      %s114 = sphi 0, %s113
      %s130 = sphi 0, %s114
    $region4: #{tpu_custom_call.1} parent=1 // loop_header_branch
      %19 = sbr.rel (%p17) target = $region8
    $region5: #{tpu_custom_call.1} parent=1 // loop_body
      %s21 = ssub.s32 %s16, 1
      %s22 = ssub.s32 %s16, 2
      %s29 = sadd.s32 1, %s24
      %p30 = scmp.ge.s32.totalorder %s29, 1
      %s31 = scalar_select %p30, 0, %s29
      %s32 = sadd.s32 1, %s23
      %s33 = scalar_select %p30, %s32, %s23
      %p34 = scmp.ge.s32.totalorder %s33, 2
      %s35 = scalar_select %p34, 0, %s33
      %s36 = sadd.s32 %s23, %s24
      %s37 = sadd.s32 %s35, %s31
      %s38 = ssub.s32 %s36, %s37
      %p39 = scmp.eq.s32.totalorder %s38, 0
      %s41 = sadd.s32 %s40, 1
      %s42 = scalar_select %p39, %s40, %s41
      %p45 = pneg %p39
      %p46 = scmp.eq.s32.totalorder %s16, 1
      %p47 = por %p45, %p46
      %p48 = scmp.ne.s32.totalorder %s40, %s43
      %p49 = scmp.eq.s32.totalorder %s16, 0
      %p50 = por %p48, %p49
      %p51 = scmp.ne.s32.totalorder %s40, %s43
      %p52 = scmp.eq.s32.totalorder %s21, 1
      %p53 = por %p51, %p52
      %p54 = scmp.ne.s32.totalorder %s43, %s44
      %p55 = scmp.eq.s32.totalorder %s21, 0
      %p56 = por %p54, %p55
      %p57 = scmp.ne.s32.totalorder %s43, %s44
      %p58 = scmp.eq.s32.totalorder %s22, 1
      %p59 = por %p57, %p58
      %p61 = scmp.ne.s32.totalorder %s44, %s60
      %p62 = scmp.eq.s32.totalorder %s22, 0
      %p63 = por %p61, %p62
      %s65 = sadd.s32 %s64, 1
      %p68 = scmp.eq.s32.totalorder %s16, 1
      %p69 = scmp.ne.s32.totalorder %s64, %s66
      %p70 = scmp.eq.s32.totalorder %s16, 0
      %p71 = por %p69, %p70
      %p72 = scmp.ne.s32.totalorder %s64, %s66
      %p73 = scmp.eq.s32.totalorder %s21, 1
      %p74 = por %p72, %p73
      %p75 = scmp.ne.s32.totalorder %s66, %s67
      %p76 = scmp.eq.s32.totalorder %s21, 0
      %p77 = por %p75, %p76
      %p78 = scmp.ne.s32.totalorder %s66, %s67
      %p79 = scmp.eq.s32.totalorder %s22, 1
      %p80 = por %p78, %p79
      %p82 = scmp.ne.s32.totalorder %s67, %s81
      %p83 = scmp.eq.s32.totalorder %s22, 0
      %p84 = por %p82, %p83
      %s86 = sadd.s32 %s85, 1
      %p89 = scmp.eq.s32.totalorder %s16, 1
      %p90 = scmp.ne.s32.totalorder %s85, %s87
      %p91 = scmp.eq.s32.totalorder %s16, 0
      %p92 = por %p90, %p91
      %p93 = scmp.ne.s32.totalorder %s85, %s87
      %p94 = scmp.eq.s32.totalorder %s21, 1
      %p95 = por %p93, %p94
      %p96 = scmp.ne.s32.totalorder %s87, %s88
      %p97 = scmp.eq.s32.totalorder %s21, 0
      %p98 = por %p96, %p97
      %p99 = scmp.ne.s32.totalorder %s87, %s88
      %p100 = scmp.eq.s32.totalorder %s22, 1
      %p101 = por %p99, %p100
      %p103 = scmp.ne.s32.totalorder %s88, %s102
      %p104 = scmp.eq.s32.totalorder %s22, 0
      %p105 = por %p103, %p104
      %s106 = sadd.s32 %s23, %s24
      %s107 = sadd.s32 %s35, %s31
      %s108 = ssub.s32 %s106, %s107
      %p109 = scmp.eq.s32.totalorder %s108, 0
      %s111 = sadd.s32 %s110, 1
      %s112 = scalar_select %p109, %s110, %s111
      %p115 = pneg %p109
      %p116 = scmp.eq.s32.totalorder %s16, 1
      %p117 = por %p115, %p116
      %p118 = scmp.ne.s32.totalorder %s110, %s113
      %p119 = scmp.eq.s32.totalorder %s16, 0
      %p120 = por %p118, %p119
      %p121 = scmp.ne.s32.totalorder %s110, %s113
      %p122 = scmp.eq.s32.totalorder %s21, 1
      %p123 = por %p121, %p122
      %p124 = scmp.ne.s32.totalorder %s113, %s114
      %p125 = scmp.eq.s32.totalorder %s21, 0
      %p126 = por %p124, %p125
      %p127 = scmp.ne.s32.totalorder %s113, %s114
      %p128 = scmp.eq.s32.totalorder %s22, 1
      %p129 = por %p127, %p128
      %p131 = scmp.ne.s32.totalorder %s114, %s130
      %p132 = scmp.eq.s32.totalorder %s22, 0
      %p133 = por %p131, %p132
      %p134 = scmp.le.s32.totalorder 1, %s16
      %p135 = scmp.lt.s32.totalorder %s16, 3
      %p136 = pnand %p134, %p135
      %p137 = pneg %p136
      // Predicated region
      $region9: #{tpu_custom_call.1} parent=5 // pred_check
        _
      $region10: #{tpu_custom_call.1} parent=5 // pred_check_branch
        %139 = sbr.rel (%p136) target = $region12
      $region11: #{tpu_custom_call.1} parent=5 // pred_region
        %s140 = ssub.s32 %s16, 1
        // Predicated region
        $region13: #{tpu_custom_call.1} parent=11 // pred_check
          %p141 = pneg %p77
        $region14: #{tpu_custom_call.1} parent=11 // pred_check_branch
          %143 = sbr.rel (%p141) target = $region16
        $region15: #{tpu_custom_call.1} parent=11 // pred_region
          %s145 = ssub.s32 65536, 65536
          %146 = vsyncadd [#allocation6], %s145
          %s147 = sshll.u32 [#allocation5], 4
          %s148 = int_to_ptr.vmem [resolvable:$true] %s147
          %153 = dma.hbm_to_vmem [thread:$0]  %s1, 65536, %s148, [#allocation6], 512, 512, 32
        $region16: #{tpu_custom_call.1} parent=11 // pred_fallthru
          _
        // Predicated region
        $region17: #{tpu_custom_call.1} parent=11 // pred_check
          %p154 = pneg %p98
        $region18: #{tpu_custom_call.1} parent=11 // pred_check_branch
          %156 = sbr.rel (%p154) target = $region20
        $region19: #{tpu_custom_call.1} parent=11 // pred_region
          %s158 = ssub.s32 4096, 4096
          %159 = vsyncadd [#allocation6], %s158
          %s160 = sshll.u32 [#allocation7], 4
          %s161 = int_to_ptr.vmem [resolvable:$true] %s160
          %166 = dma.hbm_to_vmem [thread:$0]  %s2, 4096, %s161, [#allocation6], 64, 64, 4
        $region20: #{tpu_custom_call.1} parent=11 // pred_fallthru
          _
      $region12: #{tpu_custom_call.1} parent=5 // pred_fallthru
        _
      %p167 = scmp.lt.s32.totalorder %s16, 2
      // Predicated region
      $region21: #{tpu_custom_call.1} parent=5 // pred_check
        %p168 = pneg %p167
      $region22: #{tpu_custom_call.1} parent=5 // pred_check_branch
        %170 = sbr.rel (%p168) target = $region24
      $region23: #{tpu_custom_call.1} parent=5 // pred_region
        // Predicated region
        $region25: #{tpu_custom_call.1} parent=23 // pred_check
          %p171 = pneg %p50
        $region26: #{tpu_custom_call.1} parent=23 // pred_check_branch
          %173 = sbr.rel (%p171) target = $region28
        $region27: #{tpu_custom_call.1} parent=23 // pred_region
          %s174 = sand.u32 %s40, 1
          %s175 = scalar_lea.sflag [#allocation3], %s174
          %s176 = sand.u32 %s40, 1
          %s177 = smul.addr %s176, 32
          %s178 = scalar_lea.vmem [#allocation2], %s177
          %s179 = sadd.s32 %s23, %s24
          %s180 = smul.u32 2, %s179
          %s182 = ssub.s32 512, 512
          %183 = vsyncadd %s175, %s182
          %s184 = smul.addr %s180, 2
          %s185 = smul.addr %s184, 128
          %s186 = scalar_lea.hbm %s0, %s185
          %s187 = sshll.u32 %s178, 4
          %s188 = int_to_ptr.vmem [resolvable:$true] %s187
          %193 = dma.hbm_to_vmem [thread:$0]  %s186, 512, %s188, %s175, 256, 256, 16
        $region28: #{tpu_custom_call.1} parent=23 // pred_fallthru
          _
      $region24: #{tpu_custom_call.1} parent=5 // pred_fallthru
        _
      %p194 = scmp.le.s32.totalorder 1, %s16
      %p195 = scmp.lt.s32.totalorder %s16, 3
      %p196 = pnand %p194, %p195
      %p197 = pneg %p196
      // Predicated region
      $region29: #{tpu_custom_call.1} parent=5 // pred_check
        _
      $region30: #{tpu_custom_call.1} parent=5 // pred_check_branch
        %199 = sbr.rel (%p196) target = $region32
      $region31: #{tpu_custom_call.1} parent=5 // pred_region
        %s200 = ssub.s32 %s16, 1
        %s201 = sand.u32 %s43, 1
        %s202 = scalar_lea.sflag [#allocation3], %s201
        %s203 = sand.u32 %s43, 1
        %s204 = smul.addr %s203, 32
        %s205 = scalar_lea.vmem [#allocation2], %s204
        // Predicated region
        $region33: #{tpu_custom_call.1} parent=31 // pred_check
          %p206 = pneg %p56
        $region34: #{tpu_custom_call.1} parent=31 // pred_check_branch
          %208 = sbr.rel (%p206) target = $region36
        $region35: #{tpu_custom_call.1} parent=31 // pred_region
          %209 = dma.done %s202, 512
        $region36: #{tpu_custom_call.1} parent=31 // pred_fallthru
          _
        // Predicated region
        $region37: #{tpu_custom_call.1} parent=31 // pred_check
          %p210 = pneg %p77
        $region38: #{tpu_custom_call.1} parent=31 // pred_check_branch
          %212 = sbr.rel (%p210) target = $region40
        $region39: #{tpu_custom_call.1} parent=31 // pred_region
          %213 = dma.done [#allocation6], 65536
        $region40: #{tpu_custom_call.1} parent=31 // pred_fallthru
          _
        // Predicated region
        $region41: #{tpu_custom_call.1} parent=31 // pred_check
          %p214 = pneg %p98
        $region42: #{tpu_custom_call.1} parent=31 // pred_check_branch
          %216 = sbr.rel (%p214) target = $region44
        $region43: #{tpu_custom_call.1} parent=31 // pred_region
          %217 = dma.done [#allocation6], 4096
        $region44: #{tpu_custom_call.1} parent=31 // pred_fallthru
          _
        %s218 = sand.u32 %s43, 1
        %s219 = scalar_lea.sflag [#allocation3], %s218
        %s220 = sand.u32 %s43, 1
        %s221 = smul.addr %s220, 32
        %s222 = scalar_lea.vmem [#allocation2], %s221
        %p223 = pneg %p56
        %p224 = pneg %p53
        %p225 = pneg %p77
        %p226 = pneg %p74
        %p227 = pneg %p98
        %p228 = pneg %p95
        %p229 = pneg %p126
        %p230 = pneg %p123
        %s231 = sand.u32 %s113, 1
        %s232 = scalar_lea.sflag [#allocation4], %s231
        %s233 = sand.u32 %s113, 1
        %s234 = smul.addr %s233, 8
        %s235 = scalar_lea.vmem [#allocation8], %s234
        %s236 = sadd.s32 %s25, %s26
        %s237 = smul.u32 2, %s236
        %s238 = sadd.s32 %s25, %s26
        %v240 = vld [vmem:[%s205] sm:$0xff]
        %v241 = vld [vmem:[%s205 + $0x8] sm:$0xff]
        %v242 = vpack.c.bf16 %v240, %v240
        %v243 = vpack.c.bf16 %v241, %v241
        %v244 = vld [vmem:[#allocation5] sm:$0xff]
        %v245 = vld [vmem:[#allocation5 + $0x8] sm:$0xff]
        %v246 = vld [vmem:[#allocation5 + $0x10] sm:$0xff]
        %v247 = vld [vmem:[#allocation5 + $0x18] sm:$0xff]
        %v248 = vld [vmem:[#allocation5 + $0x20] sm:$0xff]
        %v249 = vld [vmem:[#allocation5 + $0x28] sm:$0xff]
        %v250 = vld [vmem:[#allocation5 + $0x30] sm:$0xff]
        %v251 = vld [vmem:[#allocation5 + $0x38] sm:$0xff]
        %v252 = vld [vmem:[#allocation5 + $0x40] sm:$0xff]
        %v253 = vld [vmem:[#allocation5 + $0x48] sm:$0xff]
        %v254 = vld [vmem:[#allocation5 + $0x50] sm:$0xff]
        %v255 = vld [vmem:[#allocation5 + $0x58] sm:$0xff]
        %v256 = vld [vmem:[#allocation5 + $0x60] sm:$0xff]
        %v257 = vld [vmem:[#allocation5 + $0x68] sm:$0xff]
        %v258 = vld [vmem:[#allocation5 + $0x70] sm:$0xff]
        %v259 = vld [vmem:[#allocation5 + $0x78] sm:$0xff]
        %v260 = vld [vmem:[#allocation5 + $0x80] sm:$0xff]
        %v261 = vld [vmem:[#allocation5 + $0x88] sm:$0xff]
        %v262 = vld [vmem:[#allocation5 + $0x90] sm:$0xff]
        %v263 = vld [vmem:[#allocation5 + $0x98] sm:$0xff]
        %v264 = vld [vmem:[#allocation5 + $0xa0] sm:$0xff]
        %v265 = vld [vmem:[#allocation5 + $0xa8] sm:$0xff]
        %v266 = vld [vmem:[#allocation5 + $0xb0] sm:$0xff]
        %v267 = vld [vmem:[#allocation5 + $0xb8] sm:$0xff]
        %v268 = vld [vmem:[#allocation5 + $0xc0] sm:$0xff]
        %v269 = vld [vmem:[#allocation5 + $0xc8] sm:$0xff]
        %v270 = vld [vmem:[#allocation5 + $0xd0] sm:$0xff]
        %v271 = vld [vmem:[#allocation5 + $0xd8] sm:$0xff]
        %v272 = vld [vmem:[#allocation5 + $0xe0] sm:$0xff]
        %v273 = vld [vmem:[#allocation5 + $0xe8] sm:$0xff]
        %v274 = vld [vmem:[#allocation5 + $0xf0] sm:$0xff]
        %v275 = vld [vmem:[#allocation5 + $0xf8] sm:$0xff]
        %v276 = vld [vmem:[#allocation5 + $0x100] sm:$0xff]
        %v277 = vld [vmem:[#allocation5 + $0x108] sm:$0xff]
        %v278 = vld [vmem:[#allocation5 + $0x110] sm:$0xff]
        %v279 = vld [vmem:[#allocation5 + $0x118] sm:$0xff]
        %v280 = vld [vmem:[#allocation5 + $0x120] sm:$0xff]
        %v281 = vld [vmem:[#allocation5 + $0x128] sm:$0xff]
        %v282 = vld [vmem:[#allocation5 + $0x130] sm:$0xff]
        %v283 = vld [vmem:[#allocation5 + $0x138] sm:$0xff]
        %v284 = vld [vmem:[#allocation5 + $0x140] sm:$0xff]
        %v285 = vld [vmem:[#allocation5 + $0x148] sm:$0xff]
        %v286 = vld [vmem:[#allocation5 + $0x150] sm:$0xff]
        %v287 = vld [vmem:[#allocation5 + $0x158] sm:$0xff]
        %v288 = vld [vmem:[#allocation5 + $0x160] sm:$0xff]
        %v289 = vld [vmem:[#allocation5 + $0x168] sm:$0xff]
        %v290 = vld [vmem:[#allocation5 + $0x170] sm:$0xff]
        %v291 = vld [vmem:[#allocation5 + $0x178] sm:$0xff]
        %v292 = vld [vmem:[#allocation5 + $0x180] sm:$0xff]
        %v293 = vld [vmem:[#allocation5 + $0x188] sm:$0xff]
        %v294 = vld [vmem:[#allocation5 + $0x190] sm:$0xff]
        %v295 = vld [vmem:[#allocation5 + $0x198] sm:$0xff]
        %v296 = vld [vmem:[#allocation5 + $0x1a0] sm:$0xff]
        %v297 = vld [vmem:[#allocation5 + $0x1a8] sm:$0xff]
        %v298 = vld [vmem:[#allocation5 + $0x1b0] sm:$0xff]
        %v299 = vld [vmem:[#allocation5 + $0x1b8] sm:$0xff]
        %v300 = vld [vmem:[#allocation5 + $0x1c0] sm:$0xff]
        %v301 = vld [vmem:[#allocation5 + $0x1c8] sm:$0xff]
        %v302 = vld [vmem:[#allocation5 + $0x1d0] sm:$0xff]
        %v303 = vld [vmem:[#allocation5 + $0x1d8] sm:$0xff]
        %v304 = vld [vmem:[#allocation5 + $0x1e0] sm:$0xff]
        %v305 = vld [vmem:[#allocation5 + $0x1e8] sm:$0xff]
        %v306 = vld [vmem:[#allocation5 + $0x1f0] sm:$0xff]
        %v307 = vld [vmem:[#allocation5 + $0x1f8] sm:$0xff]
        %v308 = vld [vmem:[#allocation5 + $0x200] sm:$0xff]
        %v309 = vld [vmem:[#allocation5 + $0x208] sm:$0xff]
        %v310 = vld [vmem:[#allocation5 + $0x210] sm:$0xff]
        %v311 = vld [vmem:[#allocation5 + $0x218] sm:$0xff]
        %v312 = vld [vmem:[#allocation5 + $0x220] sm:$0xff]
        %v313 = vld [vmem:[#allocation5 + $0x228] sm:$0xff]
        %v314 = vld [vmem:[#allocation5 + $0x230] sm:$0xff]
        %v315 = vld [vmem:[#allocation5 + $0x238] sm:$0xff]
        %v316 = vld [vmem:[#allocation5 + $0x240] sm:$0xff]
        %v317 = vld [vmem:[#allocation5 + $0x248] sm:$0xff]
        %v318 = vld [vmem:[#allocation5 + $0x250] sm:$0xff]
        %v319 = vld [vmem:[#allocation5 + $0x258] sm:$0xff]
        %v320 = vld [vmem:[#allocation5 + $0x260] sm:$0xff]
        %v321 = vld [vmem:[#allocation5 + $0x268] sm:$0xff]
        %v322 = vld [vmem:[#allocation5 + $0x270] sm:$0xff]
        %v323 = vld [vmem:[#allocation5 + $0x278] sm:$0xff]
        %v324 = vld [vmem:[#allocation5 + $0x280] sm:$0xff]
        %v325 = vld [vmem:[#allocation5 + $0x288] sm:$0xff]
        %v326 = vld [vmem:[#allocation5 + $0x290] sm:$0xff]
        %v327 = vld [vmem:[#allocation5 + $0x298] sm:$0xff]
        %v328 = vld [vmem:[#allocation5 + $0x2a0] sm:$0xff]
        %v329 = vld [vmem:[#allocation5 + $0x2a8] sm:$0xff]
        %v330 = vld [vmem:[#allocation5 + $0x2b0] sm:$0xff]
        %v331 = vld [vmem:[#allocation5 + $0x2b8] sm:$0xff]
        %v332 = vld [vmem:[#allocation5 + $0x2c0] sm:$0xff]
        %v333 = vld [vmem:[#allocation5 + $0x2c8] sm:$0xff]
        %v334 = vld [vmem:[#allocation5 + $0x2d0] sm:$0xff]
        %v335 = vld [vmem:[#allocation5 + $0x2d8] sm:$0xff]
        %v336 = vld [vmem:[#allocation5 + $0x2e0] sm:$0xff]
        %v337 = vld [vmem:[#allocation5 + $0x2e8] sm:$0xff]
        %v338 = vld [vmem:[#allocation5 + $0x2f0] sm:$0xff]
        %v339 = vld [vmem:[#allocation5 + $0x2f8] sm:$0xff]
        %v340 = vld [vmem:[#allocation5 + $0x300] sm:$0xff]
        %v341 = vld [vmem:[#allocation5 + $0x308] sm:$0xff]
        %v342 = vld [vmem:[#allocation5 + $0x310] sm:$0xff]
        %v343 = vld [vmem:[#allocation5 + $0x318] sm:$0xff]
        %v344 = vld [vmem:[#allocation5 + $0x320] sm:$0xff]
        %v345 = vld [vmem:[#allocation5 + $0x328] sm:$0xff]
        %v346 = vld [vmem:[#allocation5 + $0x330] sm:$0xff]
        %v347 = vld [vmem:[#allocation5 + $0x338] sm:$0xff]
        %v348 = vld [vmem:[#allocation5 + $0x340] sm:$0xff]
        %v349 = vld [vmem:[#allocation5 + $0x348] sm:$0xff]
        %v350 = vld [vmem:[#allocation5 + $0x350] sm:$0xff]
        %v351 = vld [vmem:[#allocation5 + $0x358] sm:$0xff]
        %v352 = vld [vmem:[#allocation5 + $0x360] sm:$0xff]
        %v353 = vld [vmem:[#allocation5 + $0x368] sm:$0xff]
        %v354 = vld [vmem:[#allocation5 + $0x370] sm:$0xff]
        %v355 = vld [vmem:[#allocation5 + $0x378] sm:$0xff]
        %v356 = vld [vmem:[#allocation5 + $0x380] sm:$0xff]
        %v357 = vld [vmem:[#allocation5 + $0x388] sm:$0xff]
        %v358 = vld [vmem:[#allocation5 + $0x390] sm:$0xff]
        %v359 = vld [vmem:[#allocation5 + $0x398] sm:$0xff]
        %v360 = vld [vmem:[#allocation5 + $0x3a0] sm:$0xff]
        %v361 = vld [vmem:[#allocation5 + $0x3a8] sm:$0xff]
        %v362 = vld [vmem:[#allocation5 + $0x3b0] sm:$0xff]
        %v363 = vld [vmem:[#allocation5 + $0x3b8] sm:$0xff]
        %v364 = vld [vmem:[#allocation5 + $0x3c0] sm:$0xff]
        %v365 = vld [vmem:[#allocation5 + $0x3c8] sm:$0xff]
        %v366 = vld [vmem:[#allocation5 + $0x3d0] sm:$0xff]
        %v367 = vld [vmem:[#allocation5 + $0x3d8] sm:$0xff]
        %v368 = vld [vmem:[#allocation5 + $0x3e0] sm:$0xff]
        %v369 = vld [vmem:[#allocation5 + $0x3e8] sm:$0xff]
        %v370 = vld [vmem:[#allocation5 + $0x3f0] sm:$0xff]
        %v371 = vld [vmem:[#allocation5 + $0x3f8] sm:$0xff]
        %v372 = vld [vmem:[%s205] sm:$0xfe]
        %v373 = vld [vmem:[%s205 + $0x8] sm:$0xfe]
        %v374 = vld [vmem:[%s205 + $0x10] sm:$0x1]
        %v375 = vld [vmem:[%s205 + $0x18] sm:$0x1]
        %v376 = vpack.c.bf16 %v374, %v372
        %v377 = vpack.c.bf16 %v375, %v373
        %v378 = vld [vmem:[#allocation5 + $0x400] sm:$0xff]
        %v379 = vld [vmem:[#allocation5 + $0x408] sm:$0xff]
        %v380 = vld [vmem:[#allocation5 + $0x410] sm:$0xff]
        %v381 = vld [vmem:[#allocation5 + $0x418] sm:$0xff]
        %v382 = vld [vmem:[#allocation5 + $0x420] sm:$0xff]
        %v383 = vld [vmem:[#allocation5 + $0x428] sm:$0xff]
        %v384 = vld [vmem:[#allocation5 + $0x430] sm:$0xff]
        %v385 = vld [vmem:[#allocation5 + $0x438] sm:$0xff]
        %v386 = vld [vmem:[#allocation5 + $0x440] sm:$0xff]
        %v387 = vld [vmem:[#allocation5 + $0x448] sm:$0xff]
        %v388 = vld [vmem:[#allocation5 + $0x450] sm:$0xff]
        %v389 = vld [vmem:[#allocation5 + $0x458] sm:$0xff]
        %v390 = vld [vmem:[#allocation5 + $0x460] sm:$0xff]
        %v391 = vld [vmem:[#allocation5 + $0x468] sm:$0xff]
        %v392 = vld [vmem:[#allocation5 + $0x470] sm:$0xff]
        %v393 = vld [vmem:[#allocation5 + $0x478] sm:$0xff]
        %v394 = vld [vmem:[#allocation5 + $0x480] sm:$0xff]
        %v395 = vld [vmem:[#allocation5 + $0x488] sm:$0xff]
        %v396 = vld [vmem:[#allocation5 + $0x490] sm:$0xff]
        %v397 = vld [vmem:[#allocation5 + $0x498] sm:$0xff]
        %v398 = vld [vmem:[#allocation5 + $0x4a0] sm:$0xff]
        %v399 = vld [vmem:[#allocation5 + $0x4a8] sm:$0xff]
        %v400 = vld [vmem:[#allocation5 + $0x4b0] sm:$0xff]
        %v401 = vld [vmem:[#allocation5 + $0x4b8] sm:$0xff]
        %v402 = vld [vmem:[#allocation5 + $0x4c0] sm:$0xff]
        %v403 = vld [vmem:[#allocation5 + $0x4c8] sm:$0xff]
        %v404 = vld [vmem:[#allocation5 + $0x4d0] sm:$0xff]
        %v405 = vld [vmem:[#allocation5 + $0x4d8] sm:$0xff]
        %v406 = vld [vmem:[#allocation5 + $0x4e0] sm:$0xff]
        %v407 = vld [vmem:[#allocation5 + $0x4e8] sm:$0xff]
        %v408 = vld [vmem:[#allocation5 + $0x4f0] sm:$0xff]
        %v409 = vld [vmem:[#allocation5 + $0x4f8] sm:$0xff]
        %v410 = vld [vmem:[#allocation5 + $0x500] sm:$0xff]
        %v411 = vld [vmem:[#allocation5 + $0x508] sm:$0xff]
        %v412 = vld [vmem:[#allocation5 + $0x510] sm:$0xff]
        %v413 = vld [vmem:[#allocation5 + $0x518] sm:$0xff]
        %v414 = vld [vmem:[#allocation5 + $0x520] sm:$0xff]
        %v415 = vld [vmem:[#allocation5 + $0x528] sm:$0xff]
        %v416 = vld [vmem:[#allocation5 + $0x530] sm:$0xff]
        %v417 = vld [vmem:[#allocation5 + $0x538] sm:$0xff]
        %v418 = vld [vmem:[#allocation5 + $0x540] sm:$0xff]
        %v419 = vld [vmem:[#allocation5 + $0x548] sm:$0xff]
        %v420 = vld [vmem:[#allocation5 + $0x550] sm:$0xff]
        %v421 = vld [vmem:[#allocation5 + $0x558] sm:$0xff]
        %v422 = vld [vmem:[#allocation5 + $0x560] sm:$0xff]
        %v423 = vld [vmem:[#allocation5 + $0x568] sm:$0xff]
        %v424 = vld [vmem:[#allocation5 + $0x570] sm:$0xff]
        %v425 = vld [vmem:[#allocation5 + $0x578] sm:$0xff]
        %v426 = vld [vmem:[#allocation5 + $0x580] sm:$0xff]
        %v427 = vld [vmem:[#allocation5 + $0x588] sm:$0xff]
        %v428 = vld [vmem:[#allocation5 + $0x590] sm:$0xff]
        %v429 = vld [vmem:[#allocation5 + $0x598] sm:$0xff]
        %v430 = vld [vmem:[#allocation5 + $0x5a0] sm:$0xff]
        %v431 = vld [vmem:[#allocation5 + $0x5a8] sm:$0xff]
        %v432 = vld [vmem:[#allocation5 + $0x5b0] sm:$0xff]
        %v433 = vld [vmem:[#allocation5 + $0x5b8] sm:$0xff]
        %v434 = vld [vmem:[#allocation5 + $0x5c0] sm:$0xff]
        %v435 = vld [vmem:[#allocation5 + $0x5c8] sm:$0xff]
        %v436 = vld [vmem:[#allocation5 + $0x5d0] sm:$0xff]
        %v437 = vld [vmem:[#allocation5 + $0x5d8] sm:$0xff]
        %v438 = vld [vmem:[#allocation5 + $0x5e0] sm:$0xff]
        %v439 = vld [vmem:[#allocation5 + $0x5e8] sm:$0xff]
        %v440 = vld [vmem:[#allocation5 + $0x5f0] sm:$0xff]
        %v441 = vld [vmem:[#allocation5 + $0x5f8] sm:$0xff]
        %v442 = vld [vmem:[#allocation5 + $0x600] sm:$0xff]
        %v443 = vld [vmem:[#allocation5 + $0x608] sm:$0xff]
        %v444 = vld [vmem:[#allocation5 + $0x610] sm:$0xff]
        %v445 = vld [vmem:[#allocation5 + $0x618] sm:$0xff]
        %v446 = vld [vmem:[#allocation5 + $0x620] sm:$0xff]
        %v447 = vld [vmem:[#allocation5 + $0x628] sm:$0xff]
        %v448 = vld [vmem:[#allocation5 + $0x630] sm:$0xff]
        %v449 = vld [vmem:[#allocation5 + $0x638] sm:$0xff]
        %v450 = vld [vmem:[#allocation5 + $0x640] sm:$0xff]
        %v451 = vld [vmem:[#allocation5 + $0x648] sm:$0xff]
        %v452 = vld [vmem:[#allocation5 + $0x650] sm:$0xff]
        %v453 = vld [vmem:[#allocation5 + $0x658] sm:$0xff]
        %v454 = vld [vmem:[#allocation5 + $0x660] sm:$0xff]
        %v455 = vld [vmem:[#allocation5 + $0x668] sm:$0xff]
        %v456 = vld [vmem:[#allocation5 + $0x670] sm:$0xff]
        %v457 = vld [vmem:[#allocation5 + $0x678] sm:$0xff]
        %v458 = vld [vmem:[#allocation5 + $0x680] sm:$0xff]
        %v459 = vld [vmem:[#allocation5 + $0x688] sm:$0xff]
        %v460 = vld [vmem:[#allocation5 + $0x690] sm:$0xff]
        %v461 = vld [vmem:[#allocation5 + $0x698] sm:$0xff]
        %v462 = vld [vmem:[#allocation5 + $0x6a0] sm:$0xff]
        %v463 = vld [vmem:[#allocation5 + $0x6a8] sm:$0xff]
        %v464 = vld [vmem:[#allocation5 + $0x6b0] sm:$0xff]
        %v465 = vld [vmem:[#allocation5 + $0x6b8] sm:$0xff]
        %v466 = vld [vmem:[#allocation5 + $0x6c0] sm:$0xff]
        %v467 = vld [vmem:[#allocation5 + $0x6c8] sm:$0xff]
        %v468 = vld [vmem:[#allocation5 + $0x6d0] sm:$0xff]
        %v469 = vld [vmem:[#allocation5 + $0x6d8] sm:$0xff]
        %v470 = vld [vmem:[#allocation5 + $0x6e0] sm:$0xff]
        %v471 = vld [vmem:[#allocation5 + $0x6e8] sm:$0xff]
        %v472 = vld [vmem:[#allocation5 + $0x6f0] sm:$0xff]
        %v473 = vld [vmem:[#allocation5 + $0x6f8] sm:$0xff]
        %v474 = vld [vmem:[#allocation5 + $0x700] sm:$0xff]
        %v475 = vld [vmem:[#allocation5 + $0x708] sm:$0xff]
        %v476 = vld [vmem:[#allocation5 + $0x710] sm:$0xff]
        %v477 = vld [vmem:[#allocation5 + $0x718] sm:$0xff]
        %v478 = vld [vmem:[#allocation5 + $0x720] sm:$0xff]
        %v479 = vld [vmem:[#allocation5 + $0x728] sm:$0xff]
        %v480 = vld [vmem:[#allocation5 + $0x730] sm:$0xff]
        %v481 = vld [vmem:[#allocation5 + $0x738] sm:$0xff]
        %v482 = vld [vmem:[#allocation5 + $0x740] sm:$0xff]
        %v483 = vld [vmem:[#allocation5 + $0x748] sm:$0xff]
        %v484 = vld [vmem:[#allocation5 + $0x750] sm:$0xff]
        %v485 = vld [vmem:[#allocation5 + $0x758] sm:$0xff]
        %v486 = vld [vmem:[#allocation5 + $0x760] sm:$0xff]
        %v487 = vld [vmem:[#allocation5 + $0x768] sm:$0xff]
        %v488 = vld [vmem:[#allocation5 + $0x770] sm:$0xff]
        %v489 = vld [vmem:[#allocation5 + $0x778] sm:$0xff]
        %v490 = vld [vmem:[#allocation5 + $0x780] sm:$0xff]
        %v491 = vld [vmem:[#allocation5 + $0x788] sm:$0xff]
        %v492 = vld [vmem:[#allocation5 + $0x790] sm:$0xff]
        %v493 = vld [vmem:[#allocation5 + $0x798] sm:$0xff]
        %v494 = vld [vmem:[#allocation5 + $0x7a0] sm:$0xff]
        %v495 = vld [vmem:[#allocation5 + $0x7a8] sm:$0xff]
        %v496 = vld [vmem:[#allocation5 + $0x7b0] sm:$0xff]
        %v497 = vld [vmem:[#allocation5 + $0x7b8] sm:$0xff]
        %v498 = vld [vmem:[#allocation5 + $0x7c0] sm:$0xff]
        %v499 = vld [vmem:[#allocation5 + $0x7c8] sm:$0xff]
        %v500 = vld [vmem:[#allocation5 + $0x7d0] sm:$0xff]
        %v501 = vld [vmem:[#allocation5 + $0x7d8] sm:$0xff]
        %v502 = vld [vmem:[#allocation5 + $0x7e0] sm:$0xff]
        %v503 = vld [vmem:[#allocation5 + $0x7e8] sm:$0xff]
        %v504 = vld [vmem:[#allocation5 + $0x7f0] sm:$0xff]
        %v505 = vld [vmem:[#allocation5 + $0x7f8] sm:$0xff]
        %v507 = vshrl.u32 %v376, 16
        %v509 = vshll.u32 %v376, 16
        %v511 = vrot.slane %v509, 1
        %v512 = vor.u32 %v507, %v511
        %v514 = vshrl.u32 %v377, 16
        %v516 = vshll.u32 %v377, 16
        %v518 = vrot.slane %v516, 1
        %v519 = vor.u32 %v514, %v518
        %v650 = vunpack.c.l.b16 %v378
        %v651 = vunpack.c.h.b16 %v378
        %v652 = vunpack.c.l.b16 %v379
        %v653 = vunpack.c.h.b16 %v379
        %v654 = vunpack.c.l.b16 %v380
        %v655 = vunpack.c.h.b16 %v380
        %v656 = vunpack.c.l.b16 %v381
        %v657 = vunpack.c.h.b16 %v381
        %v658 = vunpack.c.l.b16 %v382
        %v659 = vunpack.c.h.b16 %v382
        %v660 = vunpack.c.l.b16 %v383
        %v661 = vunpack.c.h.b16 %v383
        %v662 = vunpack.c.l.b16 %v384
        %v663 = vunpack.c.h.b16 %v384
        %v664 = vunpack.c.l.b16 %v385
        %v665 = vunpack.c.h.b16 %v385
        %v666 = vunpack.c.l.b16 %v386
        %v667 = vunpack.c.h.b16 %v386
        %v668 = vunpack.c.l.b16 %v387
        %v669 = vunpack.c.h.b16 %v387
        %v670 = vunpack.c.l.b16 %v388
        %v671 = vunpack.c.h.b16 %v388
        %v672 = vunpack.c.l.b16 %v389
        %v673 = vunpack.c.h.b16 %v389
        %v674 = vunpack.c.l.b16 %v390
        %v675 = vunpack.c.h.b16 %v390
        %v676 = vunpack.c.l.b16 %v391
        %v677 = vunpack.c.h.b16 %v391
        %v678 = vunpack.c.l.b16 %v392
        %v679 = vunpack.c.h.b16 %v392
        %v680 = vunpack.c.l.b16 %v393
        %v681 = vunpack.c.h.b16 %v393
        %v682 = vunpack.c.l.b16 %v394
        %v683 = vunpack.c.h.b16 %v394
        %v684 = vunpack.c.l.b16 %v395
        %v685 = vunpack.c.h.b16 %v395
        %v686 = vunpack.c.l.b16 %v396
        %v687 = vunpack.c.h.b16 %v396
        %v688 = vunpack.c.l.b16 %v397
        %v689 = vunpack.c.h.b16 %v397
        %v690 = vunpack.c.l.b16 %v398
        %v691 = vunpack.c.h.b16 %v398
        %v692 = vunpack.c.l.b16 %v399
        %v693 = vunpack.c.h.b16 %v399
        %v694 = vunpack.c.l.b16 %v400
        %v695 = vunpack.c.h.b16 %v400
        %v696 = vunpack.c.l.b16 %v401
        %v697 = vunpack.c.h.b16 %v401
        %v698 = vunpack.c.l.b16 %v402
        %v699 = vunpack.c.h.b16 %v402
        %v700 = vunpack.c.l.b16 %v403
        %v701 = vunpack.c.h.b16 %v403
        %v702 = vunpack.c.l.b16 %v404
        %v703 = vunpack.c.h.b16 %v404
        %v704 = vunpack.c.l.b16 %v405
        %v705 = vunpack.c.h.b16 %v405
        %v706 = vunpack.c.l.b16 %v406
        %v707 = vunpack.c.h.b16 %v406
        %v708 = vunpack.c.l.b16 %v407
        %v709 = vunpack.c.h.b16 %v407
        %v710 = vunpack.c.l.b16 %v408
        %v711 = vunpack.c.h.b16 %v408
        %v712 = vunpack.c.l.b16 %v409
        %v713 = vunpack.c.h.b16 %v409
        %v714 = vunpack.c.l.b16 %v410
        %v715 = vunpack.c.h.b16 %v410
        %v716 = vunpack.c.l.b16 %v411
        %v717 = vunpack.c.h.b16 %v411
        %v718 = vunpack.c.l.b16 %v412
        %v719 = vunpack.c.h.b16 %v412
        %v720 = vunpack.c.l.b16 %v413
        %v721 = vunpack.c.h.b16 %v413
        %v722 = vunpack.c.l.b16 %v414
        %v723 = vunpack.c.h.b16 %v414
        %v724 = vunpack.c.l.b16 %v415
        %v725 = vunpack.c.h.b16 %v415
        %v726 = vunpack.c.l.b16 %v416
        %v727 = vunpack.c.h.b16 %v416
        %v728 = vunpack.c.l.b16 %v417
        %v729 = vunpack.c.h.b16 %v417
        %v730 = vunpack.c.l.b16 %v418
        %v731 = vunpack.c.h.b16 %v418
        %v732 = vunpack.c.l.b16 %v419
        %v733 = vunpack.c.h.b16 %v419
        %v734 = vunpack.c.l.b16 %v420
        %v735 = vunpack.c.h.b16 %v420
        %v736 = vunpack.c.l.b16 %v421
        %v737 = vunpack.c.h.b16 %v421
        %v738 = vunpack.c.l.b16 %v422
        %v739 = vunpack.c.h.b16 %v422
        %v740 = vunpack.c.l.b16 %v423
        %v741 = vunpack.c.h.b16 %v423
        %v742 = vunpack.c.l.b16 %v424
        %v743 = vunpack.c.h.b16 %v424
        %v744 = vunpack.c.l.b16 %v425
        %v745 = vunpack.c.h.b16 %v425
        %v746 = vunpack.c.l.b16 %v426
        %v747 = vunpack.c.h.b16 %v426
        %v748 = vunpack.c.l.b16 %v427
        %v749 = vunpack.c.h.b16 %v427
        %v750 = vunpack.c.l.b16 %v428
        %v751 = vunpack.c.h.b16 %v428
        %v752 = vunpack.c.l.b16 %v429
        %v753 = vunpack.c.h.b16 %v429
        %v754 = vunpack.c.l.b16 %v430
        %v755 = vunpack.c.h.b16 %v430
        %v756 = vunpack.c.l.b16 %v431
        %v757 = vunpack.c.h.b16 %v431
        %v758 = vunpack.c.l.b16 %v432
        %v759 = vunpack.c.h.b16 %v432
        %v760 = vunpack.c.l.b16 %v433
        %v761 = vunpack.c.h.b16 %v433
        %v762 = vunpack.c.l.b16 %v434
        %v763 = vunpack.c.h.b16 %v434
        %v764 = vunpack.c.l.b16 %v435
        %v765 = vunpack.c.h.b16 %v435
        %v766 = vunpack.c.l.b16 %v436
        %v767 = vunpack.c.h.b16 %v436
        %v768 = vunpack.c.l.b16 %v437
        %v769 = vunpack.c.h.b16 %v437
        %v770 = vunpack.c.l.b16 %v438
        %v771 = vunpack.c.h.b16 %v438
        %v772 = vunpack.c.l.b16 %v439
        %v773 = vunpack.c.h.b16 %v439
        %v774 = vunpack.c.l.b16 %v440
        %v775 = vunpack.c.h.b16 %v440
        %v776 = vunpack.c.l.b16 %v441
        %v777 = vunpack.c.h.b16 %v441
        %v778 = vunpack.c.l.b16 %v442
        %v779 = vunpack.c.h.b16 %v442
        %v780 = vunpack.c.l.b16 %v443
        %v781 = vunpack.c.h.b16 %v443
        %v782 = vunpack.c.l.b16 %v444
        %v783 = vunpack.c.h.b16 %v444
        %v784 = vunpack.c.l.b16 %v445
        %v785 = vunpack.c.h.b16 %v445
        %v786 = vunpack.c.l.b16 %v446
        %v787 = vunpack.c.h.b16 %v446
        %v788 = vunpack.c.l.b16 %v447
        %v789 = vunpack.c.h.b16 %v447
        %v790 = vunpack.c.l.b16 %v448
        %v791 = vunpack.c.h.b16 %v448
        %v792 = vunpack.c.l.b16 %v449
        %v793 = vunpack.c.h.b16 %v449
        %v794 = vunpack.c.l.b16 %v450
        %v795 = vunpack.c.h.b16 %v450
        %v796 = vunpack.c.l.b16 %v451
        %v797 = vunpack.c.h.b16 %v451
        %v798 = vunpack.c.l.b16 %v452
        %v799 = vunpack.c.h.b16 %v452
        %v800 = vunpack.c.l.b16 %v453
        %v801 = vunpack.c.h.b16 %v453
        %v802 = vunpack.c.l.b16 %v454
        %v803 = vunpack.c.h.b16 %v454
        %v804 = vunpack.c.l.b16 %v455
        %v805 = vunpack.c.h.b16 %v455
        %v806 = vunpack.c.l.b16 %v456
        %v807 = vunpack.c.h.b16 %v456
        %v808 = vunpack.c.l.b16 %v457
        %v809 = vunpack.c.h.b16 %v457
        %v810 = vunpack.c.l.b16 %v458
        %v811 = vunpack.c.h.b16 %v458
        %v812 = vunpack.c.l.b16 %v459
        %v813 = vunpack.c.h.b16 %v459
        %v814 = vunpack.c.l.b16 %v460
        %v815 = vunpack.c.h.b16 %v460
        %v816 = vunpack.c.l.b16 %v461
        %v817 = vunpack.c.h.b16 %v461
        %v818 = vunpack.c.l.b16 %v462
        %v819 = vunpack.c.h.b16 %v462
        %v820 = vunpack.c.l.b16 %v463
        %v821 = vunpack.c.h.b16 %v463
        %v822 = vunpack.c.l.b16 %v464
        %v823 = vunpack.c.h.b16 %v464
        %v824 = vunpack.c.l.b16 %v465
        %v825 = vunpack.c.h.b16 %v465
        %v826 = vunpack.c.l.b16 %v466
        %v827 = vunpack.c.h.b16 %v466
        %v828 = vunpack.c.l.b16 %v467
        %v829 = vunpack.c.h.b16 %v467
        %v830 = vunpack.c.l.b16 %v468
        %v831 = vunpack.c.h.b16 %v468
        %v832 = vunpack.c.l.b16 %v469
        %v833 = vunpack.c.h.b16 %v469
        %v834 = vunpack.c.l.b16 %v470
        %v835 = vunpack.c.h.b16 %v470
        %v836 = vunpack.c.l.b16 %v471
        %v837 = vunpack.c.h.b16 %v471
        %v838 = vunpack.c.l.b16 %v472
        %v839 = vunpack.c.h.b16 %v472
        %v840 = vunpack.c.l.b16 %v473
        %v841 = vunpack.c.h.b16 %v473
        %v842 = vunpack.c.l.b16 %v474
        %v843 = vunpack.c.h.b16 %v474
        %v844 = vunpack.c.l.b16 %v475
        %v845 = vunpack.c.h.b16 %v475
        %v846 = vunpack.c.l.b16 %v476
        %v847 = vunpack.c.h.b16 %v476
        %v848 = vunpack.c.l.b16 %v477
        %v849 = vunpack.c.h.b16 %v477
        %v850 = vunpack.c.l.b16 %v478
        %v851 = vunpack.c.h.b16 %v478
        %v852 = vunpack.c.l.b16 %v479
        %v853 = vunpack.c.h.b16 %v479
        %v854 = vunpack.c.l.b16 %v480
        %v855 = vunpack.c.h.b16 %v480
        %v856 = vunpack.c.l.b16 %v481
        %v857 = vunpack.c.h.b16 %v481
        %v858 = vunpack.c.l.b16 %v482
        %v859 = vunpack.c.h.b16 %v482
        %v860 = vunpack.c.l.b16 %v483
        %v861 = vunpack.c.h.b16 %v483
        %v862 = vunpack.c.l.b16 %v484
        %v863 = vunpack.c.h.b16 %v484
        %v864 = vunpack.c.l.b16 %v485
        %v865 = vunpack.c.h.b16 %v485
        %v866 = vunpack.c.l.b16 %v486
        %v867 = vunpack.c.h.b16 %v486
        %v868 = vunpack.c.l.b16 %v487
        %v869 = vunpack.c.h.b16 %v487
        %v870 = vunpack.c.l.b16 %v488
        %v871 = vunpack.c.h.b16 %v488
        %v872 = vunpack.c.l.b16 %v489
        %v873 = vunpack.c.h.b16 %v489
        %v874 = vunpack.c.l.b16 %v490
        %v875 = vunpack.c.h.b16 %v490
        %v876 = vunpack.c.l.b16 %v491
        %v877 = vunpack.c.h.b16 %v491
        %v878 = vunpack.c.l.b16 %v492
        %v879 = vunpack.c.h.b16 %v492
        %v880 = vunpack.c.l.b16 %v493
        %v881 = vunpack.c.h.b16 %v493
        %v882 = vunpack.c.l.b16 %v494
        %v883 = vunpack.c.h.b16 %v494
        %v884 = vunpack.c.l.b16 %v495
        %v885 = vunpack.c.h.b16 %v495
        %v886 = vunpack.c.l.b16 %v496
        %v887 = vunpack.c.h.b16 %v496
        %v888 = vunpack.c.l.b16 %v497
        %v889 = vunpack.c.h.b16 %v497
        %v890 = vunpack.c.l.b16 %v498
        %v891 = vunpack.c.h.b16 %v498
        %v892 = vunpack.c.l.b16 %v499
        %v893 = vunpack.c.h.b16 %v499
        %v894 = vunpack.c.l.b16 %v500
        %v895 = vunpack.c.h.b16 %v500
        %v896 = vunpack.c.l.b16 %v501
        %v897 = vunpack.c.h.b16 %v501
        %v898 = vunpack.c.l.b16 %v502
        %v899 = vunpack.c.h.b16 %v502
        %v900 = vunpack.c.l.b16 %v503
        %v901 = vunpack.c.h.b16 %v503
        %v902 = vunpack.c.l.b16 %v504
        %v903 = vunpack.c.h.b16 %v504
        %v904 = vunpack.c.l.b16 %v505
        %v905 = vunpack.c.h.b16 %v505
        %v906 = vpack.c.b16 %v658, %v650
        %v907 = vpack.c.b16 %v659, %v651
        %v908 = vpack.c.b16 %v660, %v652
        %v909 = vpack.c.b16 %v661, %v653
        %v910 = vpack.c.b16 %v662, %v654
        %v911 = vpack.c.b16 %v663, %v655
        %v912 = vpack.c.b16 %v664, %v656
        %v913 = vpack.c.b16 %v665, %v657
        %v914 = vpack.c.b16 %v674, %v666
        %v915 = vpack.c.b16 %v675, %v667
        %v916 = vpack.c.b16 %v676, %v668
        %v917 = vpack.c.b16 %v677, %v669
        %v918 = vpack.c.b16 %v678, %v670
        %v919 = vpack.c.b16 %v679, %v671
        %v920 = vpack.c.b16 %v680, %v672
        %v921 = vpack.c.b16 %v681, %v673
        %v922 = vpack.c.b16 %v690, %v682
        %v923 = vpack.c.b16 %v691, %v683
        %v924 = vpack.c.b16 %v692, %v684
        %v925 = vpack.c.b16 %v693, %v685
        %v926 = vpack.c.b16 %v694, %v686
        %v927 = vpack.c.b16 %v695, %v687
        %v928 = vpack.c.b16 %v696, %v688
        %v929 = vpack.c.b16 %v697, %v689
        %v930 = vpack.c.b16 %v706, %v698
        %v931 = vpack.c.b16 %v707, %v699
        %v932 = vpack.c.b16 %v708, %v700
        %v933 = vpack.c.b16 %v709, %v701
        %v934 = vpack.c.b16 %v710, %v702
        %v935 = vpack.c.b16 %v711, %v703
        %v936 = vpack.c.b16 %v712, %v704
        %v937 = vpack.c.b16 %v713, %v705
        %v938 = vpack.c.b16 %v722, %v714
        %v939 = vpack.c.b16 %v723, %v715
        %v940 = vpack.c.b16 %v724, %v716
        %v941 = vpack.c.b16 %v725, %v717
        %v942 = vpack.c.b16 %v726, %v718
        %v943 = vpack.c.b16 %v727, %v719
        %v944 = vpack.c.b16 %v728, %v720
        %v945 = vpack.c.b16 %v729, %v721
        %v946 = vpack.c.b16 %v738, %v730
        %v947 = vpack.c.b16 %v739, %v731
        %v948 = vpack.c.b16 %v740, %v732
        %v949 = vpack.c.b16 %v741, %v733
        %v950 = vpack.c.b16 %v742, %v734
        %v951 = vpack.c.b16 %v743, %v735
        %v952 = vpack.c.b16 %v744, %v736
        %v953 = vpack.c.b16 %v745, %v737
        %v954 = vpack.c.b16 %v754, %v746
        %v955 = vpack.c.b16 %v755, %v747
        %v956 = vpack.c.b16 %v756, %v748
        %v957 = vpack.c.b16 %v757, %v749
        %v958 = vpack.c.b16 %v758, %v750
        %v959 = vpack.c.b16 %v759, %v751
        %v960 = vpack.c.b16 %v760, %v752
        %v961 = vpack.c.b16 %v761, %v753
        %v962 = vpack.c.b16 %v770, %v762
        %v963 = vpack.c.b16 %v771, %v763
        %v964 = vpack.c.b16 %v772, %v764
        %v965 = vpack.c.b16 %v773, %v765
        %v966 = vpack.c.b16 %v774, %v766
        %v967 = vpack.c.b16 %v775, %v767
        %v968 = vpack.c.b16 %v776, %v768
        %v969 = vpack.c.b16 %v777, %v769
        %v970 = vpack.c.b16 %v786, %v778
        %v971 = vpack.c.b16 %v787, %v779
        %v972 = vpack.c.b16 %v788, %v780
        %v973 = vpack.c.b16 %v789, %v781
        %v974 = vpack.c.b16 %v790, %v782
        %v975 = vpack.c.b16 %v791, %v783
        %v976 = vpack.c.b16 %v792, %v784
        %v977 = vpack.c.b16 %v793, %v785
        %v978 = vpack.c.b16 %v802, %v794
        %v979 = vpack.c.b16 %v803, %v795
        %v980 = vpack.c.b16 %v804, %v796
        %v981 = vpack.c.b16 %v805, %v797
        %v982 = vpack.c.b16 %v806, %v798
        %v983 = vpack.c.b16 %v807, %v799
        %v984 = vpack.c.b16 %v808, %v800
        %v985 = vpack.c.b16 %v809, %v801
        %v986 = vpack.c.b16 %v818, %v810
        %v987 = vpack.c.b16 %v819, %v811
        %v988 = vpack.c.b16 %v820, %v812
        %v989 = vpack.c.b16 %v821, %v813
        %v990 = vpack.c.b16 %v822, %v814
        %v991 = vpack.c.b16 %v823, %v815
        %v992 = vpack.c.b16 %v824, %v816
        %v993 = vpack.c.b16 %v825, %v817
        %v994 = vpack.c.b16 %v834, %v826
        %v995 = vpack.c.b16 %v835, %v827
        %v996 = vpack.c.b16 %v836, %v828
        %v997 = vpack.c.b16 %v837, %v829
        %v998 = vpack.c.b16 %v838, %v830
        %v999 = vpack.c.b16 %v839, %v831
        %v1000 = vpack.c.b16 %v840, %v832
        %v1001 = vpack.c.b16 %v841, %v833
        %v1002 = vpack.c.b16 %v850, %v842
        %v1003 = vpack.c.b16 %v851, %v843
        %v1004 = vpack.c.b16 %v852, %v844
        %v1005 = vpack.c.b16 %v853, %v845
        %v1006 = vpack.c.b16 %v854, %v846
        %v1007 = vpack.c.b16 %v855, %v847
        %v1008 = vpack.c.b16 %v856, %v848
        %v1009 = vpack.c.b16 %v857, %v849
        %v1010 = vpack.c.b16 %v866, %v858
        %v1011 = vpack.c.b16 %v867, %v859
        %v1012 = vpack.c.b16 %v868, %v860
        %v1013 = vpack.c.b16 %v869, %v861
        %v1014 = vpack.c.b16 %v870, %v862
        %v1015 = vpack.c.b16 %v871, %v863
        %v1016 = vpack.c.b16 %v872, %v864
        %v1017 = vpack.c.b16 %v873, %v865
        %v1018 = vpack.c.b16 %v882, %v874
        %v1019 = vpack.c.b16 %v883, %v875
        %v1020 = vpack.c.b16 %v884, %v876
        %v1021 = vpack.c.b16 %v885, %v877
        %v1022 = vpack.c.b16 %v886, %v878
        %v1023 = vpack.c.b16 %v887, %v879
        %v1024 = vpack.c.b16 %v888, %v880
        %v1025 = vpack.c.b16 %v889, %v881
        %v1026 = vpack.c.b16 %v898, %v890
        %v1027 = vpack.c.b16 %v899, %v891
        %v1028 = vpack.c.b16 %v900, %v892
        %v1029 = vpack.c.b16 %v901, %v893
        %v1030 = vpack.c.b16 %v902, %v894
        %v1031 = vpack.c.b16 %v903, %v895
        %v1032 = vpack.c.b16 %v904, %v896
        %v1033 = vpack.c.b16 %v905, %v897
        %1162 = vmatprep.subr.bf16.mxu0 %v907
        %1163 = vmatpush1.bf16.msra.mxu0 %v906
        %1164 = vmatprep.subr.bf16.mxu0 %v915
        %1165 = vmatpush1.bf16.msra.mxu0 %v914
        %1166 = vmatprep.subr.bf16.mxu0 %v923
        %1167 = vmatpush1.bf16.msra.mxu0 %v922
        %1168 = vmatprep.subr.bf16.mxu0 %v931
        %1169 = vmatpush1.bf16.msra.mxu0 %v930
        %1170 = vmatprep.subr.bf16.mxu0 %v939
        %1171 = vmatpush1.bf16.msra.mxu0 %v938
        %1172 = vmatprep.subr.bf16.mxu0 %v947
        %1173 = vmatpush1.bf16.msra.mxu0 %v946
        %1174 = vmatprep.subr.bf16.mxu0 %v955
        %1175 = vmatpush1.bf16.msra.mxu0 %v954
        %1176 = vmatprep.subr.bf16.mxu0 %v963
        %1177 = vmatpush1.bf16.msra.mxu0 %v962
        %1178 = vmatprep.subr.bf16.mxu0 %v971
        %1179 = vmatpush1.bf16.msra.mxu0 %v970
        %1180 = vmatprep.subr.bf16.mxu0 %v979
        %1181 = vmatpush1.bf16.msra.mxu0 %v978
        %1182 = vmatprep.subr.bf16.mxu0 %v987
        %1183 = vmatpush1.bf16.msra.mxu0 %v986
        %1184 = vmatprep.subr.bf16.mxu0 %v995
        %1185 = vmatpush1.bf16.msra.mxu0 %v994
        %1186 = vmatprep.subr.bf16.mxu0 %v1003
        %1187 = vmatpush1.bf16.msra.mxu0 %v1002
        %1188 = vmatprep.subr.bf16.mxu0 %v1011
        %1189 = vmatpush1.bf16.msra.mxu0 %v1010
        %1190 = vmatprep.subr.bf16.mxu0 %v1019
        %1191 = vmatpush1.bf16.msra.mxu0 %v1018
        %1192 = vmatprep.subr.bf16.mxu0 %v1027
        %1193 = vmatpush1.bf16.msra.mxu0 %v1026
        %1194 = vmatprep.mubr.bf16.mxu0 %v519
        %1195 = vmatmul.mubr.bf16.gmra.mrb[0].mxu0 %v512
        %v1196 = vpop.f32.mrb[0].mxu0
        %v1197 = vadd.f32 0.0, %v1196
        %v1198 = vpop.f32.mrb[0].mxu0
        %v1199 = vadd.f32 0.0, %v1198
        %v1200 = vpop.f32.mrb[0].mxu0
        %v1201 = vpop.f32.mrb[0].mxu0
        %1202 = vdwg.mxu0
        %1203 = vmatprep.subr.bf16.mxu0 %v909
        %1204 = vmatpush1.bf16.msra.mxu0 %v908
        %1205 = vmatprep.subr.bf16.mxu0 %v917
        %1206 = vmatpush1.bf16.msra.mxu0 %v916
        %1207 = vmatprep.subr.bf16.mxu0 %v925
        %1208 = vmatpush1.bf16.msra.mxu0 %v924
        %1209 = vmatprep.subr.bf16.mxu0 %v933
        %1210 = vmatpush1.bf16.msra.mxu0 %v932
        %1211 = vmatprep.subr.bf16.mxu0 %v941
        %1212 = vmatpush1.bf16.msra.mxu0 %v940
        %1213 = vmatprep.subr.bf16.mxu0 %v949
        %1214 = vmatpush1.bf16.msra.mxu0 %v948
        %1215 = vmatprep.subr.bf16.mxu0 %v957
        %1216 = vmatpush1.bf16.msra.mxu0 %v956
        %1217 = vmatprep.subr.bf16.mxu0 %v965
        %1218 = vmatpush1.bf16.msra.mxu0 %v964
        %1219 = vmatprep.subr.bf16.mxu0 %v973
        %1220 = vmatpush1.bf16.msra.mxu0 %v972
        %1221 = vmatprep.subr.bf16.mxu0 %v981
        %1222 = vmatpush1.bf16.msra.mxu0 %v980
        %1223 = vmatprep.subr.bf16.mxu0 %v989
        %1224 = vmatpush1.bf16.msra.mxu0 %v988
        %1225 = vmatprep.subr.bf16.mxu0 %v997
        %1226 = vmatpush1.bf16.msra.mxu0 %v996
        %1227 = vmatprep.subr.bf16.mxu0 %v1005
        %1228 = vmatpush1.bf16.msra.mxu0 %v1004
        %1229 = vmatprep.subr.bf16.mxu0 %v1013
        %1230 = vmatpush1.bf16.msra.mxu0 %v1012
        %1231 = vmatprep.subr.bf16.mxu0 %v1021
        %1232 = vmatpush1.bf16.msra.mxu0 %v1020
        %1233 = vmatprep.subr.bf16.mxu0 %v1029
        %1234 = vmatpush1.bf16.msra.mxu0 %v1028
        %1235 = vmatprep.mubr.bf16.mxu0 %v519
        %1236 = vmatmul.mubr.bf16.gmra.mrb[0].mxu0 %v512
        %v1237 = vpop.f32.mrb[0].mxu0
        %v1238 = vadd.f32 0.0, %v1237
        %v1239 = vpop.f32.mrb[0].mxu0
        %v1240 = vadd.f32 0.0, %v1239
        %v1241 = vpop.f32.mrb[0].mxu0
        %v1242 = vpop.f32.mrb[0].mxu0
        %1243 = vdwg.mxu0
        %1244 = vmatprep.subr.bf16.mxu0 %v911
        %1245 = vmatpush1.bf16.msra.mxu0 %v910
        %1246 = vmatprep.subr.bf16.mxu0 %v919
        %1247 = vmatpush1.bf16.msra.mxu0 %v918
        %1248 = vmatprep.subr.bf16.mxu0 %v927
        %1249 = vmatpush1.bf16.msra.mxu0 %v926
        %1250 = vmatprep.subr.bf16.mxu0 %v935
        %1251 = vmatpush1.bf16.msra.mxu0 %v934
        %1252 = vmatprep.subr.bf16.mxu0 %v943
        %1253 = vmatpush1.bf16.msra.mxu0 %v942
        %1254 = vmatprep.subr.bf16.mxu0 %v951
        %1255 = vmatpush1.bf16.msra.mxu0 %v950
        %1256 = vmatprep.subr.bf16.mxu0 %v959
        %1257 = vmatpush1.bf16.msra.mxu0 %v958
        %1258 = vmatprep.subr.bf16.mxu0 %v967
        %1259 = vmatpush1.bf16.msra.mxu0 %v966
        %1260 = vmatprep.subr.bf16.mxu0 %v975
        %1261 = vmatpush1.bf16.msra.mxu0 %v974
        %1262 = vmatprep.subr.bf16.mxu0 %v983
        %1263 = vmatpush1.bf16.msra.mxu0 %v982
        %1264 = vmatprep.subr.bf16.mxu0 %v991
        %1265 = vmatpush1.bf16.msra.mxu0 %v990
        %1266 = vmatprep.subr.bf16.mxu0 %v999
        %1267 = vmatpush1.bf16.msra.mxu0 %v998
        %1268 = vmatprep.subr.bf16.mxu0 %v1007
        %1269 = vmatpush1.bf16.msra.mxu0 %v1006
        %1270 = vmatprep.subr.bf16.mxu0 %v1015
        %1271 = vmatpush1.bf16.msra.mxu0 %v1014
        %1272 = vmatprep.subr.bf16.mxu0 %v1023
        %1273 = vmatpush1.bf16.msra.mxu0 %v1022
        %1274 = vmatprep.subr.bf16.mxu0 %v1031
        %1275 = vmatpush1.bf16.msra.mxu0 %v1030
        %1276 = vmatprep.mubr.bf16.mxu0 %v519
        %1277 = vmatmul.mubr.bf16.gmra.mrb[0].mxu0 %v512
        %v1278 = vpop.f32.mrb[0].mxu0
        %v1279 = vadd.f32 0.0, %v1278
        %v1280 = vpop.f32.mrb[0].mxu0
        %v1281 = vadd.f32 0.0, %v1280
        %v1282 = vpop.f32.mrb[0].mxu0
        %v1283 = vpop.f32.mrb[0].mxu0
        %1284 = vdwg.mxu0
        %1285 = vmatprep.subr.bf16.mxu0 %v913
        %1286 = vmatpush1.bf16.msra.mxu0 %v912
        %1287 = vmatprep.subr.bf16.mxu0 %v921
        %1288 = vmatpush1.bf16.msra.mxu0 %v920
        %1289 = vmatprep.subr.bf16.mxu0 %v929
        %1290 = vmatpush1.bf16.msra.mxu0 %v928
        %1291 = vmatprep.subr.bf16.mxu0 %v937
        %1292 = vmatpush1.bf16.msra.mxu0 %v936
        %1293 = vmatprep.subr.bf16.mxu0 %v945
        %1294 = vmatpush1.bf16.msra.mxu0 %v944
        %1295 = vmatprep.subr.bf16.mxu0 %v953
        %1296 = vmatpush1.bf16.msra.mxu0 %v952
        %1297 = vmatprep.subr.bf16.mxu0 %v961
        %1298 = vmatpush1.bf16.msra.mxu0 %v960
        %1299 = vmatprep.subr.bf16.mxu0 %v969
        %1300 = vmatpush1.bf16.msra.mxu0 %v968
        %1301 = vmatprep.subr.bf16.mxu0 %v977
        %1302 = vmatpush1.bf16.msra.mxu0 %v976
        %1303 = vmatprep.subr.bf16.mxu0 %v985
        %1304 = vmatpush1.bf16.msra.mxu0 %v984
        %1305 = vmatprep.subr.bf16.mxu0 %v993
        %1306 = vmatpush1.bf16.msra.mxu0 %v992
        %1307 = vmatprep.subr.bf16.mxu0 %v1001
        %1308 = vmatpush1.bf16.msra.mxu0 %v1000
        %1309 = vmatprep.subr.bf16.mxu0 %v1009
        %1310 = vmatpush1.bf16.msra.mxu0 %v1008
        %1311 = vmatprep.subr.bf16.mxu0 %v1017
        %1312 = vmatpush1.bf16.msra.mxu0 %v1016
        %1313 = vmatprep.subr.bf16.mxu0 %v1025
        %1314 = vmatpush1.bf16.msra.mxu0 %v1024
        %1315 = vmatprep.subr.bf16.mxu0 %v1033
        %1316 = vmatpush1.bf16.msra.mxu0 %v1032
        %1317 = vmatprep.mubr.bf16.mxu0 %v519
        %1318 = vmatmul.mubr.bf16.gmra.mrb[0].mxu0 %v512
        %v1319 = vpop.f32.mrb[0].mxu0
        %v1320 = vadd.f32 0.0, %v1319
        %v1321 = vpop.f32.mrb[0].mxu0
        %v1322 = vadd.f32 0.0, %v1321
        %v1323 = vpop.f32.mrb[0].mxu0
        %v1324 = vpop.f32.mrb[0].mxu0
        %1325 = vdwg.mxu0
        %v1454 = vunpack.c.l.b16 %v244
        %v1455 = vunpack.c.h.b16 %v244
        %v1456 = vunpack.c.l.b16 %v245
        %v1457 = vunpack.c.h.b16 %v245
        %v1458 = vunpack.c.l.b16 %v246
        %v1459 = vunpack.c.h.b16 %v246
        %v1460 = vunpack.c.l.b16 %v247
        %v1461 = vunpack.c.h.b16 %v247
        %v1462 = vunpack.c.l.b16 %v248
        %v1463 = vunpack.c.h.b16 %v248
        %v1464 = vunpack.c.l.b16 %v249
        %v1465 = vunpack.c.h.b16 %v249
        %v1466 = vunpack.c.l.b16 %v250
        %v1467 = vunpack.c.h.b16 %v250
        %v1468 = vunpack.c.l.b16 %v251
        %v1469 = vunpack.c.h.b16 %v251
        %v1470 = vunpack.c.l.b16 %v252
        %v1471 = vunpack.c.h.b16 %v252
        %v1472 = vunpack.c.l.b16 %v253
        %v1473 = vunpack.c.h.b16 %v253
        %v1474 = vunpack.c.l.b16 %v254
        %v1475 = vunpack.c.h.b16 %v254
        %v1476 = vunpack.c.l.b16 %v255
        %v1477 = vunpack.c.h.b16 %v255
        %v1478 = vunpack.c.l.b16 %v256
        %v1479 = vunpack.c.h.b16 %v256
        %v1480 = vunpack.c.l.b16 %v257
        %v1481 = vunpack.c.h.b16 %v257
        %v1482 = vunpack.c.l.b16 %v258
        %v1483 = vunpack.c.h.b16 %v258
        %v1484 = vunpack.c.l.b16 %v259
        %v1485 = vunpack.c.h.b16 %v259
        %v1486 = vunpack.c.l.b16 %v260
        %v1487 = vunpack.c.h.b16 %v260
        %v1488 = vunpack.c.l.b16 %v261
        %v1489 = vunpack.c.h.b16 %v261
        %v1490 = vunpack.c.l.b16 %v262
        %v1491 = vunpack.c.h.b16 %v262
        %v1492 = vunpack.c.l.b16 %v263
        %v1493 = vunpack.c.h.b16 %v263
        %v1494 = vunpack.c.l.b16 %v264
        %v1495 = vunpack.c.h.b16 %v264
        %v1496 = vunpack.c.l.b16 %v265
        %v1497 = vunpack.c.h.b16 %v265
        %v1498 = vunpack.c.l.b16 %v266
        %v1499 = vunpack.c.h.b16 %v266
        %v1500 = vunpack.c.l.b16 %v267
        %v1501 = vunpack.c.h.b16 %v267
        %v1502 = vunpack.c.l.b16 %v268
        %v1503 = vunpack.c.h.b16 %v268
        %v1504 = vunpack.c.l.b16 %v269
        %v1505 = vunpack.c.h.b16 %v269
        %v1506 = vunpack.c.l.b16 %v270
        %v1507 = vunpack.c.h.b16 %v270
        %v1508 = vunpack.c.l.b16 %v271
        %v1509 = vunpack.c.h.b16 %v271
        %v1510 = vunpack.c.l.b16 %v272
        %v1511 = vunpack.c.h.b16 %v272
        %v1512 = vunpack.c.l.b16 %v273
        %v1513 = vunpack.c.h.b16 %v273
        %v1514 = vunpack.c.l.b16 %v274
        %v1515 = vunpack.c.h.b16 %v274
        %v1516 = vunpack.c.l.b16 %v275
        %v1517 = vunpack.c.h.b16 %v275
        %v1518 = vunpack.c.l.b16 %v276
        %v1519 = vunpack.c.h.b16 %v276
        %v1520 = vunpack.c.l.b16 %v277
        %v1521 = vunpack.c.h.b16 %v277
        %v1522 = vunpack.c.l.b16 %v278
        %v1523 = vunpack.c.h.b16 %v278
        %v1524 = vunpack.c.l.b16 %v279
        %v1525 = vunpack.c.h.b16 %v279
        %v1526 = vunpack.c.l.b16 %v280
        %v1527 = vunpack.c.h.b16 %v280
        %v1528 = vunpack.c.l.b16 %v281
        %v1529 = vunpack.c.h.b16 %v281
        %v1530 = vunpack.c.l.b16 %v282
        %v1531 = vunpack.c.h.b16 %v282
        %v1532 = vunpack.c.l.b16 %v283
        %v1533 = vunpack.c.h.b16 %v283
        %v1534 = vunpack.c.l.b16 %v284
        %v1535 = vunpack.c.h.b16 %v284
        %v1536 = vunpack.c.l.b16 %v285
        %v1537 = vunpack.c.h.b16 %v285
        %v1538 = vunpack.c.l.b16 %v286
        %v1539 = vunpack.c.h.b16 %v286
        %v1540 = vunpack.c.l.b16 %v287
        %v1541 = vunpack.c.h.b16 %v287
        %v1542 = vunpack.c.l.b16 %v288
        %v1543 = vunpack.c.h.b16 %v288
        %v1544 = vunpack.c.l.b16 %v289
        %v1545 = vunpack.c.h.b16 %v289
        %v1546 = vunpack.c.l.b16 %v290
        %v1547 = vunpack.c.h.b16 %v290
        %v1548 = vunpack.c.l.b16 %v291
        %v1549 = vunpack.c.h.b16 %v291
        %v1550 = vunpack.c.l.b16 %v292
        %v1551 = vunpack.c.h.b16 %v292
        %v1552 = vunpack.c.l.b16 %v293
        %v1553 = vunpack.c.h.b16 %v293
        %v1554 = vunpack.c.l.b16 %v294
        %v1555 = vunpack.c.h.b16 %v294
        %v1556 = vunpack.c.l.b16 %v295
        %v1557 = vunpack.c.h.b16 %v295
        %v1558 = vunpack.c.l.b16 %v296
        %v1559 = vunpack.c.h.b16 %v296
        %v1560 = vunpack.c.l.b16 %v297
        %v1561 = vunpack.c.h.b16 %v297
        %v1562 = vunpack.c.l.b16 %v298
        %v1563 = vunpack.c.h.b16 %v298
        %v1564 = vunpack.c.l.b16 %v299
        %v1565 = vunpack.c.h.b16 %v299
        %v1566 = vunpack.c.l.b16 %v300
        %v1567 = vunpack.c.h.b16 %v300
        %v1568 = vunpack.c.l.b16 %v301
        %v1569 = vunpack.c.h.b16 %v301
        %v1570 = vunpack.c.l.b16 %v302
        %v1571 = vunpack.c.h.b16 %v302
        %v1572 = vunpack.c.l.b16 %v303
        %v1573 = vunpack.c.h.b16 %v303
        %v1574 = vunpack.c.l.b16 %v304
        %v1575 = vunpack.c.h.b16 %v304
        %v1576 = vunpack.c.l.b16 %v305
        %v1577 = vunpack.c.h.b16 %v305
        %v1578 = vunpack.c.l.b16 %v306
        %v1579 = vunpack.c.h.b16 %v306
        %v1580 = vunpack.c.l.b16 %v307
        %v1581 = vunpack.c.h.b16 %v307
        %v1582 = vunpack.c.l.b16 %v308
        %v1583 = vunpack.c.h.b16 %v308
        %v1584 = vunpack.c.l.b16 %v309
        %v1585 = vunpack.c.h.b16 %v309
        %v1586 = vunpack.c.l.b16 %v310
        %v1587 = vunpack.c.h.b16 %v310
        %v1588 = vunpack.c.l.b16 %v311
        %v1589 = vunpack.c.h.b16 %v311
        %v1590 = vunpack.c.l.b16 %v312
        %v1591 = vunpack.c.h.b16 %v312
        %v1592 = vunpack.c.l.b16 %v313
        %v1593 = vunpack.c.h.b16 %v313
        %v1594 = vunpack.c.l.b16 %v314
        %v1595 = vunpack.c.h.b16 %v314
        %v1596 = vunpack.c.l.b16 %v315
        %v1597 = vunpack.c.h.b16 %v315
        %v1598 = vunpack.c.l.b16 %v316
        %v1599 = vunpack.c.h.b16 %v316
        %v1600 = vunpack.c.l.b16 %v317
        %v1601 = vunpack.c.h.b16 %v317
        %v1602 = vunpack.c.l.b16 %v318
        %v1603 = vunpack.c.h.b16 %v318
        %v1604 = vunpack.c.l.b16 %v319
        %v1605 = vunpack.c.h.b16 %v319
        %v1606 = vunpack.c.l.b16 %v320
        %v1607 = vunpack.c.h.b16 %v320
        %v1608 = vunpack.c.l.b16 %v321
        %v1609 = vunpack.c.h.b16 %v321
        %v1610 = vunpack.c.l.b16 %v322
        %v1611 = vunpack.c.h.b16 %v322
        %v1612 = vunpack.c.l.b16 %v323
        %v1613 = vunpack.c.h.b16 %v323
        %v1614 = vunpack.c.l.b16 %v324
        %v1615 = vunpack.c.h.b16 %v324
        %v1616 = vunpack.c.l.b16 %v325
        %v1617 = vunpack.c.h.b16 %v325
        %v1618 = vunpack.c.l.b16 %v326
        %v1619 = vunpack.c.h.b16 %v326
        %v1620 = vunpack.c.l.b16 %v327
        %v1621 = vunpack.c.h.b16 %v327
        %v1622 = vunpack.c.l.b16 %v328
        %v1623 = vunpack.c.h.b16 %v328
        %v1624 = vunpack.c.l.b16 %v329
        %v1625 = vunpack.c.h.b16 %v329
        %v1626 = vunpack.c.l.b16 %v330
        %v1627 = vunpack.c.h.b16 %v330
        %v1628 = vunpack.c.l.b16 %v331
        %v1629 = vunpack.c.h.b16 %v331
        %v1630 = vunpack.c.l.b16 %v332
        %v1631 = vunpack.c.h.b16 %v332
        %v1632 = vunpack.c.l.b16 %v333
        %v1633 = vunpack.c.h.b16 %v333
        %v1634 = vunpack.c.l.b16 %v334
        %v1635 = vunpack.c.h.b16 %v334
        %v1636 = vunpack.c.l.b16 %v335
        %v1637 = vunpack.c.h.b16 %v335
        %v1638 = vunpack.c.l.b16 %v336
        %v1639 = vunpack.c.h.b16 %v336
        %v1640 = vunpack.c.l.b16 %v337
        %v1641 = vunpack.c.h.b16 %v337
        %v1642 = vunpack.c.l.b16 %v338
        %v1643 = vunpack.c.h.b16 %v338
        %v1644 = vunpack.c.l.b16 %v339
        %v1645 = vunpack.c.h.b16 %v339
        %v1646 = vunpack.c.l.b16 %v340
        %v1647 = vunpack.c.h.b16 %v340
        %v1648 = vunpack.c.l.b16 %v341
        %v1649 = vunpack.c.h.b16 %v341
        %v1650 = vunpack.c.l.b16 %v342
        %v1651 = vunpack.c.h.b16 %v342
        %v1652 = vunpack.c.l.b16 %v343
        %v1653 = vunpack.c.h.b16 %v343
        %v1654 = vunpack.c.l.b16 %v344
        %v1655 = vunpack.c.h.b16 %v344
        %v1656 = vunpack.c.l.b16 %v345
        %v1657 = vunpack.c.h.b16 %v345
        %v1658 = vunpack.c.l.b16 %v346
        %v1659 = vunpack.c.h.b16 %v346
        %v1660 = vunpack.c.l.b16 %v347
        %v1661 = vunpack.c.h.b16 %v347
        %v1662 = vunpack.c.l.b16 %v348
        %v1663 = vunpack.c.h.b16 %v348
        %v1664 = vunpack.c.l.b16 %v349
        %v1665 = vunpack.c.h.b16 %v349
        %v1666 = vunpack.c.l.b16 %v350
        %v1667 = vunpack.c.h.b16 %v350
        %v1668 = vunpack.c.l.b16 %v351
        %v1669 = vunpack.c.h.b16 %v351
        %v1670 = vunpack.c.l.b16 %v352
        %v1671 = vunpack.c.h.b16 %v352
        %v1672 = vunpack.c.l.b16 %v353
        %v1673 = vunpack.c.h.b16 %v353
        %v1674 = vunpack.c.l.b16 %v354
        %v1675 = vunpack.c.h.b16 %v354
        %v1676 = vunpack.c.l.b16 %v355
        %v1677 = vunpack.c.h.b16 %v355
        %v1678 = vunpack.c.l.b16 %v356
        %v1679 = vunpack.c.h.b16 %v356
        %v1680 = vunpack.c.l.b16 %v357
        %v1681 = vunpack.c.h.b16 %v357
        %v1682 = vunpack.c.l.b16 %v358
        %v1683 = vunpack.c.h.b16 %v358
        %v1684 = vunpack.c.l.b16 %v359
        %v1685 = vunpack.c.h.b16 %v359
        %v1686 = vunpack.c.l.b16 %v360
        %v1687 = vunpack.c.h.b16 %v360
        %v1688 = vunpack.c.l.b16 %v361
        %v1689 = vunpack.c.h.b16 %v361
        %v1690 = vunpack.c.l.b16 %v362
        %v1691 = vunpack.c.h.b16 %v362
        %v1692 = vunpack.c.l.b16 %v363
        %v1693 = vunpack.c.h.b16 %v363
        %v1694 = vunpack.c.l.b16 %v364
        %v1695 = vunpack.c.h.b16 %v364
        %v1696 = vunpack.c.l.b16 %v365
        %v1697 = vunpack.c.h.b16 %v365
        %v1698 = vunpack.c.l.b16 %v366
        %v1699 = vunpack.c.h.b16 %v366
        %v1700 = vunpack.c.l.b16 %v367
        %v1701 = vunpack.c.h.b16 %v367
        %v1702 = vunpack.c.l.b16 %v368
        %v1703 = vunpack.c.h.b16 %v368
        %v1704 = vunpack.c.l.b16 %v369
        %v1705 = vunpack.c.h.b16 %v369
        %v1706 = vunpack.c.l.b16 %v370
        %v1707 = vunpack.c.h.b16 %v370
        %v1708 = vunpack.c.l.b16 %v371
        %v1709 = vunpack.c.h.b16 %v371
        %v1710 = vpack.c.b16 %v1462, %v1454
        %v1711 = vpack.c.b16 %v1463, %v1455
        %v1712 = vpack.c.b16 %v1464, %v1456
        %v1713 = vpack.c.b16 %v1465, %v1457
        %v1714 = vpack.c.b16 %v1466, %v1458
        %v1715 = vpack.c.b16 %v1467, %v1459
        %v1716 = vpack.c.b16 %v1468, %v1460
        %v1717 = vpack.c.b16 %v1469, %v1461
        %v1718 = vpack.c.b16 %v1478, %v1470
        %v1719 = vpack.c.b16 %v1479, %v1471
        %v1720 = vpack.c.b16 %v1480, %v1472
        %v1721 = vpack.c.b16 %v1481, %v1473
        %v1722 = vpack.c.b16 %v1482, %v1474
        %v1723 = vpack.c.b16 %v1483, %v1475
        %v1724 = vpack.c.b16 %v1484, %v1476
        %v1725 = vpack.c.b16 %v1485, %v1477
        %v1726 = vpack.c.b16 %v1494, %v1486
        %v1727 = vpack.c.b16 %v1495, %v1487
        %v1728 = vpack.c.b16 %v1496, %v1488
        %v1729 = vpack.c.b16 %v1497, %v1489
        %v1730 = vpack.c.b16 %v1498, %v1490
        %v1731 = vpack.c.b16 %v1499, %v1491
        %v1732 = vpack.c.b16 %v1500, %v1492
        %v1733 = vpack.c.b16 %v1501, %v1493
        %v1734 = vpack.c.b16 %v1510, %v1502
        %v1735 = vpack.c.b16 %v1511, %v1503
        %v1736 = vpack.c.b16 %v1512, %v1504
        %v1737 = vpack.c.b16 %v1513, %v1505
        %v1738 = vpack.c.b16 %v1514, %v1506
        %v1739 = vpack.c.b16 %v1515, %v1507
        %v1740 = vpack.c.b16 %v1516, %v1508
        %v1741 = vpack.c.b16 %v1517, %v1509
        %v1742 = vpack.c.b16 %v1526, %v1518
        %v1743 = vpack.c.b16 %v1527, %v1519
        %v1744 = vpack.c.b16 %v1528, %v1520
        %v1745 = vpack.c.b16 %v1529, %v1521
        %v1746 = vpack.c.b16 %v1530, %v1522
        %v1747 = vpack.c.b16 %v1531, %v1523
        %v1748 = vpack.c.b16 %v1532, %v1524
        %v1749 = vpack.c.b16 %v1533, %v1525
        %v1750 = vpack.c.b16 %v1542, %v1534
        %v1751 = vpack.c.b16 %v1543, %v1535
        %v1752 = vpack.c.b16 %v1544, %v1536
        %v1753 = vpack.c.b16 %v1545, %v1537
        %v1754 = vpack.c.b16 %v1546, %v1538
        %v1755 = vpack.c.b16 %v1547, %v1539
        %v1756 = vpack.c.b16 %v1548, %v1540
        %v1757 = vpack.c.b16 %v1549, %v1541
        %v1758 = vpack.c.b16 %v1558, %v1550
        %v1759 = vpack.c.b16 %v1559, %v1551
        %v1760 = vpack.c.b16 %v1560, %v1552
        %v1761 = vpack.c.b16 %v1561, %v1553
        %v1762 = vpack.c.b16 %v1562, %v1554
        %v1763 = vpack.c.b16 %v1563, %v1555
        %v1764 = vpack.c.b16 %v1564, %v1556
        %v1765 = vpack.c.b16 %v1565, %v1557
        %v1766 = vpack.c.b16 %v1574, %v1566
        %v1767 = vpack.c.b16 %v1575, %v1567
        %v1768 = vpack.c.b16 %v1576, %v1568
        %v1769 = vpack.c.b16 %v1577, %v1569
        %v1770 = vpack.c.b16 %v1578, %v1570
        %v1771 = vpack.c.b16 %v1579, %v1571
        %v1772 = vpack.c.b16 %v1580, %v1572
        %v1773 = vpack.c.b16 %v1581, %v1573
        %v1774 = vpack.c.b16 %v1590, %v1582
        %v1775 = vpack.c.b16 %v1591, %v1583
        %v1776 = vpack.c.b16 %v1592, %v1584
        %v1777 = vpack.c.b16 %v1593, %v1585
        %v1778 = vpack.c.b16 %v1594, %v1586
        %v1779 = vpack.c.b16 %v1595, %v1587
        %v1780 = vpack.c.b16 %v1596, %v1588
        %v1781 = vpack.c.b16 %v1597, %v1589
        %v1782 = vpack.c.b16 %v1606, %v1598
        %v1783 = vpack.c.b16 %v1607, %v1599
        %v1784 = vpack.c.b16 %v1608, %v1600
        %v1785 = vpack.c.b16 %v1609, %v1601
        %v1786 = vpack.c.b16 %v1610, %v1602
        %v1787 = vpack.c.b16 %v1611, %v1603
        %v1788 = vpack.c.b16 %v1612, %v1604
        %v1789 = vpack.c.b16 %v1613, %v1605
        %v1790 = vpack.c.b16 %v1622, %v1614
        %v1791 = vpack.c.b16 %v1623, %v1615
        %v1792 = vpack.c.b16 %v1624, %v1616
        %v1793 = vpack.c.b16 %v1625, %v1617
        %v1794 = vpack.c.b16 %v1626, %v1618
        %v1795 = vpack.c.b16 %v1627, %v1619
        %v1796 = vpack.c.b16 %v1628, %v1620
        %v1797 = vpack.c.b16 %v1629, %v1621
        %v1798 = vpack.c.b16 %v1638, %v1630
        %v1799 = vpack.c.b16 %v1639, %v1631
        %v1800 = vpack.c.b16 %v1640, %v1632
        %v1801 = vpack.c.b16 %v1641, %v1633
        %v1802 = vpack.c.b16 %v1642, %v1634
        %v1803 = vpack.c.b16 %v1643, %v1635
        %v1804 = vpack.c.b16 %v1644, %v1636
        %v1805 = vpack.c.b16 %v1645, %v1637
        %v1806 = vpack.c.b16 %v1654, %v1646
        %v1807 = vpack.c.b16 %v1655, %v1647
        %v1808 = vpack.c.b16 %v1656, %v1648
        %v1809 = vpack.c.b16 %v1657, %v1649
        %v1810 = vpack.c.b16 %v1658, %v1650
        %v1811 = vpack.c.b16 %v1659, %v1651
        %v1812 = vpack.c.b16 %v1660, %v1652
        %v1813 = vpack.c.b16 %v1661, %v1653
        %v1814 = vpack.c.b16 %v1670, %v1662
        %v1815 = vpack.c.b16 %v1671, %v1663
        %v1816 = vpack.c.b16 %v1672, %v1664
        %v1817 = vpack.c.b16 %v1673, %v1665
        %v1818 = vpack.c.b16 %v1674, %v1666
        %v1819 = vpack.c.b16 %v1675, %v1667
        %v1820 = vpack.c.b16 %v1676, %v1668
        %v1821 = vpack.c.b16 %v1677, %v1669
        %v1822 = vpack.c.b16 %v1686, %v1678
        %v1823 = vpack.c.b16 %v1687, %v1679
        %v1824 = vpack.c.b16 %v1688, %v1680
        %v1825 = vpack.c.b16 %v1689, %v1681
        %v1826 = vpack.c.b16 %v1690, %v1682
        %v1827 = vpack.c.b16 %v1691, %v1683
        %v1828 = vpack.c.b16 %v1692, %v1684
        %v1829 = vpack.c.b16 %v1693, %v1685
        %v1830 = vpack.c.b16 %v1702, %v1694
        %v1831 = vpack.c.b16 %v1703, %v1695
        %v1832 = vpack.c.b16 %v1704, %v1696
        %v1833 = vpack.c.b16 %v1705, %v1697
        %v1834 = vpack.c.b16 %v1706, %v1698
        %v1835 = vpack.c.b16 %v1707, %v1699
        %v1836 = vpack.c.b16 %v1708, %v1700
        %v1837 = vpack.c.b16 %v1709, %v1701
        %1966 = vmatprep.subr.bf16.mxu0 %v1711
        %1967 = vmatpush1.bf16.msra.mxu0 %v1710
        %1968 = vmatprep.subr.bf16.mxu0 %v1719
        %1969 = vmatpush1.bf16.msra.mxu0 %v1718
        %1970 = vmatprep.subr.bf16.mxu0 %v1727
        %1971 = vmatpush1.bf16.msra.mxu0 %v1726
        %1972 = vmatprep.subr.bf16.mxu0 %v1735
        %1973 = vmatpush1.bf16.msra.mxu0 %v1734
        %1974 = vmatprep.subr.bf16.mxu0 %v1743
        %1975 = vmatpush1.bf16.msra.mxu0 %v1742
        %1976 = vmatprep.subr.bf16.mxu0 %v1751
        %1977 = vmatpush1.bf16.msra.mxu0 %v1750
        %1978 = vmatprep.subr.bf16.mxu0 %v1759
        %1979 = vmatpush1.bf16.msra.mxu0 %v1758
        %1980 = vmatprep.subr.bf16.mxu0 %v1767
        %1981 = vmatpush1.bf16.msra.mxu0 %v1766
        %1982 = vmatprep.subr.bf16.mxu0 %v1775
        %1983 = vmatpush1.bf16.msra.mxu0 %v1774
        %1984 = vmatprep.subr.bf16.mxu0 %v1783
        %1985 = vmatpush1.bf16.msra.mxu0 %v1782
        %1986 = vmatprep.subr.bf16.mxu0 %v1791
        %1987 = vmatpush1.bf16.msra.mxu0 %v1790
        %1988 = vmatprep.subr.bf16.mxu0 %v1799
        %1989 = vmatpush1.bf16.msra.mxu0 %v1798
        %1990 = vmatprep.subr.bf16.mxu0 %v1807
        %1991 = vmatpush1.bf16.msra.mxu0 %v1806
        %1992 = vmatprep.subr.bf16.mxu0 %v1815
        %1993 = vmatpush1.bf16.msra.mxu0 %v1814
        %1994 = vmatprep.subr.bf16.mxu0 %v1823
        %1995 = vmatpush1.bf16.msra.mxu0 %v1822
        %1996 = vmatprep.subr.bf16.mxu0 %v1831
        %1997 = vmatpush1.bf16.msra.mxu0 %v1830
        %1998 = vmatprep.mubr.bf16.mxu0 %v243
        %1999 = vmatmul.mubr.bf16.gmra.mrb[0].mxu0 %v242
        %v2000 = vpop.f32.mrb[0].mxu0
        %v2001 = vadd.f32 %v1197, %v2000
        %v2002 = vpop.f32.mrb[0].mxu0
        %v2003 = vadd.f32 %v1199, %v2002
        %v2004 = vpop.f32.mrb[0].mxu0
        %v2005 = vpop.f32.mrb[0].mxu0
        %2006 = vdwg.mxu0
        %2007 = vmatprep.subr.bf16.mxu0 %v1713
        %2008 = vmatpush1.bf16.msra.mxu0 %v1712
        %2009 = vmatprep.subr.bf16.mxu0 %v1721
        %2010 = vmatpush1.bf16.msra.mxu0 %v1720
        %2011 = vmatprep.subr.bf16.mxu0 %v1729
        %2012 = vmatpush1.bf16.msra.mxu0 %v1728
        %2013 = vmatprep.subr.bf16.mxu0 %v1737
        %2014 = vmatpush1.bf16.msra.mxu0 %v1736
        %2015 = vmatprep.subr.bf16.mxu0 %v1745
        %2016 = vmatpush1.bf16.msra.mxu0 %v1744
        %2017 = vmatprep.subr.bf16.mxu0 %v1753
        %2018 = vmatpush1.bf16.msra.mxu0 %v1752
        %2019 = vmatprep.subr.bf16.mxu0 %v1761
        %2020 = vmatpush1.bf16.msra.mxu0 %v1760
        %2021 = vmatprep.subr.bf16.mxu0 %v1769
        %2022 = vmatpush1.bf16.msra.mxu0 %v1768
        %2023 = vmatprep.subr.bf16.mxu0 %v1777
        %2024 = vmatpush1.bf16.msra.mxu0 %v1776
        %2025 = vmatprep.subr.bf16.mxu0 %v1785
        %2026 = vmatpush1.bf16.msra.mxu0 %v1784
        %2027 = vmatprep.subr.bf16.mxu0 %v1793
        %2028 = vmatpush1.bf16.msra.mxu0 %v1792
        %2029 = vmatprep.subr.bf16.mxu0 %v1801
        %2030 = vmatpush1.bf16.msra.mxu0 %v1800
        %2031 = vmatprep.subr.bf16.mxu0 %v1809
        %2032 = vmatpush1.bf16.msra.mxu0 %v1808
        %2033 = vmatprep.subr.bf16.mxu0 %v1817
        %2034 = vmatpush1.bf16.msra.mxu0 %v1816
        %2035 = vmatprep.subr.bf16.mxu0 %v1825
        %2036 = vmatpush1.bf16.msra.mxu0 %v1824
        %2037 = vmatprep.subr.bf16.mxu0 %v1833
        %2038 = vmatpush1.bf16.msra.mxu0 %v1832
        %2039 = vmatprep.mubr.bf16.mxu0 %v243
        %2040 = vmatmul.mubr.bf16.gmra.mrb[0].mxu0 %v242
        %v2041 = vpop.f32.mrb[0].mxu0
        %v2042 = vadd.f32 %v1238, %v2041
        %v2043 = vpop.f32.mrb[0].mxu0
        %v2044 = vadd.f32 %v1240, %v2043
        %v2045 = vpop.f32.mrb[0].mxu0
        %v2046 = vpop.f32.mrb[0].mxu0
        %2047 = vdwg.mxu0
        %2048 = vmatprep.subr.bf16.mxu0 %v1715
        %2049 = vmatpush1.bf16.msra.mxu0 %v1714
        %2050 = vmatprep.subr.bf16.mxu0 %v1723
        %2051 = vmatpush1.bf16.msra.mxu0 %v1722
        %2052 = vmatprep.subr.bf16.mxu0 %v1731
        %2053 = vmatpush1.bf16.msra.mxu0 %v1730
        %2054 = vmatprep.subr.bf16.mxu0 %v1739
        %2055 = vmatpush1.bf16.msra.mxu0 %v1738
        %2056 = vmatprep.subr.bf16.mxu0 %v1747
        %2057 = vmatpush1.bf16.msra.mxu0 %v1746
        %2058 = vmatprep.subr.bf16.mxu0 %v1755
        %2059 = vmatpush1.bf16.msra.mxu0 %v1754
        %2060 = vmatprep.subr.bf16.mxu0 %v1763
        %2061 = vmatpush1.bf16.msra.mxu0 %v1762
        %2062 = vmatprep.subr.bf16.mxu0 %v1771
        %2063 = vmatpush1.bf16.msra.mxu0 %v1770
        %2064 = vmatprep.subr.bf16.mxu0 %v1779
        %2065 = vmatpush1.bf16.msra.mxu0 %v1778
        %2066 = vmatprep.subr.bf16.mxu0 %v1787
        %2067 = vmatpush1.bf16.msra.mxu0 %v1786
        %2068 = vmatprep.subr.bf16.mxu0 %v1795
        %2069 = vmatpush1.bf16.msra.mxu0 %v1794
        %2070 = vmatprep.subr.bf16.mxu0 %v1803
        %2071 = vmatpush1.bf16.msra.mxu0 %v1802
        %2072 = vmatprep.subr.bf16.mxu0 %v1811
        %2073 = vmatpush1.bf16.msra.mxu0 %v1810
        %2074 = vmatprep.subr.bf16.mxu0 %v1819
        %2075 = vmatpush1.bf16.msra.mxu0 %v1818
        %2076 = vmatprep.subr.bf16.mxu0 %v1827
        %2077 = vmatpush1.bf16.msra.mxu0 %v1826
        %2078 = vmatprep.subr.bf16.mxu0 %v1835
        %2079 = vmatpush1.bf16.msra.mxu0 %v1834
        %2080 = vmatprep.mubr.bf16.mxu0 %v243
        %2081 = vmatmul.mubr.bf16.gmra.mrb[0].mxu0 %v242
        %v2082 = vpop.f32.mrb[0].mxu0
        %v2083 = vadd.f32 %v1279, %v2082
        %v2084 = vpop.f32.mrb[0].mxu0
        %v2085 = vadd.f32 %v1281, %v2084
        %v2086 = vpop.f32.mrb[0].mxu0
        %v2087 = vpop.f32.mrb[0].mxu0
        %2088 = vdwg.mxu0
        %2089 = vmatprep.subr.bf16.mxu0 %v1717
        %2090 = vmatpush1.bf16.msra.mxu0 %v1716
        %2091 = vmatprep.subr.bf16.mxu0 %v1725
        %2092 = vmatpush1.bf16.msra.mxu0 %v1724
        %2093 = vmatprep.subr.bf16.mxu0 %v1733
        %2094 = vmatpush1.bf16.msra.mxu0 %v1732
        %2095 = vmatprep.subr.bf16.mxu0 %v1741
        %2096 = vmatpush1.bf16.msra.mxu0 %v1740
        %2097 = vmatprep.subr.bf16.mxu0 %v1749
        %2098 = vmatpush1.bf16.msra.mxu0 %v1748
        %2099 = vmatprep.subr.bf16.mxu0 %v1757
        %2100 = vmatpush1.bf16.msra.mxu0 %v1756
        %2101 = vmatprep.subr.bf16.mxu0 %v1765
        %2102 = vmatpush1.bf16.msra.mxu0 %v1764
        %2103 = vmatprep.subr.bf16.mxu0 %v1773
        %2104 = vmatpush1.bf16.msra.mxu0 %v1772
        %2105 = vmatprep.subr.bf16.mxu0 %v1781
        %2106 = vmatpush1.bf16.msra.mxu0 %v1780
        %2107 = vmatprep.subr.bf16.mxu0 %v1789
        %2108 = vmatpush1.bf16.msra.mxu0 %v1788
        %2109 = vmatprep.subr.bf16.mxu0 %v1797
        %2110 = vmatpush1.bf16.msra.mxu0 %v1796
        %2111 = vmatprep.subr.bf16.mxu0 %v1805
        %2112 = vmatpush1.bf16.msra.mxu0 %v1804
        %2113 = vmatprep.subr.bf16.mxu0 %v1813
        %2114 = vmatpush1.bf16.msra.mxu0 %v1812
        %2115 = vmatprep.subr.bf16.mxu0 %v1821
        %2116 = vmatpush1.bf16.msra.mxu0 %v1820
        %2117 = vmatprep.subr.bf16.mxu0 %v1829
        %2118 = vmatpush1.bf16.msra.mxu0 %v1828
        %2119 = vmatprep.subr.bf16.mxu0 %v1837
        %2120 = vmatpush1.bf16.msra.mxu0 %v1836
        %2121 = vmatprep.mubr.bf16.mxu0 %v243
        %2122 = vmatmul.mubr.bf16.gmra.mrb[0].mxu0 %v242
        %v2123 = vpop.f32.mrb[0].mxu0
        %v2124 = vadd.f32 %v1320, %v2123
        %v2125 = vpop.f32.mrb[0].mxu0
        %v2126 = vadd.f32 %v1322, %v2125
        %v2127 = vpop.f32.mrb[0].mxu0
        %v2128 = vpop.f32.mrb[0].mxu0
        %2129 = vdwg.mxu0
        %v2130 = vld [vmem:[%s205] sm:$0xfc]
        %v2131 = vld [vmem:[%s205 + $0x8] sm:$0xfc]
        %v2132 = vld [vmem:[%s205 + $0x10] sm:$0x3]
        %v2133 = vld [vmem:[%s205 + $0x18] sm:$0x3]
        %v2134 = vpack.c.bf16 %v2132, %v2130
        %v2135 = vpack.c.bf16 %v2133, %v2131
        %v2136 = vld [vmem:[#allocation5 + $0x800] sm:$0xff]
        %v2137 = vld [vmem:[#allocation5 + $0x808] sm:$0xff]
        %v2138 = vld [vmem:[#allocation5 + $0x810] sm:$0xff]
        %v2139 = vld [vmem:[#allocation5 + $0x818] sm:$0xff]
        %v2140 = vld [vmem:[#allocation5 + $0x820] sm:$0xff]
        %v2141 = vld [vmem:[#allocation5 + $0x828] sm:$0xff]
        %v2142 = vld [vmem:[#allocation5 + $0x830] sm:$0xff]
        %v2143 = vld [vmem:[#allocation5 + $0x838] sm:$0xff]
        %v2144 = vld [vmem:[#allocation5 + $0x840] sm:$0xff]
        %v2145 = vld [vmem:[#allocation5 + $0x848] sm:$0xff]
        %v2146 = vld [vmem:[#allocation5 + $0x850] sm:$0xff]
        %v2147 = vld [vmem:[#allocation5 + $0x858] sm:$0xff]
        %v2148 = vld [vmem:[#allocation5 + $0x860] sm:$0xff]
        %v2149 = vld [vmem:[#allocation5 + $0x868] sm:$0xff]
        %v2150 = vld [vmem:[#allocation5 + $0x870] sm:$0xff]
        %v2151 = vld [vmem:[#allocation5 + $0x878] sm:$0xff]
        %v2152 = vld [vmem:[#allocation5 + $0x880] sm:$0xff]
        %v2153 = vld [vmem:[#allocation5 + $0x888] sm:$0xff]
        %v2154 = vld [vmem:[#allocation5 + $0x890] sm:$0xff]
        %v2155 = vld [vmem:[#allocation5 + $0x898] sm:$0xff]
        %v2156 = vld [vmem:[#allocation5 + $0x8a0] sm:$0xff]
        %v2157 = vld [vmem:[#allocation5 + $0x8a8] sm:$0xff]
        %v2158 = vld [vmem:[#allocation5 + $0x8b0] sm:$0xff]
        %v2159 = vld [vmem:[#allocation5 + $0x8b8] sm:$0xff]
        %v2160 = vld [vmem:[#allocation5 + $0x8c0] sm:$0xff]
        %v2161 = vld [vmem:[#allocation5 + $0x8c8] sm:$0xff]
        %v2162 = vld [vmem:[#allocation5 + $0x8d0] sm:$0xff]
        %v2163 = vld [vmem:[#allocation5 + $0x8d8] sm:$0xff]
        %v2164 = vld [vmem:[#allocation5 + $0x8e0] sm:$0xff]
        %v2165 = vld [vmem:[#allocation5 + $0x8e8] sm:$0xff]
        %v2166 = vld [vmem:[#allocation5 + $0x8f0] sm:$0xff]
        %v2167 = vld [vmem:[#allocation5 + $0x8f8] sm:$0xff]
        %v2168 = vld [vmem:[#allocation5 + $0x900] sm:$0xff]
        %v2169 = vld [vmem:[#allocation5 + $0x908] sm:$0xff]
        %v2170 = vld [vmem:[#allocation5 + $0x910] sm:$0xff]
        %v2171 = vld [vmem:[#allocation5 + $0x918] sm:$0xff]
        %v2172 = vld [vmem:[#allocation5 + $0x920] sm:$0xff]
        %v2173 = vld [vmem:[#allocation5 + $0x928] sm:$0xff]
        %v2174 = vld [vmem:[#allocation5 + $0x930] sm:$0xff]
        %v2175 = vld [vmem:[#allocation5 + $0x938] sm:$0xff]
        %v2176 = vld [vmem:[#allocation5 + $0x940] sm:$0xff]
        %v2177 = vld [vmem:[#allocation5 + $0x948] sm:$0xff]
        %v2178 = vld [vmem:[#allocation5 + $0x950] sm:$0xff]
        %v2179 = vld [vmem:[#allocation5 + $0x958] sm:$0xff]
        %v2180 = vld [vmem:[#allocation5 + $0x960] sm:$0xff]
        %v2181 = vld [vmem:[#allocation5 + $0x968] sm:$0xff]
        %v2182 = vld [vmem:[#allocation5 + $0x970] sm:$0xff]
        %v2183 = vld [vmem:[#allocation5 + $0x978] sm:$0xff]
        %v2184 = vld [vmem:[#allocation5 + $0x980] sm:$0xff]
        %v2185 = vld [vmem:[#allocation5 + $0x988] sm:$0xff]
        %v2186 = vld [vmem:[#allocation5 + $0x990] sm:$0xff]
        %v2187 = vld [vmem:[#allocation5 + $0x998] sm:$0xff]
        %v2188 = vld [vmem:[#allocation5 + $0x9a0] sm:$0xff]
        %v2189 = vld [vmem:[#allocation5 + $0x9a8] sm:$0xff]
        %v2190 = vld [vmem:[#allocation5 + $0x9b0] sm:$0xff]
        %v2191 = vld [vmem:[#allocation5 + $0x9b8] sm:$0xff]
        %v2192 = vld [vmem:[#allocation5 + $0x9c0] sm:$0xff]
        %v2193 = vld [vmem:[#allocation5 + $0x9c8] sm:$0xff]
        %v2194 = vld [vmem:[#allocation5 + $0x9d0] sm:$0xff]
        %v2195 = vld [vmem:[#allocation5 + $0x9d8] sm:$0xff]
        %v2196 = vld [vmem:[#allocation5 + $0x9e0] sm:$0xff]
        %v2197 = vld [vmem:[#allocation5 + $0x9e8] sm:$0xff]
        %v2198 = vld [vmem:[#allocation5 + $0x9f0] sm:$0xff]
        %v2199 = vld [vmem:[#allocation5 + $0x9f8] sm:$0xff]
        %v2200 = vld [vmem:[#allocation5 + $0xa00] sm:$0xff]
        %v2201 = vld [vmem:[#allocation5 + $0xa08] sm:$0xff]
        %v2202 = vld [vmem:[#allocation5 + $0xa10] sm:$0xff]
        %v2203 = vld [vmem:[#allocation5 + $0xa18] sm:$0xff]
        %v2204 = vld [vmem:[#allocation5 + $0xa20] sm:$0xff]
        %v2205 = vld [vmem:[#allocation5 + $0xa28] sm:$0xff]
        %v2206 = vld [vmem:[#allocation5 + $0xa30] sm:$0xff]
        %v2207 = vld [vmem:[#allocation5 + $0xa38] sm:$0xff]
        %v2208 = vld [vmem:[#allocation5 + $0xa40] sm:$0xff]
        %v2209 = vld [vmem:[#allocation5 + $0xa48] sm:$0xff]
        %v2210 = vld [vmem:[#allocation5 + $0xa50] sm:$0xff]
        %v2211 = vld [vmem:[#allocation5 + $0xa58] sm:$0xff]
        %v2212 = vld [vmem:[#allocation5 + $0xa60] sm:$0xff]
        %v2213 = vld [vmem:[#allocation5 + $0xa68] sm:$0xff]
        %v2214 = vld [vmem:[#allocation5 + $0xa70] sm:$0xff]
        %v2215 = vld [vmem:[#allocation5 + $0xa78] sm:$0xff]
        %v2216 = vld [vmem:[#allocation5 + $0xa80] sm:$0xff]
        %v2217 = vld [vmem:[#allocation5 + $0xa88] sm:$0xff]
        %v2218 = vld [vmem:[#allocation5 + $0xa90] sm:$0xff]
        %v2219 = vld [vmem:[#allocation5 + $0xa98] sm:$0xff]
        %v2220 = vld [vmem:[#allocation5 + $0xaa0] sm:$0xff]
        %v2221 = vld [vmem:[#allocation5 + $0xaa8] sm:$0xff]
        %v2222 = vld [vmem:[#allocation5 + $0xab0] sm:$0xff]
        %v2223 = vld [vmem:[#allocation5 + $0xab8] sm:$0xff]
        %v2224 = vld [vmem:[#allocation5 + $0xac0] sm:$0xff]
        %v2225 = vld [vmem:[#allocation5 + $0xac8] sm:$0xff]
        %v2226 = vld [vmem:[#allocation5 + $0xad0] sm:$0xff]
        %v2227 = vld [vmem:[#allocation5 + $0xad8] sm:$0xff]
        %v2228 = vld [vmem:[#allocation5 + $0xae0] sm:$0xff]
        %v2229 = vld [vmem:[#allocation5 + $0xae8] sm:$0xff]
        %v2230 = vld [vmem:[#allocation5 + $0xaf0] sm:$0xff]
        %v2231 = vld [vmem:[#allocation5 + $0xaf8] sm:$0xff]
        %v2232 = vld [vmem:[#allocation5 + $0xb00] sm:$0xff]
        %v2233 = vld [vmem:[#allocation5 + $0xb08] sm:$0xff]
        %v2234 = vld [vmem:[#allocation5 + $0xb10] sm:$0xff]
        %v2235 = vld [vmem:[#allocation5 + $0xb18] sm:$0xff]
        %v2236 = vld [vmem:[#allocation5 + $0xb20] sm:$0xff]
        %v2237 = vld [vmem:[#allocation5 + $0xb28] sm:$0xff]
        %v2238 = vld [vmem:[#allocation5 + $0xb30] sm:$0xff]
        %v2239 = vld [vmem:[#allocation5 + $0xb38] sm:$0xff]
        %v2240 = vld [vmem:[#allocation5 + $0xb40] sm:$0xff]
        %v2241 = vld [vmem:[#allocation5 + $0xb48] sm:$0xff]
        %v2242 = vld [vmem:[#allocation5 + $0xb50] sm:$0xff]
        %v2243 = vld [vmem:[#allocation5 + $0xb58] sm:$0xff]
        %v2244 = vld [vmem:[#allocation5 + $0xb60] sm:$0xff]
        %v2245 = vld [vmem:[#allocation5 + $0xb68] sm:$0xff]
        %v2246 = vld [vmem:[#allocation5 + $0xb70] sm:$0xff]
        %v2247 = vld [vmem:[#allocation5 + $0xb78] sm:$0xff]
        %v2248 = vld [vmem:[#allocation5 + $0xb80] sm:$0xff]
        %v2249 = vld [vmem:[#allocation5 + $0xb88] sm:$0xff]
        %v2250 = vld [vmem:[#allocation5 + $0xb90] sm:$0xff]
        %v2251 = vld [vmem:[#allocation5 + $0xb98] sm:$0xff]
        %v2252 = vld [vmem:[#allocation5 + $0xba0] sm:$0xff]
        %v2253 = vld [vmem:[#allocation5 + $0xba8] sm:$0xff]
        %v2254 = vld [vmem:[#allocation5 + $0xbb0] sm:$0xff]
        %v2255 = vld [vmem:[#allocation5 + $0xbb8] sm:$0xff]
        %v2256 = vld [vmem:[#allocation5 + $0xbc0] sm:$0xff]
        %v2257 = vld [vmem:[#allocation5 + $0xbc8] sm:$0xff]
        %v2258 = vld [vmem:[#allocation5 + $0xbd0] sm:$0xff]
        %v2259 = vld [vmem:[#allocation5 + $0xbd8] sm:$0xff]
        %v2260 = vld [vmem:[#allocation5 + $0xbe0] sm:$0xff]
        %v2261 = vld [vmem:[#allocation5 + $0xbe8] sm:$0xff]
        %v2262 = vld [vmem:[#allocation5 + $0xbf0] sm:$0xff]
        %v2263 = vld [vmem:[#allocation5 + $0xbf8] sm:$0xff]
        %v2266 = vrot.slane %v2134, 1
        %v2267 = vrot.slane %v2135, 1
        %v2398 = vunpack.c.l.b16 %v2136
        %v2399 = vunpack.c.h.b16 %v2136
        %v2400 = vunpack.c.l.b16 %v2137
        %v2401 = vunpack.c.h.b16 %v2137
        %v2402 = vunpack.c.l.b16 %v2138
        %v2403 = vunpack.c.h.b16 %v2138
        %v2404 = vunpack.c.l.b16 %v2139
        %v2405 = vunpack.c.h.b16 %v2139
        %v2406 = vunpack.c.l.b16 %v2140
        %v2407 = vunpack.c.h.b16 %v2140
        %v2408 = vunpack.c.l.b16 %v2141
        %v2409 = vunpack.c.h.b16 %v2141
        %v2410 = vunpack.c.l.b16 %v2142
        %v2411 = vunpack.c.h.b16 %v2142
        %v2412 = vunpack.c.l.b16 %v2143
        %v2413 = vunpack.c.h.b16 %v2143
        %v2414 = vunpack.c.l.b16 %v2144
        %v2415 = vunpack.c.h.b16 %v2144
        %v2416 = vunpack.c.l.b16 %v2145
        %v2417 = vunpack.c.h.b16 %v2145
        %v2418 = vunpack.c.l.b16 %v2146
        %v2419 = vunpack.c.h.b16 %v2146
        %v2420 = vunpack.c.l.b16 %v2147
        %v2421 = vunpack.c.h.b16 %v2147
        %v2422 = vunpack.c.l.b16 %v2148
        %v2423 = vunpack.c.h.b16 %v2148
        %v2424 = vunpack.c.l.b16 %v2149
        %v2425 = vunpack.c.h.b16 %v2149
        %v2426 = vunpack.c.l.b16 %v2150
        %v2427 = vunpack.c.h.b16 %v2150
        %v2428 = vunpack.c.l.b16 %v2151
        %v2429 = vunpack.c.h.b16 %v2151
        %v2430 = vunpack.c.l.b16 %v2152
        %v2431 = vunpack.c.h.b16 %v2152
        %v2432 = vunpack.c.l.b16 %v2153
        %v2433 = vunpack.c.h.b16 %v2153
        %v2434 = vunpack.c.l.b16 %v2154
        %v2435 = vunpack.c.h.b16 %v2154
        %v2436 = vunpack.c.l.b16 %v2155
        %v2437 = vunpack.c.h.b16 %v2155
        %v2438 = vunpack.c.l.b16 %v2156
        %v2439 = vunpack.c.h.b16 %v2156
        %v2440 = vunpack.c.l.b16 %v2157
        %v2441 = vunpack.c.h.b16 %v2157
        %v2442 = vunpack.c.l.b16 %v2158
        %v2443 = vunpack.c.h.b16 %v2158
        %v2444 = vunpack.c.l.b16 %v2159
        %v2445 = vunpack.c.h.b16 %v2159
        %v2446 = vunpack.c.l.b16 %v2160
        %v2447 = vunpack.c.h.b16 %v2160
        %v2448 = vunpack.c.l.b16 %v2161
        %v2449 = vunpack.c.h.b16 %v2161
        %v2450 = vunpack.c.l.b16 %v2162
        %v2451 = vunpack.c.h.b16 %v2162
        %v2452 = vunpack.c.l.b16 %v2163
        %v2453 = vunpack.c.h.b16 %v2163
        %v2454 = vunpack.c.l.b16 %v2164
        %v2455 = vunpack.c.h.b16 %v2164
        %v2456 = vunpack.c.l.b16 %v2165
        %v2457 = vunpack.c.h.b16 %v2165
        %v2458 = vunpack.c.l.b16 %v2166
        %v2459 = vunpack.c.h.b16 %v2166
        %v2460 = vunpack.c.l.b16 %v2167
        %v2461 = vunpack.c.h.b16 %v2167
        %v2462 = vunpack.c.l.b16 %v2168
        %v2463 = vunpack.c.h.b16 %v2168
        %v2464 = vunpack.c.l.b16 %v2169
        %v2465 = vunpack.c.h.b16 %v2169
        %v2466 = vunpack.c.l.b16 %v2170
        %v2467 = vunpack.c.h.b16 %v2170
        %v2468 = vunpack.c.l.b16 %v2171
        %v2469 = vunpack.c.h.b16 %v2171
        %v2470 = vunpack.c.l.b16 %v2172
        %v2471 = vunpack.c.h.b16 %v2172
        %v2472 = vunpack.c.l.b16 %v2173
        %v2473 = vunpack.c.h.b16 %v2173
        %v2474 = vunpack.c.l.b16 %v2174
        %v2475 = vunpack.c.h.b16 %v2174
        %v2476 = vunpack.c.l.b16 %v2175
        %v2477 = vunpack.c.h.b16 %v2175
        %v2478 = vunpack.c.l.b16 %v2176
        %v2479 = vunpack.c.h.b16 %v2176
        %v2480 = vunpack.c.l.b16 %v2177
        %v2481 = vunpack.c.h.b16 %v2177
        %v2482 = vunpack.c.l.b16 %v2178
        %v2483 = vunpack.c.h.b16 %v2178
        %v2484 = vunpack.c.l.b16 %v2179
        %v2485 = vunpack.c.h.b16 %v2179
        %v2486 = vunpack.c.l.b16 %v2180
        %v2487 = vunpack.c.h.b16 %v2180
        %v2488 = vunpack.c.l.b16 %v2181
        %v2489 = vunpack.c.h.b16 %v2181
        %v2490 = vunpack.c.l.b16 %v2182
        %v2491 = vunpack.c.h.b16 %v2182
        %v2492 = vunpack.c.l.b16 %v2183
        %v2493 = vunpack.c.h.b16 %v2183
        %v2494 = vunpack.c.l.b16 %v2184
        %v2495 = vunpack.c.h.b16 %v2184
        %v2496 = vunpack.c.l.b16 %v2185
        %v2497 = vunpack.c.h.b16 %v2185
        %v2498 = vunpack.c.l.b16 %v2186
        %v2499 = vunpack.c.h.b16 %v2186
        %v2500 = vunpack.c.l.b16 %v2187
        %v2501 = vunpack.c.h.b16 %v2187
        %v2502 = vunpack.c.l.b16 %v2188
        %v2503 = vunpack.c.h.b16 %v2188
        %v2504 = vunpack.c.l.b16 %v2189
        %v2505 = vunpack.c.h.b16 %v2189
        %v2506 = vunpack.c.l.b16 %v2190
        %v2507 = vunpack.c.h.b16 %v2190
        %v2508 = vunpack.c.l.b16 %v2191
        %v2509 = vunpack.c.h.b16 %v2191
        %v2510 = vunpack.c.l.b16 %v2192
        %v2511 = vunpack.c.h.b16 %v2192
        %v2512 = vunpack.c.l.b16 %v2193
        %v2513 = vunpack.c.h.b16 %v2193
        %v2514 = vunpack.c.l.b16 %v2194
        %v2515 = vunpack.c.h.b16 %v2194
        %v2516 = vunpack.c.l.b16 %v2195
        %v2517 = vunpack.c.h.b16 %v2195
        %v2518 = vunpack.c.l.b16 %v2196
        %v2519 = vunpack.c.h.b16 %v2196
        %v2520 = vunpack.c.l.b16 %v2197
        %v2521 = vunpack.c.h.b16 %v2197
        %v2522 = vunpack.c.l.b16 %v2198
        %v2523 = vunpack.c.h.b16 %v2198
        %v2524 = vunpack.c.l.b16 %v2199
        %v2525 = vunpack.c.h.b16 %v2199
        %v2526 = vunpack.c.l.b16 %v2200
        %v2527 = vunpack.c.h.b16 %v2200
        %v2528 = vunpack.c.l.b16 %v2201
        %v2529 = vunpack.c.h.b16 %v2201
        %v2530 = vunpack.c.l.b16 %v2202
        %v2531 = vunpack.c.h.b16 %v2202
        %v2532 = vunpack.c.l.b16 %v2203
        %v2533 = vunpack.c.h.b16 %v2203
        %v2534 = vunpack.c.l.b16 %v2204
        %v2535 = vunpack.c.h.b16 %v2204
        %v2536 = vunpack.c.l.b16 %v2205
        %v2537 = vunpack.c.h.b16 %v2205
        %v2538 = vunpack.c.l.b16 %v2206
        %v2539 = vunpack.c.h.b16 %v2206
        %v2540 = vunpack.c.l.b16 %v2207
        %v2541 = vunpack.c.h.b16 %v2207
        %v2542 = vunpack.c.l.b16 %v2208
        %v2543 = vunpack.c.h.b16 %v2208
        %v2544 = vunpack.c.l.b16 %v2209
        %v2545 = vunpack.c.h.b16 %v2209
        %v2546 = vunpack.c.l.b16 %v2210
        %v2547 = vunpack.c.h.b16 %v2210
        %v2548 = vunpack.c.l.b16 %v2211
        %v2549 = vunpack.c.h.b16 %v2211
        %v2550 = vunpack.c.l.b16 %v2212
        %v2551 = vunpack.c.h.b16 %v2212
        %v2552 = vunpack.c.l.b16 %v2213
        %v2553 = vunpack.c.h.b16 %v2213
        %v2554 = vunpack.c.l.b16 %v2214
        %v2555 = vunpack.c.h.b16 %v2214
        %v2556 = vunpack.c.l.b16 %v2215
        %v2557 = vunpack.c.h.b16 %v2215
        %v2558 = vunpack.c.l.b16 %v2216
        %v2559 = vunpack.c.h.b16 %v2216
        %v2560 = vunpack.c.l.b16 %v2217
        %v2561 = vunpack.c.h.b16 %v2217
        %v2562 = vunpack.c.l.b16 %v2218
        %v2563 = vunpack.c.h.b16 %v2218
        %v2564 = vunpack.c.l.b16 %v2219
        %v2565 = vunpack.c.h.b16 %v2219
        %v2566 = vunpack.c.l.b16 %v2220
        %v2567 = vunpack.c.h.b16 %v2220
        %v2568 = vunpack.c.l.b16 %v2221
        %v2569 = vunpack.c.h.b16 %v2221
        %v2570 = vunpack.c.l.b16 %v2222
        %v2571 = vunpack.c.h.b16 %v2222
        %v2572 = vunpack.c.l.b16 %v2223
        %v2573 = vunpack.c.h.b16 %v2223
        %v2574 = vunpack.c.l.b16 %v2224
        %v2575 = vunpack.c.h.b16 %v2224
        %v2576 = vunpack.c.l.b16 %v2225
        %v2577 = vunpack.c.h.b16 %v2225
        %v2578 = vunpack.c.l.b16 %v2226
        %v2579 = vunpack.c.h.b16 %v2226
        %v2580 = vunpack.c.l.b16 %v2227
        %v2581 = vunpack.c.h.b16 %v2227
        %v2582 = vunpack.c.l.b16 %v2228
        %v2583 = vunpack.c.h.b16 %v2228
        %v2584 = vunpack.c.l.b16 %v2229
        %v2585 = vunpack.c.h.b16 %v2229
        %v2586 = vunpack.c.l.b16 %v2230
        %v2587 = vunpack.c.h.b16 %v2230
        %v2588 = vunpack.c.l.b16 %v2231
        %v2589 = vunpack.c.h.b16 %v2231
        %v2590 = vunpack.c.l.b16 %v2232
        %v2591 = vunpack.c.h.b16 %v2232
        %v2592 = vunpack.c.l.b16 %v2233
        %v2593 = vunpack.c.h.b16 %v2233
        %v2594 = vunpack.c.l.b16 %v2234
        %v2595 = vunpack.c.h.b16 %v2234
        %v2596 = vunpack.c.l.b16 %v2235
        %v2597 = vunpack.c.h.b16 %v2235
        %v2598 = vunpack.c.l.b16 %v2236
        %v2599 = vunpack.c.h.b16 %v2236
        %v2600 = vunpack.c.l.b16 %v2237
        %v2601 = vunpack.c.h.b16 %v2237
        %v2602 = vunpack.c.l.b16 %v2238
        %v2603 = vunpack.c.h.b16 %v2238
        %v2604 = vunpack.c.l.b16 %v2239
        %v2605 = vunpack.c.h.b16 %v2239
        %v2606 = vunpack.c.l.b16 %v2240
        %v2607 = vunpack.c.h.b16 %v2240
        %v2608 = vunpack.c.l.b16 %v2241
        %v2609 = vunpack.c.h.b16 %v2241
        %v2610 = vunpack.c.l.b16 %v2242
        %v2611 = vunpack.c.h.b16 %v2242
        %v2612 = vunpack.c.l.b16 %v2243
        %v2613 = vunpack.c.h.b16 %v2243
        %v2614 = vunpack.c.l.b16 %v2244
        %v2615 = vunpack.c.h.b16 %v2244
        %v2616 = vunpack.c.l.b16 %v2245
        %v2617 = vunpack.c.h.b16 %v2245
        %v2618 = vunpack.c.l.b16 %v2246
        %v2619 = vunpack.c.h.b16 %v2246
        %v2620 = vunpack.c.l.b16 %v2247
        %v2621 = vunpack.c.h.b16 %v2247
        %v2622 = vunpack.c.l.b16 %v2248
        %v2623 = vunpack.c.h.b16 %v2248
        %v2624 = vunpack.c.l.b16 %v2249
        %v2625 = vunpack.c.h.b16 %v2249
        %v2626 = vunpack.c.l.b16 %v2250
        %v2627 = vunpack.c.h.b16 %v2250
        %v2628 = vunpack.c.l.b16 %v2251
        %v2629 = vunpack.c.h.b16 %v2251
        %v2630 = vunpack.c.l.b16 %v2252
        %v2631 = vunpack.c.h.b16 %v2252
        %v2632 = vunpack.c.l.b16 %v2253
        %v2633 = vunpack.c.h.b16 %v2253
        %v2634 = vunpack.c.l.b16 %v2254
        %v2635 = vunpack.c.h.b16 %v2254
        %v2636 = vunpack.c.l.b16 %v2255
        %v2637 = vunpack.c.h.b16 %v2255
        %v2638 = vunpack.c.l.b16 %v2256
        %v2639 = vunpack.c.h.b16 %v2256
        %v2640 = vunpack.c.l.b16 %v2257
        %v2641 = vunpack.c.h.b16 %v2257
        %v2642 = vunpack.c.l.b16 %v2258
        %v2643 = vunpack.c.h.b16 %v2258
        %v2644 = vunpack.c.l.b16 %v2259
        %v2645 = vunpack.c.h.b16 %v2259
        %v2646 = vunpack.c.l.b16 %v2260
        %v2647 = vunpack.c.h.b16 %v2260
        %v2648 = vunpack.c.l.b16 %v2261
        %v2649 = vunpack.c.h.b16 %v2261
        %v2650 = vunpack.c.l.b16 %v2262
        %v2651 = vunpack.c.h.b16 %v2262
        %v2652 = vunpack.c.l.b16 %v2263
        %v2653 = vunpack.c.h.b16 %v2263
        %v2654 = vpack.c.b16 %v2406, %v2398
        %v2655 = vpack.c.b16 %v2407, %v2399
        %v2656 = vpack.c.b16 %v2408, %v2400
        %v2657 = vpack.c.b16 %v2409, %v2401
        %v2658 = vpack.c.b16 %v2410, %v2402
        %v2659 = vpack.c.b16 %v2411, %v2403
        %v2660 = vpack.c.b16 %v2412, %v2404
        %v2661 = vpack.c.b16 %v2413, %v2405
        %v2662 = vpack.c.b16 %v2422, %v2414
        %v2663 = vpack.c.b16 %v2423, %v2415
        %v2664 = vpack.c.b16 %v2424, %v2416
        %v2665 = vpack.c.b16 %v2425, %v2417
        %v2666 = vpack.c.b16 %v2426, %v2418
        %v2667 = vpack.c.b16 %v2427, %v2419
        %v2668 = vpack.c.b16 %v2428, %v2420
        %v2669 = vpack.c.b16 %v2429, %v2421
        %v2670 = vpack.c.b16 %v2438, %v2430
        %v2671 = vpack.c.b16 %v2439, %v2431
        %v2672 = vpack.c.b16 %v2440, %v2432
        %v2673 = vpack.c.b16 %v2441, %v2433
        %v2674 = vpack.c.b16 %v2442, %v2434
        %v2675 = vpack.c.b16 %v2443, %v2435
        %v2676 = vpack.c.b16 %v2444, %v2436
        %v2677 = vpack.c.b16 %v2445, %v2437
        %v2678 = vpack.c.b16 %v2454, %v2446
        %v2679 = vpack.c.b16 %v2455, %v2447
        %v2680 = vpack.c.b16 %v2456, %v2448
        %v2681 = vpack.c.b16 %v2457, %v2449
        %v2682 = vpack.c.b16 %v2458, %v2450
        %v2683 = vpack.c.b16 %v2459, %v2451
        %v2684 = vpack.c.b16 %v2460, %v2452
        %v2685 = vpack.c.b16 %v2461, %v2453
        %v2686 = vpack.c.b16 %v2470, %v2462
        %v2687 = vpack.c.b16 %v2471, %v2463
        %v2688 = vpack.c.b16 %v2472, %v2464
        %v2689 = vpack.c.b16 %v2473, %v2465
        %v2690 = vpack.c.b16 %v2474, %v2466
        %v2691 = vpack.c.b16 %v2475, %v2467
        %v2692 = vpack.c.b16 %v2476, %v2468
        %v2693 = vpack.c.b16 %v2477, %v2469
        %v2694 = vpack.c.b16 %v2486, %v2478
        %v2695 = vpack.c.b16 %v2487, %v2479
        %v2696 = vpack.c.b16 %v2488, %v2480
        %v2697 = vpack.c.b16 %v2489, %v2481
        %v2698 = vpack.c.b16 %v2490, %v2482
        %v2699 = vpack.c.b16 %v2491, %v2483
        %v2700 = vpack.c.b16 %v2492, %v2484
        %v2701 = vpack.c.b16 %v2493, %v2485
        %v2702 = vpack.c.b16 %v2502, %v2494
        %v2703 = vpack.c.b16 %v2503, %v2495
        %v2704 = vpack.c.b16 %v2504, %v2496
        %v2705 = vpack.c.b16 %v2505, %v2497
        %v2706 = vpack.c.b16 %v2506, %v2498
        %v2707 = vpack.c.b16 %v2507, %v2499
        %v2708 = vpack.c.b16 %v2508, %v2500
        %v2709 = vpack.c.b16 %v2509, %v2501
        %v2710 = vpack.c.b16 %v2518, %v2510
        %v2711 = vpack.c.b16 %v2519, %v2511
        %v2712 = vpack.c.b16 %v2520, %v2512
        %v2713 = vpack.c.b16 %v2521, %v2513
        %v2714 = vpack.c.b16 %v2522, %v2514
        %v2715 = vpack.c.b16 %v2523, %v2515
        %v2716 = vpack.c.b16 %v2524, %v2516
        %v2717 = vpack.c.b16 %v2525, %v2517
        %v2718 = vpack.c.b16 %v2534, %v2526
        %v2719 = vpack.c.b16 %v2535, %v2527
        %v2720 = vpack.c.b16 %v2536, %v2528
        %v2721 = vpack.c.b16 %v2537, %v2529
        %v2722 = vpack.c.b16 %v2538, %v2530
        %v2723 = vpack.c.b16 %v2539, %v2531
        %v2724 = vpack.c.b16 %v2540, %v2532
        %v2725 = vpack.c.b16 %v2541, %v2533
        %v2726 = vpack.c.b16 %v2550, %v2542
        %v2727 = vpack.c.b16 %v2551, %v2543
        %v2728 = vpack.c.b16 %v2552, %v2544
        %v2729 = vpack.c.b16 %v2553, %v2545
        %v2730 = vpack.c.b16 %v2554, %v2546
        %v2731 = vpack.c.b16 %v2555, %v2547
        %v2732 = vpack.c.b16 %v2556, %v2548
        %v2733 = vpack.c.b16 %v2557, %v2549
        %v2734 = vpack.c.b16 %v2566, %v2558
        %v2735 = vpack.c.b16 %v2567, %v2559
        %v2736 = vpack.c.b16 %v2568, %v2560
        %v2737 = vpack.c.b16 %v2569, %v2561
        %v2738 = vpack.c.b16 %v2570, %v2562
        %v2739 = vpack.c.b16 %v2571, %v2563
        %v2740 = vpack.c.b16 %v2572, %v2564
        %v2741 = vpack.c.b16 %v2573, %v2565
        %v2742 = vpack.c.b16 %v2582, %v2574
        %v2743 = vpack.c.b16 %v2583, %v2575
        %v2744 = vpack.c.b16 %v2584, %v2576
        %v2745 = vpack.c.b16 %v2585, %v2577
        %v2746 = vpack.c.b16 %v2586, %v2578
        %v2747 = vpack.c.b16 %v2587, %v2579
        %v2748 = vpack.c.b16 %v2588, %v2580
        %v2749 = vpack.c.b16 %v2589, %v2581
        %v2750 = vpack.c.b16 %v2598, %v2590
        %v2751 = vpack.c.b16 %v2599, %v2591
        %v2752 = vpack.c.b16 %v2600, %v2592
        %v2753 = vpack.c.b16 %v2601, %v2593
        %v2754 = vpack.c.b16 %v2602, %v2594
        %v2755 = vpack.c.b16 %v2603, %v2595
        %v2756 = vpack.c.b16 %v2604, %v2596
        %v2757 = vpack.c.b16 %v2605, %v2597
        %v2758 = vpack.c.b16 %v2614, %v2606
        %v2759 = vpack.c.b16 %v2615, %v2607
        %v2760 = vpack.c.b16 %v2616, %v2608
        %v2761 = vpack.c.b16 %v2617, %v2609
        %v2762 = vpack.c.b16 %v2618, %v2610
        %v2763 = vpack.c.b16 %v2619, %v2611
        %v2764 = vpack.c.b16 %v2620, %v2612
        %v2765 = vpack.c.b16 %v2621, %v2613
        %v2766 = vpack.c.b16 %v2630, %v2622
        %v2767 = vpack.c.b16 %v2631, %v2623
        %v2768 = vpack.c.b16 %v2632, %v2624
        %v2769 = vpack.c.b16 %v2633, %v2625
        %v2770 = vpack.c.b16 %v2634, %v2626
        %v2771 = vpack.c.b16 %v2635, %v2627
        %v2772 = vpack.c.b16 %v2636, %v2628
        %v2773 = vpack.c.b16 %v2637, %v2629
        %v2774 = vpack.c.b16 %v2646, %v2638
        %v2775 = vpack.c.b16 %v2647, %v2639
        %v2776 = vpack.c.b16 %v2648, %v2640
        %v2777 = vpack.c.b16 %v2649, %v2641
        %v2778 = vpack.c.b16 %v2650, %v2642
        %v2779 = vpack.c.b16 %v2651, %v2643
        %v2780 = vpack.c.b16 %v2652, %v2644
        %v2781 = vpack.c.b16 %v2653, %v2645
        %2910 = vmatprep.subr.bf16.mxu0 %v2655
        %2911 = vmatpush1.bf16.msra.mxu0 %v2654
        %2912 = vmatprep.subr.bf16.mxu0 %v2663
        %2913 = vmatpush1.bf16.msra.mxu0 %v2662
        %2914 = vmatprep.subr.bf16.mxu0 %v2671
        %2915 = vmatpush1.bf16.msra.mxu0 %v2670
        %2916 = vmatprep.subr.bf16.mxu0 %v2679
        %2917 = vmatpush1.bf16.msra.mxu0 %v2678
        %2918 = vmatprep.subr.bf16.mxu0 %v2687
        %2919 = vmatpush1.bf16.msra.mxu0 %v2686
        %2920 = vmatprep.subr.bf16.mxu0 %v2695
        %2921 = vmatpush1.bf16.msra.mxu0 %v2694
        %2922 = vmatprep.subr.bf16.mxu0 %v2703
        %2923 = vmatpush1.bf16.msra.mxu0 %v2702
        %2924 = vmatprep.subr.bf16.mxu0 %v2711
        %2925 = vmatpush1.bf16.msra.mxu0 %v2710
        %2926 = vmatprep.subr.bf16.mxu0 %v2719
        %2927 = vmatpush1.bf16.msra.mxu0 %v2718
        %2928 = vmatprep.subr.bf16.mxu0 %v2727
        %2929 = vmatpush1.bf16.msra.mxu0 %v2726
        %2930 = vmatprep.subr.bf16.mxu0 %v2735
        %2931 = vmatpush1.bf16.msra.mxu0 %v2734
        %2932 = vmatprep.subr.bf16.mxu0 %v2743
        %2933 = vmatpush1.bf16.msra.mxu0 %v2742
        %2934 = vmatprep.subr.bf16.mxu0 %v2751
        %2935 = vmatpush1.bf16.msra.mxu0 %v2750
        %2936 = vmatprep.subr.bf16.mxu0 %v2759
        %2937 = vmatpush1.bf16.msra.mxu0 %v2758
        %2938 = vmatprep.subr.bf16.mxu0 %v2767
        %2939 = vmatpush1.bf16.msra.mxu0 %v2766
        %2940 = vmatprep.subr.bf16.mxu0 %v2775
        %2941 = vmatpush1.bf16.msra.mxu0 %v2774
        %2942 = vmatprep.mubr.bf16.mxu0 %v2267
        %2943 = vmatmul.mubr.bf16.gmra.mrb[0].mxu0 %v2266
        %v2944 = vpop.f32.mrb[0].mxu0
        %v2945 = vadd.f32 0.0, %v2944
        %v2946 = vpop.f32.mrb[0].mxu0
        %v2947 = vadd.f32 0.0, %v2946
        %v2948 = vpop.f32.mrb[0].mxu0
        %v2949 = vpop.f32.mrb[0].mxu0
        %2950 = vdwg.mxu0
        %2951 = vmatprep.subr.bf16.mxu0 %v2657
        %2952 = vmatpush1.bf16.msra.mxu0 %v2656
        %2953 = vmatprep.subr.bf16.mxu0 %v2665
        %2954 = vmatpush1.bf16.msra.mxu0 %v2664
        %2955 = vmatprep.subr.bf16.mxu0 %v2673
        %2956 = vmatpush1.bf16.msra.mxu0 %v2672
        %2957 = vmatprep.subr.bf16.mxu0 %v2681
        %2958 = vmatpush1.bf16.msra.mxu0 %v2680
        %2959 = vmatprep.subr.bf16.mxu0 %v2689
        %2960 = vmatpush1.bf16.msra.mxu0 %v2688
        %2961 = vmatprep.subr.bf16.mxu0 %v2697
        %2962 = vmatpush1.bf16.msra.mxu0 %v2696
        %2963 = vmatprep.subr.bf16.mxu0 %v2705
        %2964 = vmatpush1.bf16.msra.mxu0 %v2704
        %2965 = vmatprep.subr.bf16.mxu0 %v2713
        %2966 = vmatpush1.bf16.msra.mxu0 %v2712
        %2967 = vmatprep.subr.bf16.mxu0 %v2721
        %2968 = vmatpush1.bf16.msra.mxu0 %v2720
        %2969 = vmatprep.subr.bf16.mxu0 %v2729
        %2970 = vmatpush1.bf16.msra.mxu0 %v2728
        %2971 = vmatprep.subr.bf16.mxu0 %v2737
        %2972 = vmatpush1.bf16.msra.mxu0 %v2736
        %2973 = vmatprep.subr.bf16.mxu0 %v2745
        %2974 = vmatpush1.bf16.msra.mxu0 %v2744
        %2975 = vmatprep.subr.bf16.mxu0 %v2753
        %2976 = vmatpush1.bf16.msra.mxu0 %v2752
        %2977 = vmatprep.subr.bf16.mxu0 %v2761
        %2978 = vmatpush1.bf16.msra.mxu0 %v2760
        %2979 = vmatprep.subr.bf16.mxu0 %v2769
        %2980 = vmatpush1.bf16.msra.mxu0 %v2768
        %2981 = vmatprep.subr.bf16.mxu0 %v2777
        %2982 = vmatpush1.bf16.msra.mxu0 %v2776
        %2983 = vmatprep.mubr.bf16.mxu0 %v2267
        %2984 = vmatmul.mubr.bf16.gmra.mrb[0].mxu0 %v2266
        %v2985 = vpop.f32.mrb[0].mxu0
        %v2986 = vadd.f32 0.0, %v2985
        %v2987 = vpop.f32.mrb[0].mxu0
        %v2988 = vadd.f32 0.0, %v2987
        %v2989 = vpop.f32.mrb[0].mxu0
        %v2990 = vpop.f32.mrb[0].mxu0
        %2991 = vdwg.mxu0
        %2992 = vmatprep.subr.bf16.mxu0 %v2659
        %2993 = vmatpush1.bf16.msra.mxu0 %v2658
        %2994 = vmatprep.subr.bf16.mxu0 %v2667
        %2995 = vmatpush1.bf16.msra.mxu0 %v2666
        %2996 = vmatprep.subr.bf16.mxu0 %v2675
        %2997 = vmatpush1.bf16.msra.mxu0 %v2674
        %2998 = vmatprep.subr.bf16.mxu0 %v2683
        %2999 = vmatpush1.bf16.msra.mxu0 %v2682
        %3000 = vmatprep.subr.bf16.mxu0 %v2691
        %3001 = vmatpush1.bf16.msra.mxu0 %v2690
        %3002 = vmatprep.subr.bf16.mxu0 %v2699
        %3003 = vmatpush1.bf16.msra.mxu0 %v2698
        %3004 = vmatprep.subr.bf16.mxu0 %v2707
        %3005 = vmatpush1.bf16.msra.mxu0 %v2706
        %3006 = vmatprep.subr.bf16.mxu0 %v2715
        %3007 = vmatpush1.bf16.msra.mxu0 %v2714
        %3008 = vmatprep.subr.bf16.mxu0 %v2723
        %3009 = vmatpush1.bf16.msra.mxu0 %v2722
        %3010 = vmatprep.subr.bf16.mxu0 %v2731
        %3011 = vmatpush1.bf16.msra.mxu0 %v2730
        %3012 = vmatprep.subr.bf16.mxu0 %v2739
        %3013 = vmatpush1.bf16.msra.mxu0 %v2738
        %3014 = vmatprep.subr.bf16.mxu0 %v2747
        %3015 = vmatpush1.bf16.msra.mxu0 %v2746
        %3016 = vmatprep.subr.bf16.mxu0 %v2755
        %3017 = vmatpush1.bf16.msra.mxu0 %v2754
        %3018 = vmatprep.subr.bf16.mxu0 %v2763
        %3019 = vmatpush1.bf16.msra.mxu0 %v2762
        %3020 = vmatprep.subr.bf16.mxu0 %v2771
        %3021 = vmatpush1.bf16.msra.mxu0 %v2770
        %3022 = vmatprep.subr.bf16.mxu0 %v2779
        %3023 = vmatpush1.bf16.msra.mxu0 %v2778
        %3024 = vmatprep.mubr.bf16.mxu0 %v2267
        %3025 = vmatmul.mubr.bf16.gmra.mrb[0].mxu0 %v2266
        %v3026 = vpop.f32.mrb[0].mxu0
        %v3027 = vadd.f32 0.0, %v3026
        %v3028 = vpop.f32.mrb[0].mxu0
        %v3029 = vadd.f32 0.0, %v3028
        %v3030 = vpop.f32.mrb[0].mxu0
        %v3031 = vpop.f32.mrb[0].mxu0
        %3032 = vdwg.mxu0
        %3033 = vmatprep.subr.bf16.mxu0 %v2661
        %3034 = vmatpush1.bf16.msra.mxu0 %v2660
        %3035 = vmatprep.subr.bf16.mxu0 %v2669
        %3036 = vmatpush1.bf16.msra.mxu0 %v2668
        %3037 = vmatprep.subr.bf16.mxu0 %v2677
        %3038 = vmatpush1.bf16.msra.mxu0 %v2676
        %3039 = vmatprep.subr.bf16.mxu0 %v2685
        %3040 = vmatpush1.bf16.msra.mxu0 %v2684
        %3041 = vmatprep.subr.bf16.mxu0 %v2693
        %3042 = vmatpush1.bf16.msra.mxu0 %v2692
        %3043 = vmatprep.subr.bf16.mxu0 %v2701
        %3044 = vmatpush1.bf16.msra.mxu0 %v2700
        %3045 = vmatprep.subr.bf16.mxu0 %v2709
        %3046 = vmatpush1.bf16.msra.mxu0 %v2708
        %3047 = vmatprep.subr.bf16.mxu0 %v2717
        %3048 = vmatpush1.bf16.msra.mxu0 %v2716
        %3049 = vmatprep.subr.bf16.mxu0 %v2725
        %3050 = vmatpush1.bf16.msra.mxu0 %v2724
        %3051 = vmatprep.subr.bf16.mxu0 %v2733
        %3052 = vmatpush1.bf16.msra.mxu0 %v2732
        %3053 = vmatprep.subr.bf16.mxu0 %v2741
        %3054 = vmatpush1.bf16.msra.mxu0 %v2740
        %3055 = vmatprep.subr.bf16.mxu0 %v2749
        %3056 = vmatpush1.bf16.msra.mxu0 %v2748
        %3057 = vmatprep.subr.bf16.mxu0 %v2757
        %3058 = vmatpush1.bf16.msra.mxu0 %v2756
        %3059 = vmatprep.subr.bf16.mxu0 %v2765
        %3060 = vmatpush1.bf16.msra.mxu0 %v2764
        %3061 = vmatprep.subr.bf16.mxu0 %v2773
        %3062 = vmatpush1.bf16.msra.mxu0 %v2772
        %3063 = vmatprep.subr.bf16.mxu0 %v2781
        %3064 = vmatpush1.bf16.msra.mxu0 %v2780
        %3065 = vmatprep.mubr.bf16.mxu0 %v2267
        %3066 = vmatmul.mubr.bf16.gmra.mrb[0].mxu0 %v2266
        %v3067 = vpop.f32.mrb[0].mxu0
        %v3068 = vadd.f32 0.0, %v3067
        %v3069 = vpop.f32.mrb[0].mxu0
        %v3070 = vadd.f32 0.0, %v3069
        %v3071 = vpop.f32.mrb[0].mxu0
        %v3072 = vpop.f32.mrb[0].mxu0
        %3073 = vdwg.mxu0
        %v3074 = vadd.f32 %v2001, %v2945
        %v3075 = vadd.f32 %v2003, %v2947
        %v3076 = vadd.f32 %v2042, %v2986
        %v3077 = vadd.f32 %v2044, %v2988
        %v3078 = vadd.f32 %v2083, %v3027
        %v3079 = vadd.f32 %v2085, %v3029
        %v3080 = vadd.f32 %v2124, %v3068
        %v3081 = vadd.f32 %v2126, %v3070
        %v3082 = vld [vmem:[%s205] sm:$0xf8]
        %v3083 = vld [vmem:[%s205 + $0x8] sm:$0xf8]
        %v3084 = vld [vmem:[%s205 + $0x10] sm:$0x7]
        %v3085 = vld [vmem:[%s205 + $0x18] sm:$0x7]
        %v3086 = vpack.c.bf16 %v3084, %v3082
        %v3087 = vpack.c.bf16 %v3085, %v3083
        %v3088 = vld [vmem:[#allocation5 + $0xc00] sm:$0xff]
        %v3089 = vld [vmem:[#allocation5 + $0xc08] sm:$0xff]
        %v3090 = vld [vmem:[#allocation5 + $0xc10] sm:$0xff]
        %v3091 = vld [vmem:[#allocation5 + $0xc18] sm:$0xff]
        %v3092 = vld [vmem:[#allocation5 + $0xc20] sm:$0xff]
        %v3093 = vld [vmem:[#allocation5 + $0xc28] sm:$0xff]
        %v3094 = vld [vmem:[#allocation5 + $0xc30] sm:$0xff]
        %v3095 = vld [vmem:[#allocation5 + $0xc38] sm:$0xff]
        %v3096 = vld [vmem:[#allocation5 + $0xc40] sm:$0xff]
        %v3097 = vld [vmem:[#allocation5 + $0xc48] sm:$0xff]
        %v3098 = vld [vmem:[#allocation5 + $0xc50] sm:$0xff]
        %v3099 = vld [vmem:[#allocation5 + $0xc58] sm:$0xff]
        %v3100 = vld [vmem:[#allocation5 + $0xc60] sm:$0xff]
        %v3101 = vld [vmem:[#allocation5 + $0xc68] sm:$0xff]
        %v3102 = vld [vmem:[#allocation5 + $0xc70] sm:$0xff]
        %v3103 = vld [vmem:[#allocation5 + $0xc78] sm:$0xff]
        %v3104 = vld [vmem:[#allocation5 + $0xc80] sm:$0xff]
        %v3105 = vld [vmem:[#allocation5 + $0xc88] sm:$0xff]
        %v3106 = vld [vmem:[#allocation5 + $0xc90] sm:$0xff]
        %v3107 = vld [vmem:[#allocation5 + $0xc98] sm:$0xff]
        %v3108 = vld [vmem:[#allocation5 + $0xca0] sm:$0xff]
        %v3109 = vld [vmem:[#allocation5 + $0xca8] sm:$0xff]
        %v3110 = vld [vmem:[#allocation5 + $0xcb0] sm:$0xff]
        %v3111 = vld [vmem:[#allocation5 + $0xcb8] sm:$0xff]
        %v3112 = vld [vmem:[#allocation5 + $0xcc0] sm:$0xff]
        %v3113 = vld [vmem:[#allocation5 + $0xcc8] sm:$0xff]
        %v3114 = vld [vmem:[#allocation5 + $0xcd0] sm:$0xff]
        %v3115 = vld [vmem:[#allocation5 + $0xcd8] sm:$0xff]
        %v3116 = vld [vmem:[#allocation5 + $0xce0] sm:$0xff]
        %v3117 = vld [vmem:[#allocation5 + $0xce8] sm:$0xff]
        %v3118 = vld [vmem:[#allocation5 + $0xcf0] sm:$0xff]
        %v3119 = vld [vmem:[#allocation5 + $0xcf8] sm:$0xff]
        %v3120 = vld [vmem:[#allocation5 + $0xd00] sm:$0xff]
        %v3121 = vld [vmem:[#allocation5 + $0xd08] sm:$0xff]
        %v3122 = vld [vmem:[#allocation5 + $0xd10] sm:$0xff]
        %v3123 = vld [vmem:[#allocation5 + $0xd18] sm:$0xff]
        %v3124 = vld [vmem:[#allocation5 + $0xd20] sm:$0xff]
        %v3125 = vld [vmem:[#allocation5 + $0xd28] sm:$0xff]
        %v3126 = vld [vmem:[#allocation5 + $0xd30] sm:$0xff]
        %v3127 = vld [vmem:[#allocation5 + $0xd38] sm:$0xff]
        %v3128 = vld [vmem:[#allocation5 + $0xd40] sm:$0xff]
        %v3129 = vld [vmem:[#allocation5 + $0xd48] sm:$0xff]
        %v3130 = vld [vmem:[#allocation5 + $0xd50] sm:$0xff]
        %v3131 = vld [vmem:[#allocation5 + $0xd58] sm:$0xff]
        %v3132 = vld [vmem:[#allocation5 + $0xd60] sm:$0xff]
        %v3133 = vld [vmem:[#allocation5 + $0xd68] sm:$0xff]
        %v3134 = vld [vmem:[#allocation5 + $0xd70] sm:$0xff]
        %v3135 = vld [vmem:[#allocation5 + $0xd78] sm:$0xff]
        %v3136 = vld [vmem:[#allocation5 + $0xd80] sm:$0xff]
        %v3137 = vld [vmem:[#allocation5 + $0xd88] sm:$0xff]
        %v3138 = vld [vmem:[#allocation5 + $0xd90] sm:$0xff]
        %v3139 = vld [vmem:[#allocation5 + $0xd98] sm:$0xff]
        %v3140 = vld [vmem:[#allocation5 + $0xda0] sm:$0xff]
        %v3141 = vld [vmem:[#allocation5 + $0xda8] sm:$0xff]
        %v3142 = vld [vmem:[#allocation5 + $0xdb0] sm:$0xff]
        %v3143 = vld [vmem:[#allocation5 + $0xdb8] sm:$0xff]
        %v3144 = vld [vmem:[#allocation5 + $0xdc0] sm:$0xff]
        %v3145 = vld [vmem:[#allocation5 + $0xdc8] sm:$0xff]
        %v3146 = vld [vmem:[#allocation5 + $0xdd0] sm:$0xff]
        %v3147 = vld [vmem:[#allocation5 + $0xdd8] sm:$0xff]
        %v3148 = vld [vmem:[#allocation5 + $0xde0] sm:$0xff]
        %v3149 = vld [vmem:[#allocation5 + $0xde8] sm:$0xff]
        %v3150 = vld [vmem:[#allocation5 + $0xdf0] sm:$0xff]
        %v3151 = vld [vmem:[#allocation5 + $0xdf8] sm:$0xff]
        %v3152 = vld [vmem:[#allocation5 + $0xe00] sm:$0xff]
        %v3153 = vld [vmem:[#allocation5 + $0xe08] sm:$0xff]
        %v3154 = vld [vmem:[#allocation5 + $0xe10] sm:$0xff]
        %v3155 = vld [vmem:[#allocation5 + $0xe18] sm:$0xff]
        %v3156 = vld [vmem:[#allocation5 + $0xe20] sm:$0xff]
        %v3157 = vld [vmem:[#allocation5 + $0xe28] sm:$0xff]
        %v3158 = vld [vmem:[#allocation5 + $0xe30] sm:$0xff]
        %v3159 = vld [vmem:[#allocation5 + $0xe38] sm:$0xff]
        %v3160 = vld [vmem:[#allocation5 + $0xe40] sm:$0xff]
        %v3161 = vld [vmem:[#allocation5 + $0xe48] sm:$0xff]
        %v3162 = vld [vmem:[#allocation5 + $0xe50] sm:$0xff]
        %v3163 = vld [vmem:[#allocation5 + $0xe58] sm:$0xff]
        %v3164 = vld [vmem:[#allocation5 + $0xe60] sm:$0xff]
        %v3165 = vld [vmem:[#allocation5 + $0xe68] sm:$0xff]
        %v3166 = vld [vmem:[#allocation5 + $0xe70] sm:$0xff]
        %v3167 = vld [vmem:[#allocation5 + $0xe78] sm:$0xff]
        %v3168 = vld [vmem:[#allocation5 + $0xe80] sm:$0xff]
        %v3169 = vld [vmem:[#allocation5 + $0xe88] sm:$0xff]
        %v3170 = vld [vmem:[#allocation5 + $0xe90] sm:$0xff]
        %v3171 = vld [vmem:[#allocation5 + $0xe98] sm:$0xff]
        %v3172 = vld [vmem:[#allocation5 + $0xea0] sm:$0xff]
        %v3173 = vld [vmem:[#allocation5 + $0xea8] sm:$0xff]
        %v3174 = vld [vmem:[#allocation5 + $0xeb0] sm:$0xff]
        %v3175 = vld [vmem:[#allocation5 + $0xeb8] sm:$0xff]
        %v3176 = vld [vmem:[#allocation5 + $0xec0] sm:$0xff]
        %v3177 = vld [vmem:[#allocation5 + $0xec8] sm:$0xff]
        %v3178 = vld [vmem:[#allocation5 + $0xed0] sm:$0xff]
        %v3179 = vld [vmem:[#allocation5 + $0xed8] sm:$0xff]
        %v3180 = vld [vmem:[#allocation5 + $0xee0] sm:$0xff]
        %v3181 = vld [vmem:[#allocation5 + $0xee8] sm:$0xff]
        %v3182 = vld [vmem:[#allocation5 + $0xef0] sm:$0xff]
        %v3183 = vld [vmem:[#allocation5 + $0xef8] sm:$0xff]
        %v3184 = vld [vmem:[#allocation5 + $0xf00] sm:$0xff]
        %v3185 = vld [vmem:[#allocation5 + $0xf08] sm:$0xff]
        %v3186 = vld [vmem:[#allocation5 + $0xf10] sm:$0xff]
        %v3187 = vld [vmem:[#allocation5 + $0xf18] sm:$0xff]
        %v3188 = vld [vmem:[#allocation5 + $0xf20] sm:$0xff]
        %v3189 = vld [vmem:[#allocation5 + $0xf28] sm:$0xff]
        %v3190 = vld [vmem:[#allocation5 + $0xf30] sm:$0xff]
        %v3191 = vld [vmem:[#allocation5 + $0xf38] sm:$0xff]
        %v3192 = vld [vmem:[#allocation5 + $0xf40] sm:$0xff]
        %v3193 = vld [vmem:[#allocation5 + $0xf48] sm:$0xff]
        %v3194 = vld [vmem:[#allocation5 + $0xf50] sm:$0xff]
        %v3195 = vld [vmem:[#allocation5 + $0xf58] sm:$0xff]
        %v3196 = vld [vmem:[#allocation5 + $0xf60] sm:$0xff]
        %v3197 = vld [vmem:[#allocation5 + $0xf68] sm:$0xff]
        %v3198 = vld [vmem:[#allocation5 + $0xf70] sm:$0xff]
        %v3199 = vld [vmem:[#allocation5 + $0xf78] sm:$0xff]
        %v3200 = vld [vmem:[#allocation5 + $0xf80] sm:$0xff]
        %v3201 = vld [vmem:[#allocation5 + $0xf88] sm:$0xff]
        %v3202 = vld [vmem:[#allocation5 + $0xf90] sm:$0xff]
        %v3203 = vld [vmem:[#allocation5 + $0xf98] sm:$0xff]
        %v3204 = vld [vmem:[#allocation5 + $0xfa0] sm:$0xff]
        %v3205 = vld [vmem:[#allocation5 + $0xfa8] sm:$0xff]
        %v3206 = vld [vmem:[#allocation5 + $0xfb0] sm:$0xff]
        %v3207 = vld [vmem:[#allocation5 + $0xfb8] sm:$0xff]
        %v3208 = vld [vmem:[#allocation5 + $0xfc0] sm:$0xff]
        %v3209 = vld [vmem:[#allocation5 + $0xfc8] sm:$0xff]
        %v3210 = vld [vmem:[#allocation5 + $0xfd0] sm:$0xff]
        %v3211 = vld [vmem:[#allocation5 + $0xfd8] sm:$0xff]
        %v3212 = vld [vmem:[#allocation5 + $0xfe0] sm:$0xff]
        %v3213 = vld [vmem:[#allocation5 + $0xfe8] sm:$0xff]
        %v3214 = vld [vmem:[#allocation5 + $0xff0] sm:$0xff]
        %v3215 = vld [vmem:[#allocation5 + $0xff8] sm:$0xff]
        %v3217 = vshrl.u32 %v3086, 16
        %v3219 = vrot.slane %v3217, 1
        %v3220 = vshll.u32 %v3086, 16
        %v3222 = vrot.slane %v3220, 2
        %v3223 = vor.u32 %v3219, %v3222
        %v3225 = vshrl.u32 %v3087, 16
        %v3227 = vrot.slane %v3225, 1
        %v3228 = vshll.u32 %v3087, 16
        %v3230 = vrot.slane %v3228, 2
        %v3231 = vor.u32 %v3227, %v3230
        %v3362 = vunpack.c.l.b16 %v3088
        %v3363 = vunpack.c.h.b16 %v3088
        %v3364 = vunpack.c.l.b16 %v3089
        %v3365 = vunpack.c.h.b16 %v3089
        %v3366 = vunpack.c.l.b16 %v3090
        %v3367 = vunpack.c.h.b16 %v3090
        %v3368 = vunpack.c.l.b16 %v3091
        %v3369 = vunpack.c.h.b16 %v3091
        %v3370 = vunpack.c.l.b16 %v3092
        %v3371 = vunpack.c.h.b16 %v3092
        %v3372 = vunpack.c.l.b16 %v3093
        %v3373 = vunpack.c.h.b16 %v3093
        %v3374 = vunpack.c.l.b16 %v3094
        %v3375 = vunpack.c.h.b16 %v3094
        %v3376 = vunpack.c.l.b16 %v3095
        %v3377 = vunpack.c.h.b16 %v3095
        %v3378 = vunpack.c.l.b16 %v3096
        %v3379 = vunpack.c.h.b16 %v3096
        %v3380 = vunpack.c.l.b16 %v3097
        %v3381 = vunpack.c.h.b16 %v3097
        %v3382 = vunpack.c.l.b16 %v3098
        %v3383 = vunpack.c.h.b16 %v3098
        %v3384 = vunpack.c.l.b16 %v3099
        %v3385 = vunpack.c.h.b16 %v3099
        %v3386 = vunpack.c.l.b16 %v3100
        %v3387 = vunpack.c.h.b16 %v3100
        %v3388 = vunpack.c.l.b16 %v3101
        %v3389 = vunpack.c.h.b16 %v3101
        %v3390 = vunpack.c.l.b16 %v3102
        %v3391 = vunpack.c.h.b16 %v3102
        %v3392 = vunpack.c.l.b16 %v3103
        %v3393 = vunpack.c.h.b16 %v3103
        %v3394 = vunpack.c.l.b16 %v3104
        %v3395 = vunpack.c.h.b16 %v3104
        %v3396 = vunpack.c.l.b16 %v3105
        %v3397 = vunpack.c.h.b16 %v3105
        %v3398 = vunpack.c.l.b16 %v3106
        %v3399 = vunpack.c.h.b16 %v3106
        %v3400 = vunpack.c.l.b16 %v3107
        %v3401 = vunpack.c.h.b16 %v3107
        %v3402 = vunpack.c.l.b16 %v3108
        %v3403 = vunpack.c.h.b16 %v3108
        %v3404 = vunpack.c.l.b16 %v3109
        %v3405 = vunpack.c.h.b16 %v3109
        %v3406 = vunpack.c.l.b16 %v3110
        %v3407 = vunpack.c.h.b16 %v3110
        %v3408 = vunpack.c.l.b16 %v3111
        %v3409 = vunpack.c.h.b16 %v3111
        %v3410 = vunpack.c.l.b16 %v3112
        %v3411 = vunpack.c.h.b16 %v3112
        %v3412 = vunpack.c.l.b16 %v3113
        %v3413 = vunpack.c.h.b16 %v3113
        %v3414 = vunpack.c.l.b16 %v3114
        %v3415 = vunpack.c.h.b16 %v3114
        %v3416 = vunpack.c.l.b16 %v3115
        %v3417 = vunpack.c.h.b16 %v3115
        %v3418 = vunpack.c.l.b16 %v3116
        %v3419 = vunpack.c.h.b16 %v3116
        %v3420 = vunpack.c.l.b16 %v3117
        %v3421 = vunpack.c.h.b16 %v3117
        %v3422 = vunpack.c.l.b16 %v3118
        %v3423 = vunpack.c.h.b16 %v3118
        %v3424 = vunpack.c.l.b16 %v3119
        %v3425 = vunpack.c.h.b16 %v3119
        %v3426 = vunpack.c.l.b16 %v3120
        %v3427 = vunpack.c.h.b16 %v3120
        %v3428 = vunpack.c.l.b16 %v3121
        %v3429 = vunpack.c.h.b16 %v3121
        %v3430 = vunpack.c.l.b16 %v3122
        %v3431 = vunpack.c.h.b16 %v3122
        %v3432 = vunpack.c.l.b16 %v3123
        %v3433 = vunpack.c.h.b16 %v3123
        %v3434 = vunpack.c.l.b16 %v3124
        %v3435 = vunpack.c.h.b16 %v3124
        %v3436 = vunpack.c.l.b16 %v3125
        %v3437 = vunpack.c.h.b16 %v3125
        %v3438 = vunpack.c.l.b16 %v3126
        %v3439 = vunpack.c.h.b16 %v3126
        %v3440 = vunpack.c.l.b16 %v3127
        %v3441 = vunpack.c.h.b16 %v3127
        %v3442 = vunpack.c.l.b16 %v3128
        %v3443 = vunpack.c.h.b16 %v3128
        %v3444 = vunpack.c.l.b16 %v3129
        %v3445 = vunpack.c.h.b16 %v3129
        %v3446 = vunpack.c.l.b16 %v3130
        %v3447 = vunpack.c.h.b16 %v3130
        %v3448 = vunpack.c.l.b16 %v3131
        %v3449 = vunpack.c.h.b16 %v3131
        %v3450 = vunpack.c.l.b16 %v3132
        %v3451 = vunpack.c.h.b16 %v3132
        %v3452 = vunpack.c.l.b16 %v3133
        %v3453 = vunpack.c.h.b16 %v3133
        %v3454 = vunpack.c.l.b16 %v3134
        %v3455 = vunpack.c.h.b16 %v3134
        %v3456 = vunpack.c.l.b16 %v3135
        %v3457 = vunpack.c.h.b16 %v3135
        %v3458 = vunpack.c.l.b16 %v3136
        %v3459 = vunpack.c.h.b16 %v3136
        %v3460 = vunpack.c.l.b16 %v3137
        %v3461 = vunpack.c.h.b16 %v3137
        %v3462 = vunpack.c.l.b16 %v3138
        %v3463 = vunpack.c.h.b16 %v3138
        %v3464 = vunpack.c.l.b16 %v3139
        %v3465 = vunpack.c.h.b16 %v3139
        %v3466 = vunpack.c.l.b16 %v3140
        %v3467 = vunpack.c.h.b16 %v3140
        %v3468 = vunpack.c.l.b16 %v3141
        %v3469 = vunpack.c.h.b16 %v3141
        %v3470 = vunpack.c.l.b16 %v3142
        %v3471 = vunpack.c.h.b16 %v3142
        %v3472 = vunpack.c.l.b16 %v3143
        %v3473 = vunpack.c.h.b16 %v3143
        %v3474 = vunpack.c.l.b16 %v3144
        %v3475 = vunpack.c.h.b16 %v3144
        %v3476 = vunpack.c.l.b16 %v3145
        %v3477 = vunpack.c.h.b16 %v3145
        %v3478 = vunpack.c.l.b16 %v3146
        %v3479 = vunpack.c.h.b16 %v3146
        %v3480 = vunpack.c.l.b16 %v3147
        %v3481 = vunpack.c.h.b16 %v3147
        %v3482 = vunpack.c.l.b16 %v3148
        %v3483 = vunpack.c.h.b16 %v3148
        %v3484 = vunpack.c.l.b16 %v3149
        %v3485 = vunpack.c.h.b16 %v3149
        %v3486 = vunpack.c.l.b16 %v3150
        %v3487 = vunpack.c.h.b16 %v3150
        %v3488 = vunpack.c.l.b16 %v3151
        %v3489 = vunpack.c.h.b16 %v3151
        %v3490 = vunpack.c.l.b16 %v3152
        %v3491 = vunpack.c.h.b16 %v3152
        %v3492 = vunpack.c.l.b16 %v3153
        %v3493 = vunpack.c.h.b16 %v3153
        %v3494 = vunpack.c.l.b16 %v3154
        %v3495 = vunpack.c.h.b16 %v3154
        %v3496 = vunpack.c.l.b16 %v3155
        %v3497 = vunpack.c.h.b16 %v3155
        %v3498 = vunpack.c.l.b16 %v3156
        %v3499 = vunpack.c.h.b16 %v3156
        %v3500 = vunpack.c.l.b16 %v3157
        %v3501 = vunpack.c.h.b16 %v3157
        %v3502 = vunpack.c.l.b16 %v3158
        %v3503 = vunpack.c.h.b16 %v3158
        %v3504 = vunpack.c.l.b16 %v3159
        %v3505 = vunpack.c.h.b16 %v3159
        %v3506 = vunpack.c.l.b16 %v3160
        %v3507 = vunpack.c.h.b16 %v3160
        %v3508 = vunpack.c.l.b16 %v3161
        %v3509 = vunpack.c.h.b16 %v3161
        %v3510 = vunpack.c.l.b16 %v3162
        %v3511 = vunpack.c.h.b16 %v3162
        %v3512 = vunpack.c.l.b16 %v3163
        %v3513 = vunpack.c.h.b16 %v3163
        %v3514 = vunpack.c.l.b16 %v3164
        %v3515 = vunpack.c.h.b16 %v3164
        %v3516 = vunpack.c.l.b16 %v3165
        %v3517 = vunpack.c.h.b16 %v3165
        %v3518 = vunpack.c.l.b16 %v3166
        %v3519 = vunpack.c.h.b16 %v3166
        %v3520 = vunpack.c.l.b16 %v3167
        %v3521 = vunpack.c.h.b16 %v3167
        %v3522 = vunpack.c.l.b16 %v3168
        %v3523 = vunpack.c.h.b16 %v3168
        %v3524 = vunpack.c.l.b16 %v3169
        %v3525 = vunpack.c.h.b16 %v3169
        %v3526 = vunpack.c.l.b16 %v3170
        %v3527 = vunpack.c.h.b16 %v3170
        %v3528 = vunpack.c.l.b16 %v3171
        %v3529 = vunpack.c.h.b16 %v3171
        %v3530 = vunpack.c.l.b16 %v3172
        %v3531 = vunpack.c.h.b16 %v3172
        %v3532 = vunpack.c.l.b16 %v3173
        %v3533 = vunpack.c.h.b16 %v3173
        %v3534 = vunpack.c.l.b16 %v3174
        %v3535 = vunpack.c.h.b16 %v3174
        %v3536 = vunpack.c.l.b16 %v3175
        %v3537 = vunpack.c.h.b16 %v3175
        %v3538 = vunpack.c.l.b16 %v3176
        %v3539 = vunpack.c.h.b16 %v3176
        %v3540 = vunpack.c.l.b16 %v3177
        %v3541 = vunpack.c.h.b16 %v3177
        %v3542 = vunpack.c.l.b16 %v3178
        %v3543 = vunpack.c.h.b16 %v3178
        %v3544 = vunpack.c.l.b16 %v3179
        %v3545 = vunpack.c.h.b16 %v3179
        %v3546 = vunpack.c.l.b16 %v3180
        %v3547 = vunpack.c.h.b16 %v3180
        %v3548 = vunpack.c.l.b16 %v3181
        %v3549 = vunpack.c.h.b16 %v3181
        %v3550 = vunpack.c.l.b16 %v3182
        %v3551 = vunpack.c.h.b16 %v3182
        %v3552 = vunpack.c.l.b16 %v3183
        %v3553 = vunpack.c.h.b16 %v3183
        %v3554 = vunpack.c.l.b16 %v3184
        %v3555 = vunpack.c.h.b16 %v3184
        %v3556 = vunpack.c.l.b16 %v3185
        %v3557 = vunpack.c.h.b16 %v3185
        %v3558 = vunpack.c.l.b16 %v3186
        %v3559 = vunpack.c.h.b16 %v3186
        %v3560 = vunpack.c.l.b16 %v3187
        %v3561 = vunpack.c.h.b16 %v3187
        %v3562 = vunpack.c.l.b16 %v3188
        %v3563 = vunpack.c.h.b16 %v3188
        %v3564 = vunpack.c.l.b16 %v3189
        %v3565 = vunpack.c.h.b16 %v3189
        %v3566 = vunpack.c.l.b16 %v3190
        %v3567 = vunpack.c.h.b16 %v3190
        %v3568 = vunpack.c.l.b16 %v3191
        %v3569 = vunpack.c.h.b16 %v3191
        %v3570 = vunpack.c.l.b16 %v3192
        %v3571 = vunpack.c.h.b16 %v3192
        %v3572 = vunpack.c.l.b16 %v3193
        %v3573 = vunpack.c.h.b16 %v3193
        %v3574 = vunpack.c.l.b16 %v3194
        %v3575 = vunpack.c.h.b16 %v3194
        %v3576 = vunpack.c.l.b16 %v3195
        %v3577 = vunpack.c.h.b16 %v3195
        %v3578 = vunpack.c.l.b16 %v3196
        %v3579 = vunpack.c.h.b16 %v3196
        %v3580 = vunpack.c.l.b16 %v3197
        %v3581 = vunpack.c.h.b16 %v3197
        %v3582 = vunpack.c.l.b16 %v3198
        %v3583 = vunpack.c.h.b16 %v3198
        %v3584 = vunpack.c.l.b16 %v3199
        %v3585 = vunpack.c.h.b16 %v3199
        %v3586 = vunpack.c.l.b16 %v3200
        %v3587 = vunpack.c.h.b16 %v3200
        %v3588 = vunpack.c.l.b16 %v3201
        %v3589 = vunpack.c.h.b16 %v3201
        %v3590 = vunpack.c.l.b16 %v3202
        %v3591 = vunpack.c.h.b16 %v3202
        %v3592 = vunpack.c.l.b16 %v3203
        %v3593 = vunpack.c.h.b16 %v3203
        %v3594 = vunpack.c.l.b16 %v3204
        %v3595 = vunpack.c.h.b16 %v3204
        %v3596 = vunpack.c.l.b16 %v3205
        %v3597 = vunpack.c.h.b16 %v3205
        %v3598 = vunpack.c.l.b16 %v3206
        %v3599 = vunpack.c.h.b16 %v3206
        %v3600 = vunpack.c.l.b16 %v3207
        %v3601 = vunpack.c.h.b16 %v3207
        %v3602 = vunpack.c.l.b16 %v3208
        %v3603 = vunpack.c.h.b16 %v3208
        %v3604 = vunpack.c.l.b16 %v3209
        %v3605 = vunpack.c.h.b16 %v3209
        %v3606 = vunpack.c.l.b16 %v3210
        %v3607 = vunpack.c.h.b16 %v3210
        %v3608 = vunpack.c.l.b16 %v3211
        %v3609 = vunpack.c.h.b16 %v3211
        %v3610 = vunpack.c.l.b16 %v3212
        %v3611 = vunpack.c.h.b16 %v3212
        %v3612 = vunpack.c.l.b16 %v3213
        %v3613 = vunpack.c.h.b16 %v3213
        %v3614 = vunpack.c.l.b16 %v3214
        %v3615 = vunpack.c.h.b16 %v3214
        %v3616 = vunpack.c.l.b16 %v3215
        %v3617 = vunpack.c.h.b16 %v3215
        %v3618 = vpack.c.b16 %v3370, %v3362
        %v3619 = vpack.c.b16 %v3371, %v3363
        %v3620 = vpack.c.b16 %v3372, %v3364
        %v3621 = vpack.c.b16 %v3373, %v3365
        %v3622 = vpack.c.b16 %v3374, %v3366
        %v3623 = vpack.c.b16 %v3375, %v3367
        %v3624 = vpack.c.b16 %v3376, %v3368
        %v3625 = vpack.c.b16 %v3377, %v3369
        %v3626 = vpack.c.b16 %v3386, %v3378
        %v3627 = vpack.c.b16 %v3387, %v3379
        %v3628 = vpack.c.b16 %v3388, %v3380
        %v3629 = vpack.c.b16 %v3389, %v3381
        %v3630 = vpack.c.b16 %v3390, %v3382
        %v3631 = vpack.c.b16 %v3391, %v3383
        %v3632 = vpack.c.b16 %v3392, %v3384
        %v3633 = vpack.c.b16 %v3393, %v3385
        %v3634 = vpack.c.b16 %v3402, %v3394
        %v3635 = vpack.c.b16 %v3403, %v3395
        %v3636 = vpack.c.b16 %v3404, %v3396
        %v3637 = vpack.c.b16 %v3405, %v3397
        %v3638 = vpack.c.b16 %v3406, %v3398
        %v3639 = vpack.c.b16 %v3407, %v3399
        %v3640 = vpack.c.b16 %v3408, %v3400
        %v3641 = vpack.c.b16 %v3409, %v3401
        %v3642 = vpack.c.b16 %v3418, %v3410
        %v3643 = vpack.c.b16 %v3419, %v3411
        %v3644 = vpack.c.b16 %v3420, %v3412
        %v3645 = vpack.c.b16 %v3421, %v3413
        %v3646 = vpack.c.b16 %v3422, %v3414
        %v3647 = vpack.c.b16 %v3423, %v3415
        %v3648 = vpack.c.b16 %v3424, %v3416
        %v3649 = vpack.c.b16 %v3425, %v3417
        %v3650 = vpack.c.b16 %v3434, %v3426
        %v3651 = vpack.c.b16 %v3435, %v3427
        %v3652 = vpack.c.b16 %v3436, %v3428
        %v3653 = vpack.c.b16 %v3437, %v3429
        %v3654 = vpack.c.b16 %v3438, %v3430
        %v3655 = vpack.c.b16 %v3439, %v3431
        %v3656 = vpack.c.b16 %v3440, %v3432
        %v3657 = vpack.c.b16 %v3441, %v3433
        %v3658 = vpack.c.b16 %v3450, %v3442
        %v3659 = vpack.c.b16 %v3451, %v3443
        %v3660 = vpack.c.b16 %v3452, %v3444
        %v3661 = vpack.c.b16 %v3453, %v3445
        %v3662 = vpack.c.b16 %v3454, %v3446
        %v3663 = vpack.c.b16 %v3455, %v3447
        %v3664 = vpack.c.b16 %v3456, %v3448
        %v3665 = vpack.c.b16 %v3457, %v3449
        %v3666 = vpack.c.b16 %v3466, %v3458
        %v3667 = vpack.c.b16 %v3467, %v3459
        %v3668 = vpack.c.b16 %v3468, %v3460
        %v3669 = vpack.c.b16 %v3469, %v3461
        %v3670 = vpack.c.b16 %v3470, %v3462
        %v3671 = vpack.c.b16 %v3471, %v3463
        %v3672 = vpack.c.b16 %v3472, %v3464
        %v3673 = vpack.c.b16 %v3473, %v3465
        %v3674 = vpack.c.b16 %v3482, %v3474
        %v3675 = vpack.c.b16 %v3483, %v3475
        %v3676 = vpack.c.b16 %v3484, %v3476
        %v3677 = vpack.c.b16 %v3485, %v3477
        %v3678 = vpack.c.b16 %v3486, %v3478
        %v3679 = vpack.c.b16 %v3487, %v3479
        %v3680 = vpack.c.b16 %v3488, %v3480
        %v3681 = vpack.c.b16 %v3489, %v3481
        %v3682 = vpack.c.b16 %v3498, %v3490
        %v3683 = vpack.c.b16 %v3499, %v3491
        %v3684 = vpack.c.b16 %v3500, %v3492
        %v3685 = vpack.c.b16 %v3501, %v3493
        %v3686 = vpack.c.b16 %v3502, %v3494
        %v3687 = vpack.c.b16 %v3503, %v3495
        %v3688 = vpack.c.b16 %v3504, %v3496
        %v3689 = vpack.c.b16 %v3505, %v3497
        %v3690 = vpack.c.b16 %v3514, %v3506
        %v3691 = vpack.c.b16 %v3515, %v3507
        %v3692 = vpack.c.b16 %v3516, %v3508
        %v3693 = vpack.c.b16 %v3517, %v3509
        %v3694 = vpack.c.b16 %v3518, %v3510
        %v3695 = vpack.c.b16 %v3519, %v3511
        %v3696 = vpack.c.b16 %v3520, %v3512
        %v3697 = vpack.c.b16 %v3521, %v3513
        %v3698 = vpack.c.b16 %v3530, %v3522
        %v3699 = vpack.c.b16 %v3531, %v3523
        %v3700 = vpack.c.b16 %v3532, %v3524
        %v3701 = vpack.c.b16 %v3533, %v3525
        %v3702 = vpack.c.b16 %v3534, %v3526
        %v3703 = vpack.c.b16 %v3535, %v3527
        %v3704 = vpack.c.b16 %v3536, %v3528
        %v3705 = vpack.c.b16 %v3537, %v3529
        %v3706 = vpack.c.b16 %v3546, %v3538
        %v3707 = vpack.c.b16 %v3547, %v3539
        %v3708 = vpack.c.b16 %v3548, %v3540
        %v3709 = vpack.c.b16 %v3549, %v3541
        %v3710 = vpack.c.b16 %v3550, %v3542
        %v3711 = vpack.c.b16 %v3551, %v3543
        %v3712 = vpack.c.b16 %v3552, %v3544
        %v3713 = vpack.c.b16 %v3553, %v3545
        %v3714 = vpack.c.b16 %v3562, %v3554
        %v3715 = vpack.c.b16 %v3563, %v3555
        %v3716 = vpack.c.b16 %v3564, %v3556
        %v3717 = vpack.c.b16 %v3565, %v3557
        %v3718 = vpack.c.b16 %v3566, %v3558
        %v3719 = vpack.c.b16 %v3567, %v3559
        %v3720 = vpack.c.b16 %v3568, %v3560
        %v3721 = vpack.c.b16 %v3569, %v3561
        %v3722 = vpack.c.b16 %v3578, %v3570
        %v3723 = vpack.c.b16 %v3579, %v3571
        %v3724 = vpack.c.b16 %v3580, %v3572
        %v3725 = vpack.c.b16 %v3581, %v3573
        %v3726 = vpack.c.b16 %v3582, %v3574
        %v3727 = vpack.c.b16 %v3583, %v3575
        %v3728 = vpack.c.b16 %v3584, %v3576
        %v3729 = vpack.c.b16 %v3585, %v3577
        %v3730 = vpack.c.b16 %v3594, %v3586
        %v3731 = vpack.c.b16 %v3595, %v3587
        %v3732 = vpack.c.b16 %v3596, %v3588
        %v3733 = vpack.c.b16 %v3597, %v3589
        %v3734 = vpack.c.b16 %v3598, %v3590
        %v3735 = vpack.c.b16 %v3599, %v3591
        %v3736 = vpack.c.b16 %v3600, %v3592
        %v3737 = vpack.c.b16 %v3601, %v3593
        %v3738 = vpack.c.b16 %v3610, %v3602
        %v3739 = vpack.c.b16 %v3611, %v3603
        %v3740 = vpack.c.b16 %v3612, %v3604
        %v3741 = vpack.c.b16 %v3613, %v3605
        %v3742 = vpack.c.b16 %v3614, %v3606
        %v3743 = vpack.c.b16 %v3615, %v3607
        %v3744 = vpack.c.b16 %v3616, %v3608
        %v3745 = vpack.c.b16 %v3617, %v3609
        %3874 = vmatprep.subr.bf16.mxu0 %v3619
        %3875 = vmatpush1.bf16.msra.mxu0 %v3618
        %3876 = vmatprep.subr.bf16.mxu0 %v3627
        %3877 = vmatpush1.bf16.msra.mxu0 %v3626
        %3878 = vmatprep.subr.bf16.mxu0 %v3635
        %3879 = vmatpush1.bf16.msra.mxu0 %v3634
        %3880 = vmatprep.subr.bf16.mxu0 %v3643
        %3881 = vmatpush1.bf16.msra.mxu0 %v3642
        %3882 = vmatprep.subr.bf16.mxu0 %v3651
        %3883 = vmatpush1.bf16.msra.mxu0 %v3650
        %3884 = vmatprep.subr.bf16.mxu0 %v3659
        %3885 = vmatpush1.bf16.msra.mxu0 %v3658
        %3886 = vmatprep.subr.bf16.mxu0 %v3667
        %3887 = vmatpush1.bf16.msra.mxu0 %v3666
        %3888 = vmatprep.subr.bf16.mxu0 %v3675
        %3889 = vmatpush1.bf16.msra.mxu0 %v3674
        %3890 = vmatprep.subr.bf16.mxu0 %v3683
        %3891 = vmatpush1.bf16.msra.mxu0 %v3682
        %3892 = vmatprep.subr.bf16.mxu0 %v3691
        %3893 = vmatpush1.bf16.msra.mxu0 %v3690
        %3894 = vmatprep.subr.bf16.mxu0 %v3699
        %3895 = vmatpush1.bf16.msra.mxu0 %v3698
        %3896 = vmatprep.subr.bf16.mxu0 %v3707
        %3897 = vmatpush1.bf16.msra.mxu0 %v3706
        %3898 = vmatprep.subr.bf16.mxu0 %v3715
        %3899 = vmatpush1.bf16.msra.mxu0 %v3714
        %3900 = vmatprep.subr.bf16.mxu0 %v3723
        %3901 = vmatpush1.bf16.msra.mxu0 %v3722
        %3902 = vmatprep.subr.bf16.mxu0 %v3731
        %3903 = vmatpush1.bf16.msra.mxu0 %v3730
        %3904 = vmatprep.subr.bf16.mxu0 %v3739
        %3905 = vmatpush1.bf16.msra.mxu0 %v3738
        %3906 = vmatprep.mubr.bf16.mxu0 %v3231
        %3907 = vmatmul.mubr.bf16.gmra.mrb[0].mxu0 %v3223
        %v3908 = vpop.f32.mrb[0].mxu0
        %v3909 = vadd.f32 0.0, %v3908
        %v3910 = vpop.f32.mrb[0].mxu0
        %v3911 = vadd.f32 0.0, %v3910
        %v3912 = vpop.f32.mrb[0].mxu0
        %v3913 = vpop.f32.mrb[0].mxu0
        %3914 = vdwg.mxu0
        %3915 = vmatprep.subr.bf16.mxu0 %v3621
        %3916 = vmatpush1.bf16.msra.mxu0 %v3620
        %3917 = vmatprep.subr.bf16.mxu0 %v3629
        %3918 = vmatpush1.bf16.msra.mxu0 %v3628
        %3919 = vmatprep.subr.bf16.mxu0 %v3637
        %3920 = vmatpush1.bf16.msra.mxu0 %v3636
        %3921 = vmatprep.subr.bf16.mxu0 %v3645
        %3922 = vmatpush1.bf16.msra.mxu0 %v3644
        %3923 = vmatprep.subr.bf16.mxu0 %v3653
        %3924 = vmatpush1.bf16.msra.mxu0 %v3652
        %3925 = vmatprep.subr.bf16.mxu0 %v3661
        %3926 = vmatpush1.bf16.msra.mxu0 %v3660
        %3927 = vmatprep.subr.bf16.mxu0 %v3669
        %3928 = vmatpush1.bf16.msra.mxu0 %v3668
        %3929 = vmatprep.subr.bf16.mxu0 %v3677
        %3930 = vmatpush1.bf16.msra.mxu0 %v3676
        %3931 = vmatprep.subr.bf16.mxu0 %v3685
        %3932 = vmatpush1.bf16.msra.mxu0 %v3684
        %3933 = vmatprep.subr.bf16.mxu0 %v3693
        %3934 = vmatpush1.bf16.msra.mxu0 %v3692
        %3935 = vmatprep.subr.bf16.mxu0 %v3701
        %3936 = vmatpush1.bf16.msra.mxu0 %v3700
        %3937 = vmatprep.subr.bf16.mxu0 %v3709
        %3938 = vmatpush1.bf16.msra.mxu0 %v3708
        %3939 = vmatprep.subr.bf16.mxu0 %v3717
        %3940 = vmatpush1.bf16.msra.mxu0 %v3716
        %3941 = vmatprep.subr.bf16.mxu0 %v3725
        %3942 = vmatpush1.bf16.msra.mxu0 %v3724
        %3943 = vmatprep.subr.bf16.mxu0 %v3733
        %3944 = vmatpush1.bf16.msra.mxu0 %v3732
        %3945 = vmatprep.subr.bf16.mxu0 %v3741
        %3946 = vmatpush1.bf16.msra.mxu0 %v3740
        %3947 = vmatprep.mubr.bf16.mxu0 %v3231
        %3948 = vmatmul.mubr.bf16.gmra.mrb[0].mxu0 %v3223
        %v3949 = vpop.f32.mrb[0].mxu0
        %v3950 = vadd.f32 0.0, %v3949
        %v3951 = vpop.f32.mrb[0].mxu0
        %v3952 = vadd.f32 0.0, %v3951
        %v3953 = vpop.f32.mrb[0].mxu0
        %v3954 = vpop.f32.mrb[0].mxu0
        %3955 = vdwg.mxu0
        %3956 = vmatprep.subr.bf16.mxu0 %v3623
        %3957 = vmatpush1.bf16.msra.mxu0 %v3622
        %3958 = vmatprep.subr.bf16.mxu0 %v3631
        %3959 = vmatpush1.bf16.msra.mxu0 %v3630
        %3960 = vmatprep.subr.bf16.mxu0 %v3639
        %3961 = vmatpush1.bf16.msra.mxu0 %v3638
        %3962 = vmatprep.subr.bf16.mxu0 %v3647
        %3963 = vmatpush1.bf16.msra.mxu0 %v3646
        %3964 = vmatprep.subr.bf16.mxu0 %v3655
        %3965 = vmatpush1.bf16.msra.mxu0 %v3654
        %3966 = vmatprep.subr.bf16.mxu0 %v3663
        %3967 = vmatpush1.bf16.msra.mxu0 %v3662
        %3968 = vmatprep.subr.bf16.mxu0 %v3671
        %3969 = vmatpush1.bf16.msra.mxu0 %v3670
        %3970 = vmatprep.subr.bf16.mxu0 %v3679
        %3971 = vmatpush1.bf16.msra.mxu0 %v3678
        %3972 = vmatprep.subr.bf16.mxu0 %v3687
        %3973 = vmatpush1.bf16.msra.mxu0 %v3686
        %3974 = vmatprep.subr.bf16.mxu0 %v3695
        %3975 = vmatpush1.bf16.msra.mxu0 %v3694
        %3976 = vmatprep.subr.bf16.mxu0 %v3703
        %3977 = vmatpush1.bf16.msra.mxu0 %v3702
        %3978 = vmatprep.subr.bf16.mxu0 %v3711
        %3979 = vmatpush1.bf16.msra.mxu0 %v3710
        %3980 = vmatprep.subr.bf16.mxu0 %v3719
        %3981 = vmatpush1.bf16.msra.mxu0 %v3718
        %3982 = vmatprep.subr.bf16.mxu0 %v3727
        %3983 = vmatpush1.bf16.msra.mxu0 %v3726
        %3984 = vmatprep.subr.bf16.mxu0 %v3735
        %3985 = vmatpush1.bf16.msra.mxu0 %v3734
        %3986 = vmatprep.subr.bf16.mxu0 %v3743
        %3987 = vmatpush1.bf16.msra.mxu0 %v3742
        %3988 = vmatprep.mubr.bf16.mxu0 %v3231
        %3989 = vmatmul.mubr.bf16.gmra.mrb[0].mxu0 %v3223
        %v3990 = vpop.f32.mrb[0].mxu0
        %v3991 = vadd.f32 0.0, %v3990
        %v3992 = vpop.f32.mrb[0].mxu0
        %v3993 = vadd.f32 0.0, %v3992
        %v3994 = vpop.f32.mrb[0].mxu0
        %v3995 = vpop.f32.mrb[0].mxu0
        %3996 = vdwg.mxu0
        %3997 = vmatprep.subr.bf16.mxu0 %v3625
        %3998 = vmatpush1.bf16.msra.mxu0 %v3624
        %3999 = vmatprep.subr.bf16.mxu0 %v3633
        %4000 = vmatpush1.bf16.msra.mxu0 %v3632
        %4001 = vmatprep.subr.bf16.mxu0 %v3641
        %4002 = vmatpush1.bf16.msra.mxu0 %v3640
        %4003 = vmatprep.subr.bf16.mxu0 %v3649
        %4004 = vmatpush1.bf16.msra.mxu0 %v3648
        %4005 = vmatprep.subr.bf16.mxu0 %v3657
        %4006 = vmatpush1.bf16.msra.mxu0 %v3656
        %4007 = vmatprep.subr.bf16.mxu0 %v3665
        %4008 = vmatpush1.bf16.msra.mxu0 %v3664
        %4009 = vmatprep.subr.bf16.mxu0 %v3673
        %4010 = vmatpush1.bf16.msra.mxu0 %v3672
        %4011 = vmatprep.subr.bf16.mxu0 %v3681
        %4012 = vmatpush1.bf16.msra.mxu0 %v3680
        %4013 = vmatprep.subr.bf16.mxu0 %v3689
        %4014 = vmatpush1.bf16.msra.mxu0 %v3688
        %4015 = vmatprep.subr.bf16.mxu0 %v3697
        %4016 = vmatpush1.bf16.msra.mxu0 %v3696
        %4017 = vmatprep.subr.bf16.mxu0 %v3705
        %4018 = vmatpush1.bf16.msra.mxu0 %v3704
        %4019 = vmatprep.subr.bf16.mxu0 %v3713
        %4020 = vmatpush1.bf16.msra.mxu0 %v3712
        %4021 = vmatprep.subr.bf16.mxu0 %v3721
        %4022 = vmatpush1.bf16.msra.mxu0 %v3720
        %4023 = vmatprep.subr.bf16.mxu0 %v3729
        %4024 = vmatpush1.bf16.msra.mxu0 %v3728
        %4025 = vmatprep.subr.bf16.mxu0 %v3737
        %4026 = vmatpush1.bf16.msra.mxu0 %v3736
        %4027 = vmatprep.subr.bf16.mxu0 %v3745
        %4028 = vmatpush1.bf16.msra.mxu0 %v3744
        %4029 = vmatprep.mubr.bf16.mxu0 %v3231
        %4030 = vmatmul.mubr.bf16.gmra.mrb[0].mxu0 %v3223
        %v4031 = vpop.f32.mrb[0].mxu0
        %v4032 = vadd.f32 0.0, %v4031
        %v4033 = vpop.f32.mrb[0].mxu0
        %v4034 = vadd.f32 0.0, %v4033
        %v4035 = vpop.f32.mrb[0].mxu0
        %v4036 = vpop.f32.mrb[0].mxu0
        %4037 = vdwg.mxu0
        %v4038 = vadd.f32 %v3074, %v3909
        %v4039 = vadd.f32 %v3075, %v3911
        %v4040 = vadd.f32 %v3076, %v3950
        %v4041 = vadd.f32 %v3077, %v3952
        %v4042 = vadd.f32 %v3078, %v3991
        %v4043 = vadd.f32 %v3079, %v3993
        %v4044 = vadd.f32 %v3080, %v4032
        %v4045 = vadd.f32 %v3081, %v4034
        %v4046 = vmul.f32 %v4038, %v4038
        %v4047 = vmul.f32 %v4039, %v4039
        %v4048 = vmul.f32 %v4040, %v4040
        %v4049 = vmul.f32 %v4041, %v4041
        %v4050 = vmul.f32 %v4042, %v4042
        %v4051 = vmul.f32 %v4043, %v4043
        %v4052 = vmul.f32 %v4044, %v4044
        %v4053 = vmul.f32 %v4045, %v4045
        %v4054 = vadd.f32 %v4046, %v4050
        %v4055 = vadd.f32 %v4047, %v4051
        %v4056 = vadd.f32 %v4048, %v4052
        %v4057 = vadd.f32 %v4049, %v4053
        %v4058 = vpack.c.bf16 %v4054, %v4054
        %v4059 = vpack.c.bf16 %v4055, %v4055
        %v4060 = vpack.c.bf16 %v4056, %v4056
        %v4061 = vpack.c.bf16 %v4057, %v4057
        %v4062 = vld [vmem:[#allocation7] sm:$0xf]
        %v4063 = vld [vmem:[#allocation7 + $0x4] sm:$0xf]
        %v4064 = vld [vmem:[#allocation7 + $0x8] sm:$0xf]
        %v4065 = vld [vmem:[#allocation7 + $0xc] sm:$0xf]
        %v4066 = vld [vmem:[#allocation7 + $0x10] sm:$0xf]
        %v4067 = vld [vmem:[#allocation7 + $0x14] sm:$0xf]
        %v4068 = vld [vmem:[#allocation7 + $0x18] sm:$0xf]
        %v4069 = vld [vmem:[#allocation7 + $0x1c] sm:$0xf]
        %v4070 = vld [vmem:[#allocation7 + $0x20] sm:$0xf]
        %v4071 = vld [vmem:[#allocation7 + $0x24] sm:$0xf]
        %v4072 = vld [vmem:[#allocation7 + $0x28] sm:$0xf]
        %v4073 = vld [vmem:[#allocation7 + $0x2c] sm:$0xf]
        %v4074 = vld [vmem:[#allocation7 + $0x30] sm:$0xf]
        %v4075 = vld [vmem:[#allocation7 + $0x34] sm:$0xf]
        %v4076 = vld [vmem:[#allocation7 + $0x38] sm:$0xf]
        %v4077 = vld [vmem:[#allocation7 + $0x3c] sm:$0xf]
        %v4078 = vld [vmem:[#allocation7 + $0x40] sm:$0xf]
        %v4079 = vld [vmem:[#allocation7 + $0x44] sm:$0xf]
        %v4080 = vld [vmem:[#allocation7 + $0x48] sm:$0xf]
        %v4081 = vld [vmem:[#allocation7 + $0x4c] sm:$0xf]
        %v4082 = vld [vmem:[#allocation7 + $0x50] sm:$0xf]
        %v4083 = vld [vmem:[#allocation7 + $0x54] sm:$0xf]
        %v4084 = vld [vmem:[#allocation7 + $0x58] sm:$0xf]
        %v4085 = vld [vmem:[#allocation7 + $0x5c] sm:$0xf]
        %v4086 = vld [vmem:[#allocation7 + $0x60] sm:$0xf]
        %v4087 = vld [vmem:[#allocation7 + $0x64] sm:$0xf]
        %v4088 = vld [vmem:[#allocation7 + $0x68] sm:$0xf]
        %v4089 = vld [vmem:[#allocation7 + $0x6c] sm:$0xf]
        %v4090 = vld [vmem:[#allocation7 + $0x70] sm:$0xf]
        %v4091 = vld [vmem:[#allocation7 + $0x74] sm:$0xf]
        %v4092 = vld [vmem:[#allocation7 + $0x78] sm:$0xf]
        %v4093 = vld [vmem:[#allocation7 + $0x7c] sm:$0xf]
        %v4094 = vld [vmem:[#allocation7 + $0x80] sm:$0xf]
        %v4095 = vld [vmem:[#allocation7 + $0x84] sm:$0xf]
        %v4096 = vld [vmem:[#allocation7 + $0x88] sm:$0xf]
        %v4097 = vld [vmem:[#allocation7 + $0x8c] sm:$0xf]
        %v4098 = vld [vmem:[#allocation7 + $0x90] sm:$0xf]
        %v4099 = vld [vmem:[#allocation7 + $0x94] sm:$0xf]
        %v4100 = vld [vmem:[#allocation7 + $0x98] sm:$0xf]
        %v4101 = vld [vmem:[#allocation7 + $0x9c] sm:$0xf]
        %v4102 = vld [vmem:[#allocation7 + $0xa0] sm:$0xf]
        %v4103 = vld [vmem:[#allocation7 + $0xa4] sm:$0xf]
        %v4104 = vld [vmem:[#allocation7 + $0xa8] sm:$0xf]
        %v4105 = vld [vmem:[#allocation7 + $0xac] sm:$0xf]
        %v4106 = vld [vmem:[#allocation7 + $0xb0] sm:$0xf]
        %v4107 = vld [vmem:[#allocation7 + $0xb4] sm:$0xf]
        %v4108 = vld [vmem:[#allocation7 + $0xb8] sm:$0xf]
        %v4109 = vld [vmem:[#allocation7 + $0xbc] sm:$0xf]
        %v4110 = vld [vmem:[#allocation7 + $0xc0] sm:$0xf]
        %v4111 = vld [vmem:[#allocation7 + $0xc4] sm:$0xf]
        %v4112 = vld [vmem:[#allocation7 + $0xc8] sm:$0xf]
        %v4113 = vld [vmem:[#allocation7 + $0xcc] sm:$0xf]
        %v4114 = vld [vmem:[#allocation7 + $0xd0] sm:$0xf]
        %v4115 = vld [vmem:[#allocation7 + $0xd4] sm:$0xf]
        %v4116 = vld [vmem:[#allocation7 + $0xd8] sm:$0xf]
        %v4117 = vld [vmem:[#allocation7 + $0xdc] sm:$0xf]
        %v4118 = vld [vmem:[#allocation7 + $0xe0] sm:$0xf]
        %v4119 = vld [vmem:[#allocation7 + $0xe4] sm:$0xf]
        %v4120 = vld [vmem:[#allocation7 + $0xe8] sm:$0xf]
        %v4121 = vld [vmem:[#allocation7 + $0xec] sm:$0xf]
        %v4122 = vld [vmem:[#allocation7 + $0xf0] sm:$0xf]
        %v4123 = vld [vmem:[#allocation7 + $0xf4] sm:$0xf]
        %v4124 = vld [vmem:[#allocation7 + $0xf8] sm:$0xf]
        %v4125 = vld [vmem:[#allocation7 + $0xfc] sm:$0xf]
        %v4190 = vunpack.c.l.b16 %v4062
        %v4191 = vunpack.c.l.b16 %v4063
        %v4192 = vunpack.c.l.b16 %v4064
        %v4193 = vunpack.c.l.b16 %v4065
        %v4194 = vunpack.c.l.b16 %v4066
        %v4195 = vunpack.c.l.b16 %v4067
        %v4196 = vunpack.c.l.b16 %v4068
        %v4197 = vunpack.c.l.b16 %v4069
        %v4198 = vunpack.c.l.b16 %v4070
        %v4199 = vunpack.c.l.b16 %v4071
        %v4200 = vunpack.c.l.b16 %v4072
        %v4201 = vunpack.c.l.b16 %v4073
        %v4202 = vunpack.c.l.b16 %v4074
        %v4203 = vunpack.c.l.b16 %v4075
        %v4204 = vunpack.c.l.b16 %v4076
        %v4205 = vunpack.c.l.b16 %v4077
        %v4206 = vunpack.c.l.b16 %v4078
        %v4207 = vunpack.c.l.b16 %v4079
        %v4208 = vunpack.c.l.b16 %v4080
        %v4209 = vunpack.c.l.b16 %v4081
        %v4210 = vunpack.c.l.b16 %v4082
        %v4211 = vunpack.c.l.b16 %v4083
        %v4212 = vunpack.c.l.b16 %v4084
        %v4213 = vunpack.c.l.b16 %v4085
        %v4214 = vunpack.c.l.b16 %v4086
        %v4215 = vunpack.c.l.b16 %v4087
        %v4216 = vunpack.c.l.b16 %v4088
        %v4217 = vunpack.c.l.b16 %v4089
        %v4218 = vunpack.c.l.b16 %v4090
        %v4219 = vunpack.c.l.b16 %v4091
        %v4220 = vunpack.c.l.b16 %v4092
        %v4221 = vunpack.c.l.b16 %v4093
        %v4222 = vunpack.c.l.b16 %v4094
        %v4223 = vunpack.c.l.b16 %v4095
        %v4224 = vunpack.c.l.b16 %v4096
        %v4225 = vunpack.c.l.b16 %v4097
        %v4226 = vunpack.c.l.b16 %v4098
        %v4227 = vunpack.c.l.b16 %v4099
        %v4228 = vunpack.c.l.b16 %v4100
        %v4229 = vunpack.c.l.b16 %v4101
        %v4230 = vunpack.c.l.b16 %v4102
        %v4231 = vunpack.c.l.b16 %v4103
        %v4232 = vunpack.c.l.b16 %v4104
        %v4233 = vunpack.c.l.b16 %v4105
        %v4234 = vunpack.c.l.b16 %v4106
        %v4235 = vunpack.c.l.b16 %v4107
        %v4236 = vunpack.c.l.b16 %v4108
        %v4237 = vunpack.c.l.b16 %v4109
        %v4238 = vunpack.c.l.b16 %v4110
        %v4239 = vunpack.c.l.b16 %v4111
        %v4240 = vunpack.c.l.b16 %v4112
        %v4241 = vunpack.c.l.b16 %v4113
        %v4242 = vunpack.c.l.b16 %v4114
        %v4243 = vunpack.c.l.b16 %v4115
        %v4244 = vunpack.c.l.b16 %v4116
        %v4245 = vunpack.c.l.b16 %v4117
        %v4246 = vunpack.c.l.b16 %v4118
        %v4247 = vunpack.c.l.b16 %v4119
        %v4248 = vunpack.c.l.b16 %v4120
        %v4249 = vunpack.c.l.b16 %v4121
        %v4250 = vunpack.c.l.b16 %v4122
        %v4251 = vunpack.c.l.b16 %v4123
        %v4252 = vunpack.c.l.b16 %v4124
        %v4253 = vunpack.c.l.b16 %v4125
        %v4254 = vpack.c.b16 %v4191, %v4190
        %v4255 = vpack.c.b16 %v4193, %v4192
        %v4256 = vpack.c.b16 %v4195, %v4194
        %v4257 = vpack.c.b16 %v4197, %v4196
        %v4258 = vpack.c.b16 %v4199, %v4198
        %v4259 = vpack.c.b16 %v4201, %v4200
        %v4260 = vpack.c.b16 %v4203, %v4202
        %v4261 = vpack.c.b16 %v4205, %v4204
        %v4262 = vpack.c.b16 %v4207, %v4206
        %v4263 = vpack.c.b16 %v4209, %v4208
        %v4264 = vpack.c.b16 %v4211, %v4210
        %v4265 = vpack.c.b16 %v4213, %v4212
        %v4266 = vpack.c.b16 %v4215, %v4214
        %v4267 = vpack.c.b16 %v4217, %v4216
        %v4268 = vpack.c.b16 %v4219, %v4218
        %v4269 = vpack.c.b16 %v4221, %v4220
        %v4270 = vpack.c.b16 %v4223, %v4222
        %v4271 = vpack.c.b16 %v4225, %v4224
        %v4272 = vpack.c.b16 %v4227, %v4226
        %v4273 = vpack.c.b16 %v4229, %v4228
        %v4274 = vpack.c.b16 %v4231, %v4230
        %v4275 = vpack.c.b16 %v4233, %v4232
        %v4276 = vpack.c.b16 %v4235, %v4234
        %v4277 = vpack.c.b16 %v4237, %v4236
        %v4278 = vpack.c.b16 %v4239, %v4238
        %v4279 = vpack.c.b16 %v4241, %v4240
        %v4280 = vpack.c.b16 %v4243, %v4242
        %v4281 = vpack.c.b16 %v4245, %v4244
        %v4282 = vpack.c.b16 %v4247, %v4246
        %v4283 = vpack.c.b16 %v4249, %v4248
        %v4284 = vpack.c.b16 %v4251, %v4250
        %v4285 = vpack.c.b16 %v4253, %v4252
        %4318 = vmatprep.subr.bf16.mxu0 0
        %4319 = vmatpush1.bf16.msra.mxu0 %v4254
        %4320 = vmatprep.subr.bf16.mxu0 0
        %4321 = vmatpush1.bf16.msra.mxu0 %v4255
        %4322 = vmatprep.subr.bf16.mxu0 0
        %4323 = vmatpush1.bf16.msra.mxu0 %v4256
        %4324 = vmatprep.subr.bf16.mxu0 0
        %4325 = vmatpush1.bf16.msra.mxu0 %v4257
        %4326 = vmatprep.subr.bf16.mxu0 0
        %4327 = vmatpush1.bf16.msra.mxu0 %v4258
        %4328 = vmatprep.subr.bf16.mxu0 0
        %4329 = vmatpush1.bf16.msra.mxu0 %v4259
        %4330 = vmatprep.subr.bf16.mxu0 0
        %4331 = vmatpush1.bf16.msra.mxu0 %v4260
        %4332 = vmatprep.subr.bf16.mxu0 0
        %4333 = vmatpush1.bf16.msra.mxu0 %v4261
        %4334 = vmatprep.subr.bf16.mxu0 0
        %4335 = vmatpush1.bf16.msra.mxu0 %v4262
        %4336 = vmatprep.subr.bf16.mxu0 0
        %4337 = vmatpush1.bf16.msra.mxu0 %v4263
        %4338 = vmatprep.subr.bf16.mxu0 0
        %4339 = vmatpush1.bf16.msra.mxu0 %v4264
        %4340 = vmatprep.subr.bf16.mxu0 0
        %4341 = vmatpush1.bf16.msra.mxu0 %v4265
        %4342 = vmatprep.subr.bf16.mxu0 0
        %4343 = vmatpush1.bf16.msra.mxu0 %v4266
        %4344 = vmatprep.subr.bf16.mxu0 0
        %4345 = vmatpush1.bf16.msra.mxu0 %v4267
        %4346 = vmatprep.subr.bf16.mxu0 0
        %4347 = vmatpush1.bf16.msra.mxu0 %v4268
        %4348 = vmatprep.subr.bf16.mxu0 0
        %4349 = vmatpush1.bf16.msra.mxu0 %v4269
        %4350 = vmatprep.mubr.bf16.mxu0 %v4059
        %4351 = vmatmul.mubr.bf16.gmra.mrb[0].mxu0 %v4058
        %v4352 = vpop.f32.mrb[0].mxu0
        %v4353 = vadd.f32 0.0, %v4352
        %v4354 = vpop.f32.mrb[0].mxu0
        %v4355 = vpop.f32.mrb[0].mxu0
        %v4356 = vpop.f32.mrb[0].mxu0
        %4357 = vdwg.mxu0
        %4358 = vmatprep.subr.bf16.mxu0 0
        %4359 = vmatpush1.bf16.msra.mxu0 %v4270
        %4360 = vmatprep.subr.bf16.mxu0 0
        %4361 = vmatpush1.bf16.msra.mxu0 %v4271
        %4362 = vmatprep.subr.bf16.mxu0 0
        %4363 = vmatpush1.bf16.msra.mxu0 %v4272
        %4364 = vmatprep.subr.bf16.mxu0 0
        %4365 = vmatpush1.bf16.msra.mxu0 %v4273
        %4366 = vmatprep.subr.bf16.mxu0 0
        %4367 = vmatpush1.bf16.msra.mxu0 %v4274
        %4368 = vmatprep.subr.bf16.mxu0 0
        %4369 = vmatpush1.bf16.msra.mxu0 %v4275
        %4370 = vmatprep.subr.bf16.mxu0 0
        %4371 = vmatpush1.bf16.msra.mxu0 %v4276
        %4372 = vmatprep.subr.bf16.mxu0 0
        %4373 = vmatpush1.bf16.msra.mxu0 %v4277
        %4374 = vmatprep.subr.bf16.mxu0 0
        %4375 = vmatpush1.bf16.msra.mxu0 %v4278
        %4376 = vmatprep.subr.bf16.mxu0 0
        %4377 = vmatpush1.bf16.msra.mxu0 %v4279
        %4378 = vmatprep.subr.bf16.mxu0 0
        %4379 = vmatpush1.bf16.msra.mxu0 %v4280
        %4380 = vmatprep.subr.bf16.mxu0 0
        %4381 = vmatpush1.bf16.msra.mxu0 %v4281
        %4382 = vmatprep.subr.bf16.mxu0 0
        %4383 = vmatpush1.bf16.msra.mxu0 %v4282
        %4384 = vmatprep.subr.bf16.mxu0 0
        %4385 = vmatpush1.bf16.msra.mxu0 %v4283
        %4386 = vmatprep.subr.bf16.mxu0 0
        %4387 = vmatpush1.bf16.msra.mxu0 %v4284
        %4388 = vmatprep.subr.bf16.mxu0 0
        %4389 = vmatpush1.bf16.msra.mxu0 %v4285
        %4390 = vmatprep.mubr.bf16.mxu0 %v4061
        %4391 = vmatmul.mubr.bf16.gmra.mrb[0].mxu0 %v4060
        %v4392 = vpop.f32.mrb[0].mxu0
        %v4393 = vadd.f32 %v4353, %v4392
        %v4394 = vpop.f32.mrb[0].mxu0
        %v4395 = vpop.f32.mrb[0].mxu0
        %v4396 = vpop.f32.mrb[0].mxu0
        %4397 = vdwg.mxu0
        %v4398 = vadd.f32 %v4393, 1.0
        %v4399 = vlog2.pop %v4398
        %v4400 = vmul.f32 %v4399, 0.6931472
        %v4401 = vmul.f32 -0.5, %v4393
        %v4402 = vadd.f32 %v4401, 1.0
        %v4403 = vmul.f32 %v4402, %v4393
        %v4404 = vand.u32 2147483647, %v4393
        %vm4405 = vcmp.lt.f32.partialorder %v4404, 0.0004427343
        %v4406 = vsel %vm4405, %v4403, %v4400
        %4407 = vst [vmem:[%s235] sm:$0xff] %v4406
        %s4408 = sand.u32 %s113, 1
        %s4409 = scalar_lea.sflag [#allocation4], %s4408
        %s4410 = sand.u32 %s113, 1
        %s4411 = smul.addr %s4410, 8
        %s4412 = scalar_lea.vmem [#allocation8], %s4411
        // Predicated region
        $region45: #{tpu_custom_call.1} parent=31 // pred_check
          %p4413 = pneg %p123
        $region46: #{tpu_custom_call.1} parent=31 // pred_check_branch
          %4415 = sbr.rel (%p4413) target = $region48
        $region47: #{tpu_custom_call.1} parent=31 // pred_region
          %s4416 = sadd.s32 %s25, %s26
          %s4418 = ssub.s32 128, 128
          %4419 = vsyncadd %s4409, %s4418
          %s4420 = smul.addr %s4416, 128
          %s4421 = scalar_lea.hbm %s3, %s4420
          %s4423 = sshll.u32 %s4412, 4
          %s4424 = int_to_ptr.vmem [resolvable:$true] %s4423
          %4426 = dma.vmem_to_hbm [thread:$0]  %s4424, 128, %s4421, %s4409
        $region48: #{tpu_custom_call.1} parent=31 // pred_fallthru
          _
      $region32: #{tpu_custom_call.1} parent=5 // pred_fallthru
        _
      %p4427 = scmp.le.s32.totalorder 2, %s16
      // Predicated region
      $region49: #{tpu_custom_call.1} parent=5 // pred_check
        %p4428 = pneg %p4427
      $region50: #{tpu_custom_call.1} parent=5 // pred_check_branch
        %4430 = sbr.rel (%p4428) target = $region52
      $region51: #{tpu_custom_call.1} parent=5 // pred_region
        %s4431 = ssub.s32 %s16, 2
        // Predicated region
        $region53: #{tpu_custom_call.1} parent=51 // pred_check
          %p4432 = pneg %p129
        $region54: #{tpu_custom_call.1} parent=51 // pred_check_branch
          %4434 = sbr.rel (%p4432) target = $region56
        $region55: #{tpu_custom_call.1} parent=51 // pred_region
          %s4435 = sand.u32 %s114, 1
          %s4436 = scalar_lea.sflag [#allocation4], %s4435
          %s4437 = sand.u32 %s114, 1
          %s4438 = smul.addr %s4437, 8
          %s4439 = scalar_lea.vmem [#allocation8], %s4438
          %4440 = dma.done %s4436, 128
        $region56: #{tpu_custom_call.1} parent=51 // pred_fallthru
          _
      $region52: #{tpu_custom_call.1} parent=5 // pred_fallthru
        _
    $region6: #{tpu_custom_call.1} parent=1 // loop_footer
      %s20 = sadd.s32 1, %s16
    $region7: #{tpu_custom_call.1} parent=1 // loop_footer_branch
      %15 = sbr.rel target = $region3
    $region8: #{tpu_custom_call.1} parent=1 // loop_exit
      _
    %4441 = vsyncpa [#allocation3], 1
    %s4442 = scalar_lea.sflag [#allocation3], 1
    %4443 = vsyncpa %s4442, 1
    %4444 = vsyncpa [#allocation6], 1
    %4445 = vsyncpa [#allocation4], 1
    %s4446 = scalar_lea.sflag [#allocation4], 1
    %4447 = vsyncpa %s4446, 1

</llo_original>
